<compile_context>
chip_gen: v7x
topology: tpu7x:2x2x1
jax: 0.10.0
libtpu: 0.0.40
codegen_flags: <defaults>
</compile_context>

<pallas_src>
import jax
import jax.numpy as jnp
from jax import lax
from jax.experimental import pallas as pl
from jax.experimental.pallas import tpu as pltpu


def _vmem_spec():
    return pl.BlockSpec(memory_space=pltpu.MemorySpace.VMEM)


# --------------------------------------------------------------------------
# Single fused kernel: harmonic encoding + GRU + GCN layers + gather + linear
# --------------------------------------------------------------------------
def make_fused_kernel(L, N, D, H, n_gcn, S, G, F):
    def kernel(*refs):
        (xflat_ref, freq_ref, phase_ref, wi_ref, wh_ref, bi_ref, bhn_ref,
         ahat_ref) = refs[:8]
        gcn_refs = refs[8:8 + 2 * n_gcn]
        idx_ref, wlin_ref, blin_ref, out_ref = refs[8 + 2 * n_gcn:]
        f32 = jnp.float32

        # ---- Harmonic time encoding for all L timesteps at once ----------
        # xflat: [L*N, 1] time-major timestamps -> emb_all: [L*N, D]
        emb_all = jnp.cos(xflat_ref[...] * freq_ref[...] + phase_ref[...])

        # ---- Input-side gate projections hoisted out of the recurrence ---
        # One [L*N, D] x [D, 3D] matmul.  bi = [b_ir+b_hr, b_iz+b_hz, b_in].
        gi_all = (jnp.dot(emb_all, wi_ref[...], preferred_element_type=f32)
                  + bi_ref[...])                                    # [L*N, 3D]

        # h0 = HarmonicEncoder(0) = cos(phase), identical for every node.
        h = jnp.broadcast_to(jnp.cos(phase_ref[...]), (N, D)).astype(f32)

        wh = wh_ref[...]                                            # [D, 3D]
        bhn = jnp.broadcast_to(bhn_ref[...], (N, D))                # hoisted

        # ---- GRU recurrence: one fused [N,D]x[D,3D] matmul per step -------
        for t in range(L):                   # L is small and static: unroll
            gi = gi_all[t * N:(t + 1) * N, :]                       # [N, 3D]
            gh = jnp.dot(h, wh, preferred_element_type=f32)         # [N, 3D]
            r = jax.nn.sigmoid(gi[:, 0:D] + gh[:, 0:D])
            z = jax.nn.sigmoid(gi[:, D:2 * D] + gh[:, D:2 * D])
            n = jnp.tanh(gi[:, 2 * D:3 * D] + r * (gh[:, 2 * D:3 * D] + bhn))
            h = (1.0 - z) * n + z * h                               # PyTorch GRU

        # ---- GCN layers: relu(A_hat @ (X @ W) + b) (dropout = identity) ---
        x = h
        a_hat = ahat_ref[...]
        for i in range(n_gcn):
            w = gcn_refs[2 * i][...]
            b = gcn_refs[2 * i + 1][...]
            xw = jnp.dot(x, w, preferred_element_type=f32)
            agg = jnp.dot(a_hat, xw, preferred_element_type=f32)
            x = jnp.maximum(agg + b, 0.0)

        # ---- set_indice gather (one-hot matmul) fused with final linear ---
        node_iota = lax.broadcasted_iota(jnp.int32, (G, N), 1)
        acc = jnp.broadcast_to(blin_ref[...], (G, F)).astype(f32)
        for s in range(S):
            sel = jnp.where(node_iota == idx_ref[:, s:s + 1], 1.0, 0.0)   # [G, N]
            g_s = jnp.dot(sel, x, preferred_element_type=f32)             # [G, H]
            w_s = wlin_ref[s * H:(s + 1) * H, :]                          # [H, F]
            acc = acc + jnp.dot(g_s, w_s, preferred_element_type=f32)
        out_ref[...] = acc

    return kernel


# --------------------------------------------------------------------------
# Full forward: graph preprocessing (scatter / cumsum) in JAX, rest in Pallas
# --------------------------------------------------------------------------
def gnn_forward(x_times, edge_index, batch_idx, set_indice, num_graphs, params):
    N, L = x_times.shape
    freq, phase = params["freq"], params["phase"]
    D = freq.shape[1]

    # Pack GRU params: fused gate matrices + pre-combined biases.
    (wir, wiz, win, whr, whz, whn,
     bir, biz, bin_, bhr, bhz, bhn) = params["gru"]
    wi = jnp.concatenate([wir, wiz, win], axis=1)                    # [D, 3D]
    wh = jnp.concatenate([whr, whz, whn], axis=1)                    # [D, 3D]
    bi = jnp.concatenate([bir + bhr, biz + bhz, bin_], axis=1)       # [1, 3D]

    # Time-major flattened timestamps for the hoisted input projection.
    x_flat = jnp.transpose(x_times).reshape(L * N, 1).astype(jnp.float32)

    # Dense symmetric-normalized adjacency (GCNConv with self loops).
    src, dst = edge_index
    A = jnp.zeros((N, N), jnp.float32).at[src, dst].add(1.0)
    A = jnp.minimum(A, 1.0)
    A_hat = A + jnp.eye(N, dtype=jnp.float32)
    deg = A_hat.sum(axis=1)
    dinv = 1.0 / jnp.sqrt(deg)
    A_hat = dinv[:, None] * A_hat * dinv[None, :]
    # TODO(synk): tile A_hat with a BlockSpec / sparse aggregation (and add a
    # parallel node-tile grid axis) once N grows beyond a few thousand; a dense
    # [N,N] f32 block hits the v7x 64 MiB per-TC VMEM ceiling near N~4096.

    # Global node indices of set_indice per graph (batch assumed contiguous).
    num_nodes = jnp.eye(num_graphs, dtype=jnp.float32)[batch_idx].sum(axis=0)
    index_bases = jnp.concatenate(
        [jnp.zeros((1,), jnp.int32), jnp.cumsum(num_nodes).astype(jnp.int32)[:-1]])
    set_indice_batch = (index_bases[:, None] + set_indice).astype(jnp.int32)  # [G, S]

    gcn = params["gcn"]
    n_gcn = len(gcn)
    H = gcn[0][0].shape[1]
    w_lin, b_lin = params["linear"]
    S = set_indice.shape[1]
    G = int(num_graphs)
    F = w_lin.shape[1]

    args = [x_flat, freq, phase, wi, wh, bi, bhn, A_hat]
    for (w, b) in gcn:
        args += [w, b]
    args += [set_indice_batch, w_lin, b_lin]

    kernel = make_fused_kernel(L, N, D, H, n_gcn, S, G, F)
    return pl.pallas_call(
        kernel,
        out_shape=jax.ShapeDtypeStruct((G, F), jnp.float32),
        in_specs=[_vmem_spec() for _ in args],
        out_specs=_vmem_spec(),
    )(*args)


# --------------------------------------------------------------------------
# Pure-JAX reference (same math, unfused) for a sanity check
# --------------------------------------------------------------------------
def reference_forward(x_times, edge_index, batch_idx, set_indice, num_graphs, params):
    N, L = x_times.shape
    freq, phase = params["freq"], params["phase"]
    h = jnp.cos(jnp.zeros((N, 1), jnp.float32) * freq + phase)
    wir, wiz, win, whr, whz, whn, bir, biz, bin_, bhr, bhz, bhn = params["gru"]
    for t in range(L):
        emb = jnp.cos(x_times[:, t:t + 1] * freq + phase)
        r = jax.nn.sigmoid(emb @ wir + bir + h @ whr + bhr)
        z = jax.nn.sigmoid(emb @ wiz + biz + h @ whz + bhz)
        n = jnp.tanh(emb @ win + bin_ + r * (h @ whn + bhn))
        h = (1.0 - z) * n + z * h
    x = h
    src, dst = edge_index
    A = jnp.zeros((N, N), jnp.float32).at[src, dst].add(1.0)
    A = jnp.minimum(A, 1.0)
    A_hat = A + jnp.eye(N, dtype=jnp.float32)
    deg = A_hat.sum(axis=1)
    dinv = 1.0 / jnp.sqrt(deg)
    A_hat = dinv[:, None] * A_hat * dinv[None, :]
    for (w, b) in params["gcn"]:
        x = jnp.maximum(A_hat @ (x @ w) + b, 0.0)
    num_nodes = jnp.eye(num_graphs, dtype=jnp.float32)[batch_idx].sum(axis=0)
    index_bases = jnp.concatenate(
        [jnp.zeros((1,), jnp.int32), jnp.cumsum(num_nodes).astype(jnp.int32)[:-1]])
    pooled = x[index_bases[:, None] + set_indice].reshape(num_graphs, -1)
    w_lin, b_lin = params["linear"]
    return pooled @ w_lin + b_lin


# --------------------------------------------------------------------------
if __name__ == "__main__":
    # Small config consistent with the module
    in_features = 32          # == HarmonicEncoder dimension == GRU input/hidden size
    hidden_features = 32
    out_features = 16
    set_indice_size = 3
    n_layers = 2
    L = 8                     # timestamps per node (GRU sequence length)
    num_graphs = 2
    nodes_per_graph = 8
    N = num_graphs * nodes_per_graph
    D = in_features

    key = jax.random.PRNGKey(0)
    ks = jax.random.split(key, 16)

    # HarmonicEncoder params (standard init: basis_freq = 1/10^linspace(0,9,D), phase = 0)
    freq = (1.0 / (10.0 ** jnp.linspace(0.0, 9.0, D))).reshape(1, D).astype(jnp.float32)
    phase = jnp.zeros((1, D), jnp.float32)

    def init(k, shape, scale=0.1):
        return (scale * jax.random.normal(k, shape)).astype(jnp.float32)

    # GRU params (gates r, z, n), stored transposed for x @ W
    gru = (init(ks[0], (D, D)), init(ks[1], (D, D)), init(ks[2], (D, D)),
           init(ks[3], (D, D)), init(ks[4], (D, D)), init(ks[5], (D, D)),
           init(ks[6], (1, D)), init(ks[7], (1, D)), init(ks[8], (1, D)),
           init(ks[9], (1, D)), init(ks[10], (1, D)), init(ks[11], (1, D)))

    # GCN layers: layer 1 (in_features -> hidden), layer 2 (hidden -> hidden)
    gcn = [(init(ks[12], (in_features, hidden_features)), jnp.zeros((1, hidden_features), jnp.float32)),
           (init(ks[13], (hidden_features, hidden_features)), jnp.zeros((1, hidden_features), jnp.float32))]

    # Final linear: (hidden * set_indice_size) -> out_features
    w_lin = init(ks[14], (hidden_features * set_indice_size, out_features))
    b_lin = init(ks[15], (1, out_features))

    params = {"freq": freq, "phase": phase, "gru": gru, "gcn": gcn,
              "linear": (w_lin, b_lin)}

    # Deterministic inputs: timestamps per node, ring graph within each sample
    x_times = jax.random.uniform(jax.random.PRNGKey(42), (N, L),
                                 minval=0.0, maxval=5.0).astype(jnp.float32)
    src, dst = [], []
    for g in range(num_graphs):
        base = g * nodes_per_graph
        for i in range(nodes_per_graph):
            a, b = base + i, base + (i + 1) % nodes_per_graph
            src += [a, b]
            dst += [b, a]
    edge_index = jnp.array([src, dst], dtype=jnp.int32)          # [2, 32]
    batch_idx = jnp.array([g for g in range(num_graphs) for _ in range(nodes_per_graph)],
                          dtype=jnp.int32)
    set_indice = jnp.tile(jnp.arange(set_indice_size, dtype=jnp.int32)[None, :],
                          (num_graphs, 1))                        # local node ids per graph

    out = gnn_forward(x_times, edge_index, batch_idx, set_indice, num_graphs, params)
    out = jax.block_until_ready(out)

    ref = reference_forward(x_times, edge_index, batch_idx, set_indice, num_graphs, params)
    assert out.shape == (num_graphs, out_features)
    assert jnp.allclose(out, ref, rtol=1e-2, atol=1e-2), "Pallas output mismatch vs reference"

    print("KERNEL_OK")
</pallas_src>

<mosaic_0001>
module attributes {stable_mosaic.version = 11 : i64} {
  func.func @kernel(%arg0: memref<128x1xf32, #tpu.memory_space<vmem>>, %arg1: memref<1x32xf32, #tpu.memory_space<vmem>>, %arg2: memref<1x32xf32, #tpu.memory_space<vmem>>, %arg3: memref<32x96xf32, #tpu.memory_space<vmem>>, %arg4: memref<32x96xf32, #tpu.memory_space<vmem>>, %arg5: memref<1x96xf32, #tpu.memory_space<vmem>>, %arg6: memref<1x32xf32, #tpu.memory_space<vmem>>, %arg7: memref<16x16xf32, #tpu.memory_space<vmem>>, %arg8: memref<32x32xf32, #tpu.memory_space<vmem>>, %arg9: memref<1x32xf32, #tpu.memory_space<vmem>>, %arg10: memref<32x32xf32, #tpu.memory_space<vmem>>, %arg11: memref<1x32xf32, #tpu.memory_space<vmem>>, %arg12: memref<2x3xi32, #tpu.memory_space<vmem>>, %arg13: memref<96x16xf32, #tpu.memory_space<vmem>>, %arg14: memref<1x16xf32, #tpu.memory_space<vmem>>, %arg15: memref<2x16xf32, #tpu.memory_space<vmem>>) attributes {dimension_semantics = [], scalar_prefetch = 0 : i64, scratch_operands = 0 : i64, tpu.core_type = #tpu.core_type<tc>} {
    %c0 = arith.constant 0 : index
    %c0_0 = arith.constant 0 : index
    %0 = vector.load %arg0[%c0, %c0_0] : memref<128x1xf32, #tpu.memory_space<vmem>>, vector<128x1xf32>
    %c0_1 = arith.constant 0 : index
    %c0_2 = arith.constant 0 : index
    %1 = vector.load %arg1[%c0_1, %c0_2] : memref<1x32xf32, #tpu.memory_space<vmem>>, vector<1x32xf32>
    %2 = vector.broadcast %0 : vector<128x1xf32> to vector<128x32xf32>
    %3 = vector.broadcast %1 : vector<1x32xf32> to vector<128x32xf32>
    %4 = arith.mulf %2, %3 : vector<128x32xf32>
    %c0_3 = arith.constant 0 : index
    %c0_4 = arith.constant 0 : index
    %5 = vector.load %arg2[%c0_3, %c0_4] : memref<1x32xf32, #tpu.memory_space<vmem>>, vector<1x32xf32>
    %6 = vector.broadcast %5 : vector<1x32xf32> to vector<128x32xf32>
    %7 = arith.addf %4, %6 : vector<128x32xf32>
    %8 = math.cos %7 : vector<128x32xf32>
    %c0_5 = arith.constant 0 : index
    %c0_6 = arith.constant 0 : index
    %9 = vector.load %arg3[%c0_5, %c0_6] : memref<32x96xf32, #tpu.memory_space<vmem>>, vector<32x96xf32>
    %cst = arith.constant dense<0.000000e+00> : vector<128x96xf32>
    %10 = tpu.matmul %8, %9, %cst {dimension_numbers = #tpu.dot_dimension_numbers<[1], [0], [0], [1], [0, 0, 1, 1], [], []>} : vector<128x32xf32>, vector<32x96xf32>, vector<128x96xf32> -> vector<128x96xf32>
    %c0_7 = arith.constant 0 : index
    %c0_8 = arith.constant 0 : index
    %11 = vector.load %arg5[%c0_7, %c0_8] : memref<1x96xf32, #tpu.memory_space<vmem>>, vector<1x96xf32>
    %12 = vector.broadcast %11 : vector<1x96xf32> to vector<128x96xf32>
    %13 = arith.addf %10, %12 : vector<128x96xf32>
    %c0_9 = arith.constant 0 : index
    %c0_10 = arith.constant 0 : index
    %14 = vector.load %arg2[%c0_9, %c0_10] : memref<1x32xf32, #tpu.memory_space<vmem>>, vector<1x32xf32>
    %15 = math.cos %14 : vector<1x32xf32>
    %16 = vector.shape_cast %15 : vector<1x32xf32> to vector<1x32xf32>
    %17 = vector.broadcast %16 : vector<1x32xf32> to vector<16x32xf32>
    %c0_11 = arith.constant 0 : index
    %c0_12 = arith.constant 0 : index
    %18 = vector.load %arg4[%c0_11, %c0_12] : memref<32x96xf32, #tpu.memory_space<vmem>>, vector<32x96xf32>
    %c0_13 = arith.constant 0 : index
    %c0_14 = arith.constant 0 : index
    %19 = vector.load %arg6[%c0_13, %c0_14] : memref<1x32xf32, #tpu.memory_space<vmem>>, vector<1x32xf32>
    %20 = vector.shape_cast %19 : vector<1x32xf32> to vector<1x32xf32>
    %21 = vector.broadcast %20 : vector<1x32xf32> to vector<16x32xf32>
    %22 = vector.extract_strided_slice %13 {offsets = [0, 0], sizes = [16, 96], strides = [1, 1]} : vector<128x96xf32> to vector<16x96xf32>
    %cst_15 = arith.constant dense<0.000000e+00> : vector<16x96xf32>
    %23 = tpu.matmul %17, %18, %cst_15 {dimension_numbers = #tpu.dot_dimension_numbers<[1], [0], [0], [1], [0, 0, 1, 1], [], []>} : vector<16x32xf32>, vector<32x96xf32>, vector<16x96xf32> -> vector<16x96xf32>
    %24 = vector.extract_strided_slice %22 {offsets = [0, 0], sizes = [16, 32], strides = [1, 1]} : vector<16x96xf32> to vector<16x32xf32>
    %25 = vector.extract_strided_slice %23 {offsets = [0, 0], sizes = [16, 32], strides = [1, 1]} : vector<16x96xf32> to vector<16x32xf32>
    %26 = arith.addf %24, %25 : vector<16x32xf32>
    %27 = arith.negf %26 : vector<16x32xf32>
    %28 = math.exp %27 : vector<16x32xf32>
    %cst_16 = arith.constant 1.000000e+00 : f32
    %29 = vector.broadcast %cst_16 : f32 to vector<16x32xf32>
    %30 = arith.addf %29, %28 : vector<16x32xf32>
    %31 = arith.divf %29, %30 : vector<16x32xf32>
    %32 = vector.extract_strided_slice %22 {offsets = [0, 32], sizes = [16, 32], strides = [1, 1]} : vector<16x96xf32> to vector<16x32xf32>
    %33 = vector.extract_strided_slice %23 {offsets = [0, 32], sizes = [16, 32], strides = [1, 1]} : vector<16x96xf32> to vector<16x32xf32>
    %34 = arith.addf %32, %33 : vector<16x32xf32>
    %35 = arith.negf %34 : vector<16x32xf32>
    %36 = math.exp %35 : vector<16x32xf32>
    %cst_17 = arith.constant 1.000000e+00 : f32
    %37 = vector.broadcast %cst_17 : f32 to vector<16x32xf32>
    %38 = arith.addf %37, %36 : vector<16x32xf32>
    %39 = arith.divf %37, %38 : vector<16x32xf32>
    %40 = vector.extract_strided_slice %22 {offsets = [0, 64], sizes = [16, 32], strides = [1, 1]} : vector<16x96xf32> to vector<16x32xf32>
    %41 = vector.extract_strided_slice %23 {offsets = [0, 64], sizes = [16, 32], strides = [1, 1]} : vector<16x96xf32> to vector<16x32xf32>
    %42 = arith.addf %41, %21 : vector<16x32xf32>
    %43 = arith.mulf %31, %42 : vector<16x32xf32>
    %44 = arith.addf %40, %43 : vector<16x32xf32>
    %45 = math.tanh %44 : vector<16x32xf32>
    %cst_18 = arith.constant 1.000000e+00 : f32
    %46 = vector.broadcast %cst_18 : f32 to vector<16x32xf32>
    %47 = arith.subf %46, %39 : vector<16x32xf32>
    %48 = arith.mulf %47, %45 : vector<16x32xf32>
    %49 = arith.mulf %39, %17 : vector<16x32xf32>
    %50 = arith.addf %48, %49 : vector<16x32xf32>
    %51 = vector.extract_strided_slice %13 {offsets = [16, 0], sizes = [16, 96], strides = [1, 1]} : vector<128x96xf32> to vector<16x96xf32>
    %cst_19 = arith.constant dense<0.000000e+00> : vector<16x96xf32>
    %52 = tpu.matmul %50, %18, %cst_19 {dimension_numbers = #tpu.dot_dimension_numbers<[1], [0], [0], [1], [0, 0, 1, 1], [], []>} : vector<16x32xf32>, vector<32x96xf32>, vector<16x96xf32> -> vector<16x96xf32>
    %53 = vector.extract_strided_slice %51 {offsets = [0, 0], sizes = [16, 32], strides = [1, 1]} : vector<16x96xf32> to vector<16x32xf32>
    %54 = vector.extract_strided_slice %52 {offsets = [0, 0], sizes = [16, 32], strides = [1, 1]} : vector<16x96xf32> to vector<16x32xf32>
    %55 = arith.addf %53, %54 : vector<16x32xf32>
    %56 = arith.negf %55 : vector<16x32xf32>
    %57 = math.exp %56 : vector<16x32xf32>
    %cst_20 = arith.constant 1.000000e+00 : f32
    %58 = vector.broadcast %cst_20 : f32 to vector<16x32xf32>
    %59 = arith.addf %58, %57 : vector<16x32xf32>
    %60 = arith.divf %58, %59 : vector<16x32xf32>
    %61 = vector.extract_strided_slice %51 {offsets = [0, 32], sizes = [16, 32], strides = [1, 1]} : vector<16x96xf32> to vector<16x32xf32>
    %62 = vector.extract_strided_slice %52 {offsets = [0, 32], sizes = [16, 32], strides = [1, 1]} : vector<16x96xf32> to vector<16x32xf32>
    %63 = arith.addf %61, %62 : vector<16x32xf32>
    %64 = arith.negf %63 : vector<16x32xf32>
    %65 = math.exp %64 : vector<16x32xf32>
    %cst_21 = arith.constant 1.000000e+00 : f32
    %66 = vector.broadcast %cst_21 : f32 to vector<16x32xf32>
    %67 = arith.addf %66, %65 : vector<16x32xf32>
    %68 = arith.divf %66, %67 : vector<16x32xf32>
    %69 = vector.extract_strided_slice %51 {offsets = [0, 64], sizes = [16, 32], strides = [1, 1]} : vector<16x96xf32> to vector<16x32xf32>
    %70 = vector.extract_strided_slice %52 {offsets = [0, 64], sizes = [16, 32], strides = [1, 1]} : vector<16x96xf32> to vector<16x32xf32>
    %71 = arith.addf %70, %21 : vector<16x32xf32>
    %72 = arith.mulf %60, %71 : vector<16x32xf32>
    %73 = arith.addf %69, %72 : vector<16x32xf32>
    %74 = math.tanh %73 : vector<16x32xf32>
    %cst_22 = arith.constant 1.000000e+00 : f32
    %75 = vector.broadcast %cst_22 : f32 to vector<16x32xf32>
    %76 = arith.subf %75, %68 : vector<16x32xf32>
    %77 = arith.mulf %76, %74 : vector<16x32xf32>
    %78 = arith.mulf %68, %50 : vector<16x32xf32>
    %79 = arith.addf %77, %78 : vector<16x32xf32>
    %80 = vector.extract_strided_slice %13 {offsets = [32, 0], sizes = [16, 96], strides = [1, 1]} : vector<128x96xf32> to vector<16x96xf32>
    %cst_23 = arith.constant dense<0.000000e+00> : vector<16x96xf32>
    %81 = tpu.matmul %79, %18, %cst_23 {dimension_numbers = #tpu.dot_dimension_numbers<[1], [0], [0], [1], [0, 0, 1, 1], [], []>} : vector<16x32xf32>, vector<32x96xf32>, vector<16x96xf32> -> vector<16x96xf32>
    %82 = vector.extract_strided_slice %80 {offsets = [0, 0], sizes = [16, 32], strides = [1, 1]} : vector<16x96xf32> to vector<16x32xf32>
    %83 = vector.extract_strided_slice %81 {offsets = [0, 0], sizes = [16, 32], strides = [1, 1]} : vector<16x96xf32> to vector<16x32xf32>
    %84 = arith.addf %82, %83 : vector<16x32xf32>
    %85 = arith.negf %84 : vector<16x32xf32>
    %86 = math.exp %85 : vector<16x32xf32>
    %cst_24 = arith.constant 1.000000e+00 : f32
    %87 = vector.broadcast %cst_24 : f32 to vector<16x32xf32>
    %88 = arith.addf %87, %86 : vector<16x32xf32>
    %89 = arith.divf %87, %88 : vector<16x32xf32>
    %90 = vector.extract_strided_slice %80 {offsets = [0, 32], sizes = [16, 32], strides = [1, 1]} : vector<16x96xf32> to vector<16x32xf32>
    %91 = vector.extract_strided_slice %81 {offsets = [0, 32], sizes = [16, 32], strides = [1, 1]} : vector<16x96xf32> to vector<16x32xf32>
    %92 = arith.addf %90, %91 : vector<16x32xf32>
    %93 = arith.negf %92 : vector<16x32xf32>
    %94 = math.exp %93 : vector<16x32xf32>
    %cst_25 = arith.constant 1.000000e+00 : f32
    %95 = vector.broadcast %cst_25 : f32 to vector<16x32xf32>
    %96 = arith.addf %95, %94 : vector<16x32xf32>
    %97 = arith.divf %95, %96 : vector<16x32xf32>
    %98 = vector.extract_strided_slice %80 {offsets = [0, 64], sizes = [16, 32], strides = [1, 1]} : vector<16x96xf32> to vector<16x32xf32>
    %99 = vector.extract_strided_slice %81 {offsets = [0, 64], sizes = [16, 32], strides = [1, 1]} : vector<16x96xf32> to vector<16x32xf32>
    %100 = arith.addf %99, %21 : vector<16x32xf32>
    %101 = arith.mulf %89, %100 : vector<16x32xf32>
    %102 = arith.addf %98, %101 : vector<16x32xf32>
    %103 = math.tanh %102 : vector<16x32xf32>
    %cst_26 = arith.constant 1.000000e+00 : f32
    %104 = vector.broadcast %cst_26 : f32 to vector<16x32xf32>
    %105 = arith.subf %104, %97 : vector<16x32xf32>
    %106 = arith.mulf %105, %103 : vector<16x32xf32>
    %107 = arith.mulf %97, %79 : vector<16x32xf32>
    %108 = arith.addf %106, %107 : vector<16x32xf32>
    %109 = vector.extract_strided_slice %13 {offsets = [48, 0], sizes = [16, 96], strides = [1, 1]} : vector<128x96xf32> to vector<16x96xf32>
    %cst_27 = arith.constant dense<0.000000e+00> : vector<16x96xf32>
    %110 = tpu.matmul %108, %18, %cst_27 {dimension_numbers = #tpu.dot_dimension_numbers<[1], [0], [0], [1], [0, 0, 1, 1], [], []>} : vector<16x32xf32>, vector<32x96xf32>, vector<16x96xf32> -> vector<16x96xf32>
    %111 = vector.extract_strided_slice %109 {offsets = [0, 0], sizes = [16, 32], strides = [1, 1]} : vector<16x96xf32> to vector<16x32xf32>
    %112 = vector.extract_strided_slice %110 {offsets = [0, 0], sizes = [16, 32], strides = [1, 1]} : vector<16x96xf32> to vector<16x32xf32>
    %113 = arith.addf %111, %112 : vector<16x32xf32>
    %114 = arith.negf %113 : vector<16x32xf32>
    %115 = math.exp %114 : vector<16x32xf32>
    %cst_28 = arith.constant 1.000000e+00 : f32
    %116 = vector.broadcast %cst_28 : f32 to vector<16x32xf32>
    %117 = arith.addf %116, %115 : vector<16x32xf32>
    %118 = arith.divf %116, %117 : vector<16x32xf32>
    %119 = vector.extract_strided_slice %109 {offsets = [0, 32], sizes = [16, 32], strides = [1, 1]} : vector<16x96xf32> to vector<16x32xf32>
    %120 = vector.extract_strided_slice %110 {offsets = [0, 32], sizes = [16, 32], strides = [1, 1]} : vector<16x96xf32> to vector<16x32xf32>
    %121 = arith.addf %119, %120 : vector<16x32xf32>
    %122 = arith.negf %121 : vector<16x32xf32>
    %123 = math.exp %122 : vector<16x32xf32>
    %cst_29 = arith.constant 1.000000e+00 : f32
    %124 = vector.broadcast %cst_29 : f32 to vector<16x32xf32>
    %125 = arith.addf %124, %123 : vector<16x32xf32>
    %126 = arith.divf %124, %125 : vector<16x32xf32>
    %127 = vector.extract_strided_slice %109 {offsets = [0, 64], sizes = [16, 32], strides = [1, 1]} : vector<16x96xf32> to vector<16x32xf32>
    %128 = vector.extract_strided_slice %110 {offsets = [0, 64], sizes = [16, 32], strides = [1, 1]} : vector<16x96xf32> to vector<16x32xf32>
    %129 = arith.addf %128, %21 : vector<16x32xf32>
    %130 = arith.mulf %118, %129 : vector<16x32xf32>
    %131 = arith.addf %127, %130 : vector<16x32xf32>
    %132 = math.tanh %131 : vector<16x32xf32>
    %cst_30 = arith.constant 1.000000e+00 : f32
    %133 = vector.broadcast %cst_30 : f32 to vector<16x32xf32>
    %134 = arith.subf %133, %126 : vector<16x32xf32>
    %135 = arith.mulf %134, %132 : vector<16x32xf32>
    %136 = arith.mulf %126, %108 : vector<16x32xf32>
    %137 = arith.addf %135, %136 : vector<16x32xf32>
    %138 = vector.extract_strided_slice %13 {offsets = [64, 0], sizes = [16, 96], strides = [1, 1]} : vector<128x96xf32> to vector<16x96xf32>
    %cst_31 = arith.constant dense<0.000000e+00> : vector<16x96xf32>
    %139 = tpu.matmul %137, %18, %cst_31 {dimension_numbers = #tpu.dot_dimension_numbers<[1], [0], [0], [1], [0, 0, 1, 1], [], []>} : vector<16x32xf32>, vector<32x96xf32>, vector<16x96xf32> -> vector<16x96xf32>
    %140 = vector.extract_strided_slice %138 {offsets = [0, 0], sizes = [16, 32], strides = [1, 1]} : vector<16x96xf32> to vector<16x32xf32>
    %141 = vector.extract_strided_slice %139 {offsets = [0, 0], sizes = [16, 32], strides = [1, 1]} : vector<16x96xf32> to vector<16x32xf32>
    %142 = arith.addf %140, %141 : vector<16x32xf32>
    %143 = arith.negf %142 : vector<16x32xf32>
    %144 = math.exp %143 : vector<16x32xf32>
    %cst_32 = arith.constant 1.000000e+00 : f32
    %145 = vector.broadcast %cst_32 : f32 to vector<16x32xf32>
    %146 = arith.addf %145, %144 : vector<16x32xf32>
    %147 = arith.divf %145, %146 : vector<16x32xf32>
    %148 = vector.extract_strided_slice %138 {offsets = [0, 32], sizes = [16, 32], strides = [1, 1]} : vector<16x96xf32> to vector<16x32xf32>
    %149 = vector.extract_strided_slice %139 {offsets = [0, 32], sizes = [16, 32], strides = [1, 1]} : vector<16x96xf32> to vector<16x32xf32>
    %150 = arith.addf %148, %149 : vector<16x32xf32>
    %151 = arith.negf %150 : vector<16x32xf32>
    %152 = math.exp %151 : vector<16x32xf32>
    %cst_33 = arith.constant 1.000000e+00 : f32
    %153 = vector.broadcast %cst_33 : f32 to vector<16x32xf32>
    %154 = arith.addf %153, %152 : vector<16x32xf32>
    %155 = arith.divf %153, %154 : vector<16x32xf32>
    %156 = vector.extract_strided_slice %138 {offsets = [0, 64], sizes = [16, 32], strides = [1, 1]} : vector<16x96xf32> to vector<16x32xf32>
    %157 = vector.extract_strided_slice %139 {offsets = [0, 64], sizes = [16, 32], strides = [1, 1]} : vector<16x96xf32> to vector<16x32xf32>
    %158 = arith.addf %157, %21 : vector<16x32xf32>
    %159 = arith.mulf %147, %158 : vector<16x32xf32>
    %160 = arith.addf %156, %159 : vector<16x32xf32>
    %161 = math.tanh %160 : vector<16x32xf32>
    %cst_34 = arith.constant 1.000000e+00 : f32
    %162 = vector.broadcast %cst_34 : f32 to vector<16x32xf32>
    %163 = arith.subf %162, %155 : vector<16x32xf32>
    %164 = arith.mulf %163, %161 : vector<16x32xf32>
    %165 = arith.mulf %155, %137 : vector<16x32xf32>
    %166 = arith.addf %164, %165 : vector<16x32xf32>
    %167 = vector.extract_strided_slice %13 {offsets = [80, 0], sizes = [16, 96], strides = [1, 1]} : vector<128x96xf32> to vector<16x96xf32>
    %cst_35 = arith.constant dense<0.000000e+00> : vector<16x96xf32>
    %168 = tpu.matmul %166, %18, %cst_35 {dimension_numbers = #tpu.dot_dimension_numbers<[1], [0], [0], [1], [0, 0, 1, 1], [], []>} : vector<16x32xf32>, vector<32x96xf32>, vector<16x96xf32> -> vector<16x96xf32>
    %169 = vector.extract_strided_slice %167 {offsets = [0, 0], sizes = [16, 32], strides = [1, 1]} : vector<16x96xf32> to vector<16x32xf32>
    %170 = vector.extract_strided_slice %168 {offsets = [0, 0], sizes = [16, 32], strides = [1, 1]} : vector<16x96xf32> to vector<16x32xf32>
    %171 = arith.addf %169, %170 : vector<16x32xf32>
    %172 = arith.negf %171 : vector<16x32xf32>
    %173 = math.exp %172 : vector<16x32xf32>
    %cst_36 = arith.constant 1.000000e+00 : f32
    %174 = vector.broadcast %cst_36 : f32 to vector<16x32xf32>
    %175 = arith.addf %174, %173 : vector<16x32xf32>
    %176 = arith.divf %174, %175 : vector<16x32xf32>
    %177 = vector.extract_strided_slice %167 {offsets = [0, 32], sizes = [16, 32], strides = [1, 1]} : vector<16x96xf32> to vector<16x32xf32>
    %178 = vector.extract_strided_slice %168 {offsets = [0, 32], sizes = [16, 32], strides = [1, 1]} : vector<16x96xf32> to vector<16x32xf32>
    %179 = arith.addf %177, %178 : vector<16x32xf32>
    %180 = arith.negf %179 : vector<16x32xf32>
    %181 = math.exp %180 : vector<16x32xf32>
    %cst_37 = arith.constant 1.000000e+00 : f32
    %182 = vector.broadcast %cst_37 : f32 to vector<16x32xf32>
    %183 = arith.addf %182, %181 : vector<16x32xf32>
    %184 = arith.divf %182, %183 : vector<16x32xf32>
    %185 = vector.extract_strided_slice %167 {offsets = [0, 64], sizes = [16, 32], strides = [1, 1]} : vector<16x96xf32> to vector<16x32xf32>
    %186 = vector.extract_strided_slice %168 {offsets = [0, 64], sizes = [16, 32], strides = [1, 1]} : vector<16x96xf32> to vector<16x32xf32>
    %187 = arith.addf %186, %21 : vector<16x32xf32>
    %188 = arith.mulf %176, %187 : vector<16x32xf32>
    %189 = arith.addf %185, %188 : vector<16x32xf32>
    %190 = math.tanh %189 : vector<16x32xf32>
    %cst_38 = arith.constant 1.000000e+00 : f32
    %191 = vector.broadcast %cst_38 : f32 to vector<16x32xf32>
    %192 = arith.subf %191, %184 : vector<16x32xf32>
    %193 = arith.mulf %192, %190 : vector<16x32xf32>
    %194 = arith.mulf %184, %166 : vector<16x32xf32>
    %195 = arith.addf %193, %194 : vector<16x32xf32>
    %196 = vector.extract_strided_slice %13 {offsets = [96, 0], sizes = [16, 96], strides = [1, 1]} : vector<128x96xf32> to vector<16x96xf32>
    %cst_39 = arith.constant dense<0.000000e+00> : vector<16x96xf32>
    %197 = tpu.matmul %195, %18, %cst_39 {dimension_numbers = #tpu.dot_dimension_numbers<[1], [0], [0], [1], [0, 0, 1, 1], [], []>} : vector<16x32xf32>, vector<32x96xf32>, vector<16x96xf32> -> vector<16x96xf32>
    %198 = vector.extract_strided_slice %196 {offsets = [0, 0], sizes = [16, 32], strides = [1, 1]} : vector<16x96xf32> to vector<16x32xf32>
    %199 = vector.extract_strided_slice %197 {offsets = [0, 0], sizes = [16, 32], strides = [1, 1]} : vector<16x96xf32> to vector<16x32xf32>
    %200 = arith.addf %198, %199 : vector<16x32xf32>
    %201 = arith.negf %200 : vector<16x32xf32>
    %202 = math.exp %201 : vector<16x32xf32>
    %cst_40 = arith.constant 1.000000e+00 : f32
    %203 = vector.broadcast %cst_40 : f32 to vector<16x32xf32>
    %204 = arith.addf %203, %202 : vector<16x32xf32>
    %205 = arith.divf %203, %204 : vector<16x32xf32>
    %206 = vector.extract_strided_slice %196 {offsets = [0, 32], sizes = [16, 32], strides = [1, 1]} : vector<16x96xf32> to vector<16x32xf32>
    %207 = vector.extract_strided_slice %197 {offsets = [0, 32], sizes = [16, 32], strides = [1, 1]} : vector<16x96xf32> to vector<16x32xf32>
    %208 = arith.addf %206, %207 : vector<16x32xf32>
    %209 = arith.negf %208 : vector<16x32xf32>
    %210 = math.exp %209 : vector<16x32xf32>
    %cst_41 = arith.constant 1.000000e+00 : f32
    %211 = vector.broadcast %cst_41 : f32 to vector<16x32xf32>
    %212 = arith.addf %211, %210 : vector<16x32xf32>
    %213 = arith.divf %211, %212 : vector<16x32xf32>
    %214 = vector.extract_strided_slice %196 {offsets = [0, 64], sizes = [16, 32], strides = [1, 1]} : vector<16x96xf32> to vector<16x32xf32>
    %215 = vector.extract_strided_slice %197 {offsets = [0, 64], sizes = [16, 32], strides = [1, 1]} : vector<16x96xf32> to vector<16x32xf32>
    %216 = arith.addf %215, %21 : vector<16x32xf32>
    %217 = arith.mulf %205, %216 : vector<16x32xf32>
    %218 = arith.addf %214, %217 : vector<16x32xf32>
    %219 = math.tanh %218 : vector<16x32xf32>
    %cst_42 = arith.constant 1.000000e+00 : f32
    %220 = vector.broadcast %cst_42 : f32 to vector<16x32xf32>
    %221 = arith.subf %220, %213 : vector<16x32xf32>
    %222 = arith.mulf %221, %219 : vector<16x32xf32>
    %223 = arith.mulf %213, %195 : vector<16x32xf32>
    %224 = arith.addf %222, %223 : vector<16x32xf32>
    %225 = vector.extract_strided_slice %13 {offsets = [112, 0], sizes = [16, 96], strides = [1, 1]} : vector<128x96xf32> to vector<16x96xf32>
    %cst_43 = arith.constant dense<0.000000e+00> : vector<16x96xf32>
    %226 = tpu.matmul %224, %18, %cst_43 {dimension_numbers = #tpu.dot_dimension_numbers<[1], [0], [0], [1], [0, 0, 1, 1], [], []>} : vector<16x32xf32>, vector<32x96xf32>, vector<16x96xf32> -> vector<16x96xf32>
    %227 = vector.extract_strided_slice %225 {offsets = [0, 0], sizes = [16, 32], strides = [1, 1]} : vector<16x96xf32> to vector<16x32xf32>
    %228 = vector.extract_strided_slice %226 {offsets = [0, 0], sizes = [16, 32], strides = [1, 1]} : vector<16x96xf32> to vector<16x32xf32>
    %229 = arith.addf %227, %228 : vector<16x32xf32>
    %230 = arith.negf %229 : vector<16x32xf32>
    %231 = math.exp %230 : vector<16x32xf32>
    %cst_44 = arith.constant 1.000000e+00 : f32
    %232 = vector.broadcast %cst_44 : f32 to vector<16x32xf32>
    %233 = arith.addf %232, %231 : vector<16x32xf32>
    %234 = arith.divf %232, %233 : vector<16x32xf32>
    %235 = vector.extract_strided_slice %225 {offsets = [0, 32], sizes = [16, 32], strides = [1, 1]} : vector<16x96xf32> to vector<16x32xf32>
    %236 = vector.extract_strided_slice %226 {offsets = [0, 32], sizes = [16, 32], strides = [1, 1]} : vector<16x96xf32> to vector<16x32xf32>
    %237 = arith.addf %235, %236 : vector<16x32xf32>
    %238 = arith.negf %237 : vector<16x32xf32>
    %239 = math.exp %238 : vector<16x32xf32>
    %cst_45 = arith.constant 1.000000e+00 : f32
    %240 = vector.broadcast %cst_45 : f32 to vector<16x32xf32>
    %241 = arith.addf %240, %239 : vector<16x32xf32>
    %242 = arith.divf %240, %241 : vector<16x32xf32>
    %243 = vector.extract_strided_slice %225 {offsets = [0, 64], sizes = [16, 32], strides = [1, 1]} : vector<16x96xf32> to vector<16x32xf32>
    %244 = vector.extract_strided_slice %226 {offsets = [0, 64], sizes = [16, 32], strides = [1, 1]} : vector<16x96xf32> to vector<16x32xf32>
    %245 = arith.addf %244, %21 : vector<16x32xf32>
    %246 = arith.mulf %234, %245 : vector<16x32xf32>
    %247 = arith.addf %243, %246 : vector<16x32xf32>
    %248 = math.tanh %247 : vector<16x32xf32>
    %cst_46 = arith.constant 1.000000e+00 : f32
    %249 = vector.broadcast %cst_46 : f32 to vector<16x32xf32>
    %250 = arith.subf %249, %242 : vector<16x32xf32>
    %251 = arith.mulf %250, %248 : vector<16x32xf32>
    %252 = arith.mulf %242, %224 : vector<16x32xf32>
    %253 = arith.addf %251, %252 : vector<16x32xf32>
    %c0_47 = arith.constant 0 : index
    %c0_48 = arith.constant 0 : index
    %254 = vector.load %arg7[%c0_47, %c0_48] : memref<16x16xf32, #tpu.memory_space<vmem>>, vector<16x16xf32>
    %c0_49 = arith.constant 0 : index
    %c0_50 = arith.constant 0 : index
    %255 = vector.load %arg8[%c0_49, %c0_50] : memref<32x32xf32, #tpu.memory_space<vmem>>, vector<32x32xf32>
    %c0_51 = arith.constant 0 : index
    %c0_52 = arith.constant 0 : index
    %256 = vector.load %arg9[%c0_51, %c0_52] : memref<1x32xf32, #tpu.memory_space<vmem>>, vector<1x32xf32>
    %cst_53 = arith.constant dense<0.000000e+00> : vector<16x32xf32>
    %257 = tpu.matmul %253, %255, %cst_53 {dimension_numbers = #tpu.dot_dimension_numbers<[1], [0], [0], [1], [0, 0, 1, 1], [], []>} : vector<16x32xf32>, vector<32x32xf32>, vector<16x32xf32> -> vector<16x32xf32>
    %cst_54 = arith.constant dense<0.000000e+00> : vector<16x32xf32>
    %258 = tpu.matmul %254, %257, %cst_54 {dimension_numbers = #tpu.dot_dimension_numbers<[1], [0], [0], [1], [0, 0, 1, 1], [], []>} : vector<16x16xf32>, vector<16x32xf32>, vector<16x32xf32> -> vector<16x32xf32>
    %259 = vector.broadcast %256 : vector<1x32xf32> to vector<16x32xf32>
    %260 = arith.addf %258, %259 : vector<16x32xf32>
    %cst_55 = arith.constant 0.000000e+00 : f32
    %261 = vector.broadcast %cst_55 : f32 to vector<16x32xf32>
    %262 = arith.maximumf %260, %261 : vector<16x32xf32>
    %c0_56 = arith.constant 0 : index
    %c0_57 = arith.constant 0 : index
    %263 = vector.load %arg10[%c0_56, %c0_57] : memref<32x32xf32, #tpu.memory_space<vmem>>, vector<32x32xf32>
    %c0_58 = arith.constant 0 : index
    %c0_59 = arith.constant 0 : index
    %264 = vector.load %arg11[%c0_58, %c0_59] : memref<1x32xf32, #tpu.memory_space<vmem>>, vector<1x32xf32>
    %cst_60 = arith.constant dense<0.000000e+00> : vector<16x32xf32>
    %265 = tpu.matmul %262, %263, %cst_60 {dimension_numbers = #tpu.dot_dimension_numbers<[1], [0], [0], [1], [0, 0, 1, 1], [], []>} : vector<16x32xf32>, vector<32x32xf32>, vector<16x32xf32> -> vector<16x32xf32>
    %cst_61 = arith.constant dense<0.000000e+00> : vector<16x32xf32>
    %266 = tpu.matmul %254, %265, %cst_61 {dimension_numbers = #tpu.dot_dimension_numbers<[1], [0], [0], [1], [0, 0, 1, 1], [], []>} : vector<16x16xf32>, vector<16x32xf32>, vector<16x32xf32> -> vector<16x32xf32>
    %267 = vector.broadcast %264 : vector<1x32xf32> to vector<16x32xf32>
    %268 = arith.addf %266, %267 : vector<16x32xf32>
    %cst_62 = arith.constant 0.000000e+00 : f32
    %269 = vector.broadcast %cst_62 : f32 to vector<16x32xf32>
    %270 = arith.maximumf %268, %269 : vector<16x32xf32>
    %271 = tpu.iota {dimensions = array<i32: 1>} : vector<2x16xi32>
    %c0_63 = arith.constant 0 : index
    %c0_64 = arith.constant 0 : index
    %272 = vector.load %arg14[%c0_63, %c0_64] : memref<1x16xf32, #tpu.memory_space<vmem>>, vector<1x16xf32>
    %273 = vector.shape_cast %272 : vector<1x16xf32> to vector<1x16xf32>
    %274 = vector.broadcast %273 : vector<1x16xf32> to vector<2x16xf32>
    %c0_65 = arith.constant 0 : index
    %c0_66 = arith.constant 0 : index
    %275 = vector.load %arg12[%c0_65, %c0_66] : memref<2x3xi32, #tpu.memory_space<vmem>>, vector<2x1xi32>
    %276 = vector.broadcast %275 : vector<2x1xi32> to vector<2x16xi32>
    %277 = arith.cmpi eq, %271, %276 : vector<2x16xi32>
    %cst_67 = arith.constant 1.000000e+00 : f32
    %cst_68 = arith.constant 0.000000e+00 : f32
    %278 = vector.broadcast %cst_67 : f32 to vector<2x16xf32>
    %279 = vector.broadcast %cst_68 : f32 to vector<2x16xf32>
    %280 = arith.select %277, %278, %279 : vector<2x16xi1>, vector<2x16xf32>
    %cst_69 = arith.constant dense<0.000000e+00> : vector<2x32xf32>
    %281 = tpu.matmul %280, %270, %cst_69 {dimension_numbers = #tpu.dot_dimension_numbers<[1], [0], [0], [1], [0, 0, 1, 1], [], []>} : vector<2x16xf32>, vector<16x32xf32>, vector<2x32xf32> -> vector<2x32xf32>
    %c0_70 = arith.constant 0 : index
    %c0_71 = arith.constant 0 : index
    %282 = vector.load %arg13[%c0_70, %c0_71] : memref<96x16xf32, #tpu.memory_space<vmem>>, vector<32x16xf32>
    %cst_72 = arith.constant dense<0.000000e+00> : vector<2x16xf32>
    %283 = tpu.matmul %281, %282, %cst_72 {dimension_numbers = #tpu.dot_dimension_numbers<[1], [0], [0], [1], [0, 0, 1, 1], [], []>} : vector<2x32xf32>, vector<32x16xf32>, vector<2x16xf32> -> vector<2x16xf32>
    %284 = arith.addf %274, %283 : vector<2x16xf32>
    %c0_73 = arith.constant 0 : index
    %c1 = arith.constant 1 : index
    %285 = vector.load %arg12[%c0_73, %c1] : memref<2x3xi32, #tpu.memory_space<vmem>>, vector<2x1xi32>
    %286 = vector.broadcast %285 : vector<2x1xi32> to vector<2x16xi32>
    %287 = arith.cmpi eq, %271, %286 : vector<2x16xi32>
    %cst_74 = arith.constant 1.000000e+00 : f32
    %cst_75 = arith.constant 0.000000e+00 : f32
    %288 = vector.broadcast %cst_74 : f32 to vector<2x16xf32>
    %289 = vector.broadcast %cst_75 : f32 to vector<2x16xf32>
    %290 = arith.select %287, %288, %289 : vector<2x16xi1>, vector<2x16xf32>
    %cst_76 = arith.constant dense<0.000000e+00> : vector<2x32xf32>
    %291 = tpu.matmul %290, %270, %cst_76 {dimension_numbers = #tpu.dot_dimension_numbers<[1], [0], [0], [1], [0, 0, 1, 1], [], []>} : vector<2x16xf32>, vector<16x32xf32>, vector<2x32xf32> -> vector<2x32xf32>
    %c32 = arith.constant 32 : index
    %c0_77 = arith.constant 0 : index
    %292 = vector.load %arg13[%c32, %c0_77] : memref<96x16xf32, #tpu.memory_space<vmem>>, vector<32x16xf32>
    %cst_78 = arith.constant dense<0.000000e+00> : vector<2x16xf32>
    %293 = tpu.matmul %291, %292, %cst_78 {dimension_numbers = #tpu.dot_dimension_numbers<[1], [0], [0], [1], [0, 0, 1, 1], [], []>} : vector<2x32xf32>, vector<32x16xf32>, vector<2x16xf32> -> vector<2x16xf32>
    %294 = arith.addf %284, %293 : vector<2x16xf32>
    %c0_79 = arith.constant 0 : index
    %c2 = arith.constant 2 : index
    %295 = vector.load %arg12[%c0_79, %c2] : memref<2x3xi32, #tpu.memory_space<vmem>>, vector<2x1xi32>
    %296 = vector.broadcast %295 : vector<2x1xi32> to vector<2x16xi32>
    %297 = arith.cmpi eq, %271, %296 : vector<2x16xi32>
    %cst_80 = arith.constant 1.000000e+00 : f32
    %cst_81 = arith.constant 0.000000e+00 : f32
    %298 = vector.broadcast %cst_80 : f32 to vector<2x16xf32>
    %299 = vector.broadcast %cst_81 : f32 to vector<2x16xf32>
    %300 = arith.select %297, %298, %299 : vector<2x16xi1>, vector<2x16xf32>
    %cst_82 = arith.constant dense<0.000000e+00> : vector<2x32xf32>
    %301 = tpu.matmul %300, %270, %cst_82 {dimension_numbers = #tpu.dot_dimension_numbers<[1], [0], [0], [1], [0, 0, 1, 1], [], []>} : vector<2x16xf32>, vector<16x32xf32>, vector<2x32xf32> -> vector<2x32xf32>
    %c64 = arith.constant 64 : index
    %c0_83 = arith.constant 0 : index
    %302 = vector.load %arg13[%c64, %c0_83] : memref<96x16xf32, #tpu.memory_space<vmem>>, vector<32x16xf32>
    %cst_84 = arith.constant dense<0.000000e+00> : vector<2x16xf32>
    %303 = tpu.matmul %301, %302, %cst_84 {dimension_numbers = #tpu.dot_dimension_numbers<[1], [0], [0], [1], [0, 0, 1, 1], [], []>} : vector<2x32xf32>, vector<32x16xf32>, vector<2x16xf32> -> vector<2x16xf32>
    %304 = arith.addf %294, %303 : vector<2x16xf32>
    %c0_85 = arith.constant 0 : index
    %c0_86 = arith.constant 0 : index
    %305 = vector.load %arg15[%c0_85, %c0_86] : memref<2x16xf32, #tpu.memory_space<vmem>>, vector<2x16xf32>
    tpu.vector_store %arg15[%c0_85, %c0_86], %304 {strides = array<i32>} : memref<2x16xf32, #tpu.memory_space<vmem>>, vector<2x16xf32>,
    return
  }
}

</mosaic_0001>

<llo_original>
// kernel: tpu_custom_call.1
$region0: #{tpu_custom_call.1}
  #allocation0 [shape = 'u32[]', space=smem, size = 0x4, offset = 0x4, fixed_abs, tag = 'smem constant byte address 0x4 - core index']
  #allocation1 [shape = 'u32[144,128]{1,0:T(1,128)}', space=vmem, size = 0x12000, scoped, tag = 'internal scratch']
  %s0 = inlined_call_operand.vmem [shape: f32[128,1], index: 0, kind: input, shape index: {}]
  %s1 = inlined_call_operand.vmem [shape: f32[1,32], index: 1, kind: input, shape index: {}]
  %s2 = inlined_call_operand.vmem [shape: f32[1,32], index: 2, kind: input, shape index: {}]
  %s3 = inlined_call_operand.vmem [shape: f32[32,96], index: 3, kind: input, shape index: {}]
  %s4 = inlined_call_operand.vmem [shape: f32[32,96], index: 4, kind: input, shape index: {}]
  %s5 = inlined_call_operand.vmem [shape: f32[1,96], index: 5, kind: input, shape index: {}]
  %s6 = inlined_call_operand.vmem [shape: f32[1,32], index: 6, kind: input, shape index: {}]
  %s7 = inlined_call_operand.vmem [shape: f32[16,16], index: 7, kind: input, shape index: {}]
  %s8 = inlined_call_operand.vmem [shape: f32[32,32], index: 8, kind: input, shape index: {}]
  %s9 = inlined_call_operand.vmem [shape: f32[1,32], index: 9, kind: input, shape index: {}]
  %s10 = inlined_call_operand.vmem [shape: f32[32,32], index: 10, kind: input, shape index: {}]
  %s11 = inlined_call_operand.vmem [shape: f32[1,32], index: 11, kind: input, shape index: {}]
  %s12 = inlined_call_operand.vmem [shape: s32[2,3], index: 12, kind: input, shape index: {}]
  %s13 = inlined_call_operand.vmem [shape: f32[96,16], index: 13, kind: input, shape index: {}]
  %s14 = inlined_call_operand.vmem [shape: f32[1,16], index: 14, kind: input, shape index: {}]
  %s15 = inlined_call_operand.hbm [shape: f32[2,16], index: 15, kind: output, shape index: {}]
  %s16 = sld [smem:[#allocation0]]
  $region70: #{tpu_custom_call.1} parent=0
    _
  %s18 = ssub.s32 1, %s16
  %s19 = scalar_select 0, %s18, %s16
  $region1: #{tpu_custom_call.1} parent=0
    #allocation2 [shape = 'u8[1024]{0}', space=vmem, size = 0x400, scoped, tag = 'output window, operand 0, single buffered']
    #allocation3 [shape = 's32[1]{0}', space=sflag, size = 0x4, scoped, tag = 'scoped memory for tpu_custom_call.1']
    %20 = vsyncpa [#allocation3], 0
    // Predicated region
    $region2: #{tpu_custom_call.1} parent=1 // pred_check
      _
    $region3: #{tpu_custom_call.1} parent=1 // pred_check_branch
      %22 = sbr.rel (0) target = $region5
    $region4: #{tpu_custom_call.1} parent=1 // pred_region
      _
    $region5: #{tpu_custom_call.1} parent=1 // pred_fallthru
      _
    // Predicated region
    $region6: #{tpu_custom_call.1} parent=1 // pred_check
      _
    $region7: #{tpu_custom_call.1} parent=1 // pred_check_branch
      %24 = sbr.rel (0) target = $region9
    $region8: #{tpu_custom_call.1} parent=1 // pred_region
      _
    $region9: #{tpu_custom_call.1} parent=1 // pred_fallthru
      _
    // Predicated region
    $region10: #{tpu_custom_call.1} parent=1 // pred_check
      _
    $region11: #{tpu_custom_call.1} parent=1 // pred_check_branch
      %26 = sbr.rel (0) target = $region13
    $region12: #{tpu_custom_call.1} parent=1 // pred_region
      _
    $region13: #{tpu_custom_call.1} parent=1 // pred_fallthru
      _
    // Predicated region
    $region14: #{tpu_custom_call.1} parent=1 // pred_check
      _
    $region15: #{tpu_custom_call.1} parent=1 // pred_check_branch
      %28 = sbr.rel (0) target = $region17
    $region16: #{tpu_custom_call.1} parent=1 // pred_region
      _
    $region17: #{tpu_custom_call.1} parent=1 // pred_fallthru
      _
    // Predicated region
    $region18: #{tpu_custom_call.1} parent=1 // pred_check
      _
    $region19: #{tpu_custom_call.1} parent=1 // pred_check_branch
      %30 = sbr.rel (0) target = $region21
    $region20: #{tpu_custom_call.1} parent=1 // pred_region
      _
    $region21: #{tpu_custom_call.1} parent=1 // pred_fallthru
      _
    // Predicated region
    $region22: #{tpu_custom_call.1} parent=1 // pred_check
      _
    $region23: #{tpu_custom_call.1} parent=1 // pred_check_branch
      %32 = sbr.rel (0) target = $region25
    $region24: #{tpu_custom_call.1} parent=1 // pred_region
      _
    $region25: #{tpu_custom_call.1} parent=1 // pred_fallthru
      _
    // Predicated region
    $region26: #{tpu_custom_call.1} parent=1 // pred_check
      _
    $region27: #{tpu_custom_call.1} parent=1 // pred_check_branch
      %34 = sbr.rel (0) target = $region29
    $region28: #{tpu_custom_call.1} parent=1 // pred_region
      _
    $region29: #{tpu_custom_call.1} parent=1 // pred_fallthru
      _
    // Predicated region
    $region30: #{tpu_custom_call.1} parent=1 // pred_check
      _
    $region31: #{tpu_custom_call.1} parent=1 // pred_check_branch
      %36 = sbr.rel (0) target = $region33
    $region32: #{tpu_custom_call.1} parent=1 // pred_region
      _
    $region33: #{tpu_custom_call.1} parent=1 // pred_fallthru
      _
    // Predicated region
    $region34: #{tpu_custom_call.1} parent=1 // pred_check
      _
    $region35: #{tpu_custom_call.1} parent=1 // pred_check_branch
      %38 = sbr.rel (0) target = $region37
    $region36: #{tpu_custom_call.1} parent=1 // pred_region
      _
    $region37: #{tpu_custom_call.1} parent=1 // pred_fallthru
      _
    // Predicated region
    $region38: #{tpu_custom_call.1} parent=1 // pred_check
      _
    $region39: #{tpu_custom_call.1} parent=1 // pred_check_branch
      %40 = sbr.rel (0) target = $region41
    $region40: #{tpu_custom_call.1} parent=1 // pred_region
      _
    $region41: #{tpu_custom_call.1} parent=1 // pred_fallthru
      _
    // Predicated region
    $region42: #{tpu_custom_call.1} parent=1 // pred_check
      _
    $region43: #{tpu_custom_call.1} parent=1 // pred_check_branch
      %42 = sbr.rel (0) target = $region45
    $region44: #{tpu_custom_call.1} parent=1 // pred_region
      _
    $region45: #{tpu_custom_call.1} parent=1 // pred_fallthru
      _
    // Predicated region
    $region46: #{tpu_custom_call.1} parent=1 // pred_check
      _
    $region47: #{tpu_custom_call.1} parent=1 // pred_check_branch
      %44 = sbr.rel (0) target = $region49
    $region48: #{tpu_custom_call.1} parent=1 // pred_region
      _
    $region49: #{tpu_custom_call.1} parent=1 // pred_fallthru
      _
    // Predicated region
    $region50: #{tpu_custom_call.1} parent=1 // pred_check
      _
    $region51: #{tpu_custom_call.1} parent=1 // pred_check_branch
      %46 = sbr.rel (0) target = $region53
    $region52: #{tpu_custom_call.1} parent=1 // pred_region
      _
    $region53: #{tpu_custom_call.1} parent=1 // pred_fallthru
      _
    // Predicated region
    $region54: #{tpu_custom_call.1} parent=1 // pred_check
      _
    $region55: #{tpu_custom_call.1} parent=1 // pred_check_branch
      %48 = sbr.rel (0) target = $region57
    $region56: #{tpu_custom_call.1} parent=1 // pred_region
      _
    $region57: #{tpu_custom_call.1} parent=1 // pred_fallthru
      _
    // Predicated region
    $region58: #{tpu_custom_call.1} parent=1 // pred_check
      _
    $region59: #{tpu_custom_call.1} parent=1 // pred_check_branch
      %50 = sbr.rel (0) target = $region61
    $region60: #{tpu_custom_call.1} parent=1 // pred_region
      _
    $region61: #{tpu_custom_call.1} parent=1 // pred_fallthru
      _
    %v51 = vld [vmem:[%s0] sm:$0xff]
    %v52 = vld [vmem:[%s0 + $0x8] sm:$0xff]
    %v53 = vld [vmem:[%s0 + $0x10] sm:$0xff]
    %v54 = vld [vmem:[%s0 + $0x18] sm:$0xff]
    %v55 = vld [vmem:[%s0 + $0x20] sm:$0xff]
    %v56 = vld [vmem:[%s0 + $0x28] sm:$0xff]
    %v57 = vld [vmem:[%s0 + $0x30] sm:$0xff]
    %v58 = vld [vmem:[%s0 + $0x38] sm:$0xff]
    %v59 = vld [vmem:[%s0 + $0x40] sm:$0xff]
    %v60 = vld [vmem:[%s0 + $0x48] sm:$0xff]
    %v61 = vld [vmem:[%s0 + $0x50] sm:$0xff]
    %v62 = vld [vmem:[%s0 + $0x58] sm:$0xff]
    %v63 = vld [vmem:[%s0 + $0x60] sm:$0xff]
    %v64 = vld [vmem:[%s0 + $0x68] sm:$0xff]
    %v65 = vld [vmem:[%s0 + $0x70] sm:$0xff]
    %v66 = vld [vmem:[%s0 + $0x78] sm:$0xff]
    %v67 = vld [vmem:[%s1] sm:$0x1]
    %69 = vset.pattern.permute.xlu0 0
    %70 = vperm.xlu0 %69, %v51
    %v71 = vpop.permute.xlu0 %70
    %74 = vset.pattern.permute.xlu0 0
    %75 = vperm.xlu0 %74, %v52
    %v76 = vpop.permute.xlu0 %75
    %79 = vset.pattern.permute.xlu0 0
    %80 = vperm.xlu0 %79, %v53
    %v81 = vpop.permute.xlu0 %80
    %84 = vset.pattern.permute.xlu0 0
    %85 = vperm.xlu0 %84, %v54
    %v86 = vpop.permute.xlu0 %85
    %89 = vset.pattern.permute.xlu0 0
    %90 = vperm.xlu0 %89, %v55
    %v91 = vpop.permute.xlu0 %90
    %94 = vset.pattern.permute.xlu0 0
    %95 = vperm.xlu0 %94, %v56
    %v96 = vpop.permute.xlu0 %95
    %99 = vset.pattern.permute.xlu0 0
    %100 = vperm.xlu0 %99, %v57
    %v101 = vpop.permute.xlu0 %100
    %104 = vset.pattern.permute.xlu0 0
    %105 = vperm.xlu0 %104, %v58
    %v106 = vpop.permute.xlu0 %105
    %109 = vset.pattern.permute.xlu0 0
    %110 = vperm.xlu0 %109, %v59
    %v111 = vpop.permute.xlu0 %110
    %114 = vset.pattern.permute.xlu0 0
    %115 = vperm.xlu0 %114, %v60
    %v116 = vpop.permute.xlu0 %115
    %119 = vset.pattern.permute.xlu0 0
    %120 = vperm.xlu0 %119, %v61
    %v121 = vpop.permute.xlu0 %120
    %124 = vset.pattern.permute.xlu0 0
    %125 = vperm.xlu0 %124, %v62
    %v126 = vpop.permute.xlu0 %125
    %129 = vset.pattern.permute.xlu0 0
    %130 = vperm.xlu0 %129, %v63
    %v131 = vpop.permute.xlu0 %130
    %134 = vset.pattern.permute.xlu0 0
    %135 = vperm.xlu0 %134, %v64
    %v136 = vpop.permute.xlu0 %135
    %139 = vset.pattern.permute.xlu0 0
    %140 = vperm.xlu0 %139, %v65
    %v141 = vpop.permute.xlu0 %140
    %144 = vset.pattern.permute.xlu0 0
    %145 = vperm.xlu0 %144, %v66
    %v146 = vpop.permute.xlu0 %145
    %v149 = vlaneseq
    %v150 = vshrl.u32 %v149, 7
    %v151 = vsub.s32 0, %v150
    %v152 = vrot.slane %v67, %v151
    %v154 = vmul.f32 %v71, %v152
    %v155 = vmul.f32 %v76, %v152
    %v156 = vmul.f32 %v81, %v152
    %v157 = vmul.f32 %v86, %v152
    %v158 = vmul.f32 %v91, %v152
    %v159 = vmul.f32 %v96, %v152
    %v160 = vmul.f32 %v101, %v152
    %v161 = vmul.f32 %v106, %v152
    %v162 = vmul.f32 %v111, %v152
    %v163 = vmul.f32 %v116, %v152
    %v164 = vmul.f32 %v121, %v152
    %v165 = vmul.f32 %v126, %v152
    %v166 = vmul.f32 %v131, %v152
    %v167 = vmul.f32 %v136, %v152
    %v168 = vmul.f32 %v141, %v152
    %v169 = vmul.f32 %v146, %v152
    %v170 = vld [vmem:[%s2] sm:$0x1]
    %v172 = vlaneseq
    %v173 = vshrl.u32 %v172, 7
    %v174 = vsub.s32 0, %v173
    %v175 = vrot.slane %v170, %v174
    %v177 = vadd.f32 %v154, %v175
    %v178 = vadd.f32 %v155, %v175
    %v179 = vadd.f32 %v156, %v175
    %v180 = vadd.f32 %v157, %v175
    %v181 = vadd.f32 %v158, %v175
    %v182 = vadd.f32 %v159, %v175
    %v183 = vadd.f32 %v160, %v175
    %v184 = vadd.f32 %v161, %v175
    %v185 = vadd.f32 %v162, %v175
    %v186 = vadd.f32 %v163, %v175
    %v187 = vadd.f32 %v164, %v175
    %v188 = vadd.f32 %v165, %v175
    %v189 = vadd.f32 %v166, %v175
    %v190 = vadd.f32 %v167, %v175
    %v191 = vadd.f32 %v168, %v175
    %v192 = vadd.f32 %v169, %v175
    %v193 = vand.u32 2147483647, %v177
    %vm194 = vcmp.le.f32.partialorder %v193, 0.7853982
    %vm195 = vcmp.lt.s32.totalorder %v177, 0
    %v196 = vand.u32 %v177, 2139095040
    %v197 = vshrl.u32 %v196, 23
    %v198 = vsub.s32 %v197, 127
    %v199 = vand.u32 2147483647, %v177
    %v200 = vand.u32 %v199, 8388607
    %v201 = vor.u32 %v200, 8388608
    %v202 = vsub.s32 0, %v201
    %v203 = vadd.s32 %v198, 1
    %vm204 = vcmp.gt.s32.totalorder %v203, 0
    %v205 = vsel %vm204, %v203, 0
    %v206 = vshrl.u32 %v205, 5
    %v207 = vand.u32 %v205, 31
    %v208 = vsub.s32 32, %v207
    %v209 = vshrl.u32 683565275, %v208
    %v210 = vshll.u32 683565275, %v207
    %v211 = vshrl.u32 2475754826, %v208
    %v212 = vor.u32 %v210, %v211
    %v213 = vshll.u32 2475754826, %v207
    %v214 = vshrl.u32 2131351028, %v208
    %v215 = vor.u32 %v213, %v214
    %v216 = vshll.u32 2131351028, %v207
    %v217 = vshrl.u32 2102212464, %v208
    %v218 = vor.u32 %v216, %v217
    %v219 = vshll.u32 2102212464, %v207
    %v220 = vshrl.u32 920167782, %v208
    %v221 = vor.u32 %v219, %v220
    %v222 = vshll.u32 920167782, %v207
    %v223 = vshrl.u32 1326507024, %v208
    %v224 = vor.u32 %v222, %v223
    %vm225 = vcmp.lt.s32.totalorder %v206, 1
    %vm226 = vcmp.lt.s32.totalorder %v206, 2
    %vm227 = vcmp.lt.s32.totalorder %v206, 3
    %vm228 = vcmp.lt.s32.totalorder %v206, 4
    %v229 = vsel %vm225, %v209, %v212
    %v230 = vsel %vm228, %v218, 2102212464
    %v231 = vsel %vm227, %v215, %v230
    %v232 = vsel %vm226, %v229, %v231
    %v233 = vsel %vm225, %v212, %v215
    %v234 = vsel %vm228, %v221, 920167782
    %v235 = vsel %vm227, %v218, %v234
    %v236 = vsel %vm226, %v233, %v235
    %v237 = vsel %vm225, %v215, %v218
    %v238 = vsel %vm228, %v224, 1326507024
    %v239 = vsel %vm227, %v221, %v238
    %v240 = vsel %vm226, %v237, %v239
    %v241 = vshll.u32 %v201, 8
    %v242 = vmul.u32.u64.compose %v241, %v240
    %v243 = vextract.low.u32 %v242
    %v244 = vextract.high.u32 %v242
    %v245 = vmul.u32.u64.compose %v241, %v236
    %v246 = vextract.low.u32 %v245
    %v247 = vextract.high.u32 %v245
    %v248 = vmul.u32 %v241, %v232
    %v249 = vadd.s32 %v244, %v246
    %vm250 = vc.u32 %v244, %v246
    %v251 = vadd.s32 %v247, 1
    %v252 = vsel %vm250, %v251, %v247
    %v253 = vadd.s32 %v248, %v252
    %v254 = vadd.s32 %v253, 536870912
    %v255 = vshrl.u32 %v254, 30
    %v256 = vshll.u32 %v255, 30
    %v257 = vsub.s32 %v253, %v256
    %vm258 = vcmp.lt.s32.totalorder %v257, 0
    %v259 = vsub.s32 0, %v257
    %v260 = vsel %vm258, %v259, %v257
    %v261 = vclz %v260
    %v262 = vsub.s32 %v261, 2
    %vm263 = vcmp.gt.s32.totalorder 0, %v262
    %v264 = vsel %vm263, 0, %v262
    %v265 = vsub.s32 32, %v264
    %v266 = vshll.u32 %v257, %v264
    %v267 = vshrl.u32 %v249, %v265
    %v268 = vor.u32 %v266, %v267
    %v269 = vsub.s32 4294967266, %v264
    %v270 = vadd.s32 %v269, 127
    %v271 = vshll.u32 %v270, 23
    %v272 = vor.u32 4788187, %v271
    %v273 = vand.u32 2147483647, %v272
    %v275 = vcvt.s32.f32 %v268
    %v276 = vmul.f32 %v275, %v273
    %v277 = vxor.u32 %v276, 2147483648
    %v278 = vsel %vm195, %v277, %v276
    %v279 = vsub.s32 4, %v255
    %v280 = vsel %vm195, %v279, %v255
    %v281 = vsel %vm194, %v177, %v278
    %v282 = vsel %vm194, 0, %v280
    %v283 = vcosq.f32.pop %v281
    %v284 = vsinq.f32.pop %v281
    %vm285 = vweird.f32 %v177
    %v286 = vand.u32 %v282, 3
    %vm287 = vcmp.lt.s32.totalorder %v286, 2
    %vm288 = vcmp.eq.s32.totalorder %v286, 0
    %v289 = vxor.u32 %v284, 2147483648
    %v290 = vsel %vm288, %v283, %v289
    %vm291 = vcmp.eq.s32.totalorder %v286, 2
    %v292 = vxor.u32 %v283, 2147483648
    %v293 = vsel %vm291, %v292, %v284
    %v294 = vsel %vm287, %v290, %v293
    %v295 = vsel %vm285, nan, %v294
    %v296 = vand.u32 2147483647, %v178
    %vm297 = vcmp.le.f32.partialorder %v296, 0.7853982
    %vm298 = vcmp.lt.s32.totalorder %v178, 0
    %v299 = vand.u32 %v178, 2139095040
    %v300 = vshrl.u32 %v299, 23
    %v301 = vsub.s32 %v300, 127
    %v302 = vand.u32 2147483647, %v178
    %v303 = vand.u32 %v302, 8388607
    %v304 = vor.u32 %v303, 8388608
    %v305 = vsub.s32 0, %v304
    %v306 = vadd.s32 %v301, 1
    %vm307 = vcmp.gt.s32.totalorder %v306, 0
    %v308 = vsel %vm307, %v306, 0
    %v309 = vshrl.u32 %v308, 5
    %v310 = vand.u32 %v308, 31
    %v311 = vsub.s32 32, %v310
    %v312 = vshrl.u32 683565275, %v311
    %v313 = vshll.u32 683565275, %v310
    %v314 = vshrl.u32 2475754826, %v311
    %v315 = vor.u32 %v313, %v314
    %v316 = vshll.u32 2475754826, %v310
    %v317 = vshrl.u32 2131351028, %v311
    %v318 = vor.u32 %v316, %v317
    %v319 = vshll.u32 2131351028, %v310
    %v320 = vshrl.u32 2102212464, %v311
    %v321 = vor.u32 %v319, %v320
    %v322 = vshll.u32 2102212464, %v310
    %v323 = vshrl.u32 920167782, %v311
    %v324 = vor.u32 %v322, %v323
    %v325 = vshll.u32 920167782, %v310
    %v326 = vshrl.u32 1326507024, %v311
    %v327 = vor.u32 %v325, %v326
    %vm328 = vcmp.lt.s32.totalorder %v309, 1
    %vm329 = vcmp.lt.s32.totalorder %v309, 2
    %vm330 = vcmp.lt.s32.totalorder %v309, 3
    %vm331 = vcmp.lt.s32.totalorder %v309, 4
    %v332 = vsel %vm328, %v312, %v315
    %v333 = vsel %vm331, %v321, 2102212464
    %v334 = vsel %vm330, %v318, %v333
    %v335 = vsel %vm329, %v332, %v334
    %v336 = vsel %vm328, %v315, %v318
    %v337 = vsel %vm331, %v324, 920167782
    %v338 = vsel %vm330, %v321, %v337
    %v339 = vsel %vm329, %v336, %v338
    %v340 = vsel %vm328, %v318, %v321
    %v341 = vsel %vm331, %v327, 1326507024
    %v342 = vsel %vm330, %v324, %v341
    %v343 = vsel %vm329, %v340, %v342
    %v344 = vshll.u32 %v304, 8
    %v345 = vmul.u32.u64.compose %v344, %v343
    %v346 = vextract.low.u32 %v345
    %v347 = vextract.high.u32 %v345
    %v348 = vmul.u32.u64.compose %v344, %v339
    %v349 = vextract.low.u32 %v348
    %v350 = vextract.high.u32 %v348
    %v351 = vmul.u32 %v344, %v335
    %v352 = vadd.s32 %v347, %v349
    %vm353 = vc.u32 %v347, %v349
    %v354 = vadd.s32 %v350, 1
    %v355 = vsel %vm353, %v354, %v350
    %v356 = vadd.s32 %v351, %v355
    %v357 = vadd.s32 %v356, 536870912
    %v358 = vshrl.u32 %v357, 30
    %v359 = vshll.u32 %v358, 30
    %v360 = vsub.s32 %v356, %v359
    %vm361 = vcmp.lt.s32.totalorder %v360, 0
    %v362 = vsub.s32 0, %v360
    %v363 = vsel %vm361, %v362, %v360
    %v364 = vclz %v363
    %v365 = vsub.s32 %v364, 2
    %vm366 = vcmp.gt.s32.totalorder 0, %v365
    %v367 = vsel %vm366, 0, %v365
    %v368 = vsub.s32 32, %v367
    %v369 = vshll.u32 %v360, %v367
    %v370 = vshrl.u32 %v352, %v368
    %v371 = vor.u32 %v369, %v370
    %v372 = vsub.s32 4294967266, %v367
    %v373 = vadd.s32 %v372, 127
    %v374 = vshll.u32 %v373, 23
    %v375 = vor.u32 4788187, %v374
    %v376 = vand.u32 2147483647, %v375
    %v378 = vcvt.s32.f32 %v371
    %v379 = vmul.f32 %v378, %v376
    %v380 = vxor.u32 %v379, 2147483648
    %v381 = vsel %vm298, %v380, %v379
    %v382 = vsub.s32 4, %v358
    %v383 = vsel %vm298, %v382, %v358
    %v384 = vsel %vm297, %v178, %v381
    %v385 = vsel %vm297, 0, %v383
    %v386 = vcosq.f32.pop %v384
    %v387 = vsinq.f32.pop %v384
    %vm388 = vweird.f32 %v178
    %v389 = vand.u32 %v385, 3
    %vm390 = vcmp.lt.s32.totalorder %v389, 2
    %vm391 = vcmp.eq.s32.totalorder %v389, 0
    %v392 = vxor.u32 %v387, 2147483648
    %v393 = vsel %vm391, %v386, %v392
    %vm394 = vcmp.eq.s32.totalorder %v389, 2
    %v395 = vxor.u32 %v386, 2147483648
    %v396 = vsel %vm394, %v395, %v387
    %v397 = vsel %vm390, %v393, %v396
    %v398 = vsel %vm388, nan, %v397
    %v399 = vand.u32 2147483647, %v179
    %vm400 = vcmp.le.f32.partialorder %v399, 0.7853982
    %vm401 = vcmp.lt.s32.totalorder %v179, 0
    %v402 = vand.u32 %v179, 2139095040
    %v403 = vshrl.u32 %v402, 23
    %v404 = vsub.s32 %v403, 127
    %v405 = vand.u32 2147483647, %v179
    %v406 = vand.u32 %v405, 8388607
    %v407 = vor.u32 %v406, 8388608
    %v408 = vsub.s32 0, %v407
    %v409 = vadd.s32 %v404, 1
    %vm410 = vcmp.gt.s32.totalorder %v409, 0
    %v411 = vsel %vm410, %v409, 0
    %v412 = vshrl.u32 %v411, 5
    %v413 = vand.u32 %v411, 31
    %v414 = vsub.s32 32, %v413
    %v415 = vshrl.u32 683565275, %v414
    %v416 = vshll.u32 683565275, %v413
    %v417 = vshrl.u32 2475754826, %v414
    %v418 = vor.u32 %v416, %v417
    %v419 = vshll.u32 2475754826, %v413
    %v420 = vshrl.u32 2131351028, %v414
    %v421 = vor.u32 %v419, %v420
    %v422 = vshll.u32 2131351028, %v413
    %v423 = vshrl.u32 2102212464, %v414
    %v424 = vor.u32 %v422, %v423
    %v425 = vshll.u32 2102212464, %v413
    %v426 = vshrl.u32 920167782, %v414
    %v427 = vor.u32 %v425, %v426
    %v428 = vshll.u32 920167782, %v413
    %v429 = vshrl.u32 1326507024, %v414
    %v430 = vor.u32 %v428, %v429
    %vm431 = vcmp.lt.s32.totalorder %v412, 1
    %vm432 = vcmp.lt.s32.totalorder %v412, 2
    %vm433 = vcmp.lt.s32.totalorder %v412, 3
    %vm434 = vcmp.lt.s32.totalorder %v412, 4
    %v435 = vsel %vm431, %v415, %v418
    %v436 = vsel %vm434, %v424, 2102212464
    %v437 = vsel %vm433, %v421, %v436
    %v438 = vsel %vm432, %v435, %v437
    %v439 = vsel %vm431, %v418, %v421
    %v440 = vsel %vm434, %v427, 920167782
    %v441 = vsel %vm433, %v424, %v440
    %v442 = vsel %vm432, %v439, %v441
    %v443 = vsel %vm431, %v421, %v424
    %v444 = vsel %vm434, %v430, 1326507024
    %v445 = vsel %vm433, %v427, %v444
    %v446 = vsel %vm432, %v443, %v445
    %v447 = vshll.u32 %v407, 8
    %v448 = vmul.u32.u64.compose %v447, %v446
    %v449 = vextract.low.u32 %v448
    %v450 = vextract.high.u32 %v448
    %v451 = vmul.u32.u64.compose %v447, %v442
    %v452 = vextract.low.u32 %v451
    %v453 = vextract.high.u32 %v451
    %v454 = vmul.u32 %v447, %v438
    %v455 = vadd.s32 %v450, %v452
    %vm456 = vc.u32 %v450, %v452
    %v457 = vadd.s32 %v453, 1
    %v458 = vsel %vm456, %v457, %v453
    %v459 = vadd.s32 %v454, %v458
    %v460 = vadd.s32 %v459, 536870912
    %v461 = vshrl.u32 %v460, 30
    %v462 = vshll.u32 %v461, 30
    %v463 = vsub.s32 %v459, %v462
    %vm464 = vcmp.lt.s32.totalorder %v463, 0
    %v465 = vsub.s32 0, %v463
    %v466 = vsel %vm464, %v465, %v463
    %v467 = vclz %v466
    %v468 = vsub.s32 %v467, 2
    %vm469 = vcmp.gt.s32.totalorder 0, %v468
    %v470 = vsel %vm469, 0, %v468
    %v471 = vsub.s32 32, %v470
    %v472 = vshll.u32 %v463, %v470
    %v473 = vshrl.u32 %v455, %v471
    %v474 = vor.u32 %v472, %v473
    %v475 = vsub.s32 4294967266, %v470
    %v476 = vadd.s32 %v475, 127
    %v477 = vshll.u32 %v476, 23
    %v478 = vor.u32 4788187, %v477
    %v479 = vand.u32 2147483647, %v478
    %v481 = vcvt.s32.f32 %v474
    %v482 = vmul.f32 %v481, %v479
    %v483 = vxor.u32 %v482, 2147483648
    %v484 = vsel %vm401, %v483, %v482
    %v485 = vsub.s32 4, %v461
    %v486 = vsel %vm401, %v485, %v461
    %v487 = vsel %vm400, %v179, %v484
    %v488 = vsel %vm400, 0, %v486
    %v489 = vcosq.f32.pop %v487
    %v490 = vsinq.f32.pop %v487
    %vm491 = vweird.f32 %v179
    %v492 = vand.u32 %v488, 3
    %vm493 = vcmp.lt.s32.totalorder %v492, 2
    %vm494 = vcmp.eq.s32.totalorder %v492, 0
    %v495 = vxor.u32 %v490, 2147483648
    %v496 = vsel %vm494, %v489, %v495
    %vm497 = vcmp.eq.s32.totalorder %v492, 2
    %v498 = vxor.u32 %v489, 2147483648
    %v499 = vsel %vm497, %v498, %v490
    %v500 = vsel %vm493, %v496, %v499
    %v501 = vsel %vm491, nan, %v500
    %v502 = vand.u32 2147483647, %v180
    %vm503 = vcmp.le.f32.partialorder %v502, 0.7853982
    %vm504 = vcmp.lt.s32.totalorder %v180, 0
    %v505 = vand.u32 %v180, 2139095040
    %v506 = vshrl.u32 %v505, 23
    %v507 = vsub.s32 %v506, 127
    %v508 = vand.u32 2147483647, %v180
    %v509 = vand.u32 %v508, 8388607
    %v510 = vor.u32 %v509, 8388608
    %v511 = vsub.s32 0, %v510
    %v512 = vadd.s32 %v507, 1
    %vm513 = vcmp.gt.s32.totalorder %v512, 0
    %v514 = vsel %vm513, %v512, 0
    %v515 = vshrl.u32 %v514, 5
    %v516 = vand.u32 %v514, 31
    %v517 = vsub.s32 32, %v516
    %v518 = vshrl.u32 683565275, %v517
    %v519 = vshll.u32 683565275, %v516
    %v520 = vshrl.u32 2475754826, %v517
    %v521 = vor.u32 %v519, %v520
    %v522 = vshll.u32 2475754826, %v516
    %v523 = vshrl.u32 2131351028, %v517
    %v524 = vor.u32 %v522, %v523
    %v525 = vshll.u32 2131351028, %v516
    %v526 = vshrl.u32 2102212464, %v517
    %v527 = vor.u32 %v525, %v526
    %v528 = vshll.u32 2102212464, %v516
    %v529 = vshrl.u32 920167782, %v517
    %v530 = vor.u32 %v528, %v529
    %v531 = vshll.u32 920167782, %v516
    %v532 = vshrl.u32 1326507024, %v517
    %v533 = vor.u32 %v531, %v532
    %vm534 = vcmp.lt.s32.totalorder %v515, 1
    %vm535 = vcmp.lt.s32.totalorder %v515, 2
    %vm536 = vcmp.lt.s32.totalorder %v515, 3
    %vm537 = vcmp.lt.s32.totalorder %v515, 4
    %v538 = vsel %vm534, %v518, %v521
    %v539 = vsel %vm537, %v527, 2102212464
    %v540 = vsel %vm536, %v524, %v539
    %v541 = vsel %vm535, %v538, %v540
    %v542 = vsel %vm534, %v521, %v524
    %v543 = vsel %vm537, %v530, 920167782
    %v544 = vsel %vm536, %v527, %v543
    %v545 = vsel %vm535, %v542, %v544
    %v546 = vsel %vm534, %v524, %v527
    %v547 = vsel %vm537, %v533, 1326507024
    %v548 = vsel %vm536, %v530, %v547
    %v549 = vsel %vm535, %v546, %v548
    %v550 = vshll.u32 %v510, 8
    %v551 = vmul.u32.u64.compose %v550, %v549
    %v552 = vextract.low.u32 %v551
    %v553 = vextract.high.u32 %v551
    %v554 = vmul.u32.u64.compose %v550, %v545
    %v555 = vextract.low.u32 %v554
    %v556 = vextract.high.u32 %v554
    %v557 = vmul.u32 %v550, %v541
    %v558 = vadd.s32 %v553, %v555
    %vm559 = vc.u32 %v553, %v555
    %v560 = vadd.s32 %v556, 1
    %v561 = vsel %vm559, %v560, %v556
    %v562 = vadd.s32 %v557, %v561
    %v563 = vadd.s32 %v562, 536870912
    %v564 = vshrl.u32 %v563, 30
    %v565 = vshll.u32 %v564, 30
    %v566 = vsub.s32 %v562, %v565
    %vm567 = vcmp.lt.s32.totalorder %v566, 0
    %v568 = vsub.s32 0, %v566
    %v569 = vsel %vm567, %v568, %v566
    %v570 = vclz %v569
    %v571 = vsub.s32 %v570, 2
    %vm572 = vcmp.gt.s32.totalorder 0, %v571
    %v573 = vsel %vm572, 0, %v571
    %v574 = vsub.s32 32, %v573
    %v575 = vshll.u32 %v566, %v573
    %v576 = vshrl.u32 %v558, %v574
    %v577 = vor.u32 %v575, %v576
    %v578 = vsub.s32 4294967266, %v573
    %v579 = vadd.s32 %v578, 127
    %v580 = vshll.u32 %v579, 23
    %v581 = vor.u32 4788187, %v580
    %v582 = vand.u32 2147483647, %v581
    %v584 = vcvt.s32.f32 %v577
    %v585 = vmul.f32 %v584, %v582
    %v586 = vxor.u32 %v585, 2147483648
    %v587 = vsel %vm504, %v586, %v585
    %v588 = vsub.s32 4, %v564
    %v589 = vsel %vm504, %v588, %v564
    %v590 = vsel %vm503, %v180, %v587
    %v591 = vsel %vm503, 0, %v589
    %v592 = vcosq.f32.pop %v590
    %v593 = vsinq.f32.pop %v590
    %vm594 = vweird.f32 %v180
    %v595 = vand.u32 %v591, 3
    %vm596 = vcmp.lt.s32.totalorder %v595, 2
    %vm597 = vcmp.eq.s32.totalorder %v595, 0
    %v598 = vxor.u32 %v593, 2147483648
    %v599 = vsel %vm597, %v592, %v598
    %vm600 = vcmp.eq.s32.totalorder %v595, 2
    %v601 = vxor.u32 %v592, 2147483648
    %v602 = vsel %vm600, %v601, %v593
    %v603 = vsel %vm596, %v599, %v602
    %v604 = vsel %vm594, nan, %v603
    %v605 = vand.u32 2147483647, %v181
    %vm606 = vcmp.le.f32.partialorder %v605, 0.7853982
    %vm607 = vcmp.lt.s32.totalorder %v181, 0
    %v608 = vand.u32 %v181, 2139095040
    %v609 = vshrl.u32 %v608, 23
    %v610 = vsub.s32 %v609, 127
    %v611 = vand.u32 2147483647, %v181
    %v612 = vand.u32 %v611, 8388607
    %v613 = vor.u32 %v612, 8388608
    %v614 = vsub.s32 0, %v613
    %v615 = vadd.s32 %v610, 1
    %vm616 = vcmp.gt.s32.totalorder %v615, 0
    %v617 = vsel %vm616, %v615, 0
    %v618 = vshrl.u32 %v617, 5
    %v619 = vand.u32 %v617, 31
    %v620 = vsub.s32 32, %v619
    %v621 = vshrl.u32 683565275, %v620
    %v622 = vshll.u32 683565275, %v619
    %v623 = vshrl.u32 2475754826, %v620
    %v624 = vor.u32 %v622, %v623
    %v625 = vshll.u32 2475754826, %v619
    %v626 = vshrl.u32 2131351028, %v620
    %v627 = vor.u32 %v625, %v626
    %v628 = vshll.u32 2131351028, %v619
    %v629 = vshrl.u32 2102212464, %v620
    %v630 = vor.u32 %v628, %v629
    %v631 = vshll.u32 2102212464, %v619
    %v632 = vshrl.u32 920167782, %v620
    %v633 = vor.u32 %v631, %v632
    %v634 = vshll.u32 920167782, %v619
    %v635 = vshrl.u32 1326507024, %v620
    %v636 = vor.u32 %v634, %v635
    %vm637 = vcmp.lt.s32.totalorder %v618, 1
    %vm638 = vcmp.lt.s32.totalorder %v618, 2
    %vm639 = vcmp.lt.s32.totalorder %v618, 3
    %vm640 = vcmp.lt.s32.totalorder %v618, 4
    %v641 = vsel %vm637, %v621, %v624
    %v642 = vsel %vm640, %v630, 2102212464
    %v643 = vsel %vm639, %v627, %v642
    %v644 = vsel %vm638, %v641, %v643
    %v645 = vsel %vm637, %v624, %v627
    %v646 = vsel %vm640, %v633, 920167782
    %v647 = vsel %vm639, %v630, %v646
    %v648 = vsel %vm638, %v645, %v647
    %v649 = vsel %vm637, %v627, %v630
    %v650 = vsel %vm640, %v636, 1326507024
    %v651 = vsel %vm639, %v633, %v650
    %v652 = vsel %vm638, %v649, %v651
    %v653 = vshll.u32 %v613, 8
    %v654 = vmul.u32.u64.compose %v653, %v652
    %v655 = vextract.low.u32 %v654
    %v656 = vextract.high.u32 %v654
    %v657 = vmul.u32.u64.compose %v653, %v648
    %v658 = vextract.low.u32 %v657
    %v659 = vextract.high.u32 %v657
    %v660 = vmul.u32 %v653, %v644
    %v661 = vadd.s32 %v656, %v658
    %vm662 = vc.u32 %v656, %v658
    %v663 = vadd.s32 %v659, 1
    %v664 = vsel %vm662, %v663, %v659
    %v665 = vadd.s32 %v660, %v664
    %v666 = vadd.s32 %v665, 536870912
    %v667 = vshrl.u32 %v666, 30
    %v668 = vshll.u32 %v667, 30
    %v669 = vsub.s32 %v665, %v668
    %vm670 = vcmp.lt.s32.totalorder %v669, 0
    %v671 = vsub.s32 0, %v669
    %v672 = vsel %vm670, %v671, %v669
    %v673 = vclz %v672
    %v674 = vsub.s32 %v673, 2
    %vm675 = vcmp.gt.s32.totalorder 0, %v674
    %v676 = vsel %vm675, 0, %v674
    %v677 = vsub.s32 32, %v676
    %v678 = vshll.u32 %v669, %v676
    %v679 = vshrl.u32 %v661, %v677
    %v680 = vor.u32 %v678, %v679
    %v681 = vsub.s32 4294967266, %v676
    %v682 = vadd.s32 %v681, 127
    %v683 = vshll.u32 %v682, 23
    %v684 = vor.u32 4788187, %v683
    %v685 = vand.u32 2147483647, %v684
    %v687 = vcvt.s32.f32 %v680
    %v688 = vmul.f32 %v687, %v685
    %v689 = vxor.u32 %v688, 2147483648
    %v690 = vsel %vm607, %v689, %v688
    %v691 = vsub.s32 4, %v667
    %v692 = vsel %vm607, %v691, %v667
    %v693 = vsel %vm606, %v181, %v690
    %v694 = vsel %vm606, 0, %v692
    %v695 = vcosq.f32.pop %v693
    %v696 = vsinq.f32.pop %v693
    %vm697 = vweird.f32 %v181
    %v698 = vand.u32 %v694, 3
    %vm699 = vcmp.lt.s32.totalorder %v698, 2
    %vm700 = vcmp.eq.s32.totalorder %v698, 0
    %v701 = vxor.u32 %v696, 2147483648
    %v702 = vsel %vm700, %v695, %v701
    %vm703 = vcmp.eq.s32.totalorder %v698, 2
    %v704 = vxor.u32 %v695, 2147483648
    %v705 = vsel %vm703, %v704, %v696
    %v706 = vsel %vm699, %v702, %v705
    %v707 = vsel %vm697, nan, %v706
    %v708 = vand.u32 2147483647, %v182
    %vm709 = vcmp.le.f32.partialorder %v708, 0.7853982
    %vm710 = vcmp.lt.s32.totalorder %v182, 0
    %v711 = vand.u32 %v182, 2139095040
    %v712 = vshrl.u32 %v711, 23
    %v713 = vsub.s32 %v712, 127
    %v714 = vand.u32 2147483647, %v182
    %v715 = vand.u32 %v714, 8388607
    %v716 = vor.u32 %v715, 8388608
    %v717 = vsub.s32 0, %v716
    %v718 = vadd.s32 %v713, 1
    %vm719 = vcmp.gt.s32.totalorder %v718, 0
    %v720 = vsel %vm719, %v718, 0
    %v721 = vshrl.u32 %v720, 5
    %v722 = vand.u32 %v720, 31
    %v723 = vsub.s32 32, %v722
    %v724 = vshrl.u32 683565275, %v723
    %v725 = vshll.u32 683565275, %v722
    %v726 = vshrl.u32 2475754826, %v723
    %v727 = vor.u32 %v725, %v726
    %v728 = vshll.u32 2475754826, %v722
    %v729 = vshrl.u32 2131351028, %v723
    %v730 = vor.u32 %v728, %v729
    %v731 = vshll.u32 2131351028, %v722
    %v732 = vshrl.u32 2102212464, %v723
    %v733 = vor.u32 %v731, %v732
    %v734 = vshll.u32 2102212464, %v722
    %v735 = vshrl.u32 920167782, %v723
    %v736 = vor.u32 %v734, %v735
    %v737 = vshll.u32 920167782, %v722
    %v738 = vshrl.u32 1326507024, %v723
    %v739 = vor.u32 %v737, %v738
    %vm740 = vcmp.lt.s32.totalorder %v721, 1
    %vm741 = vcmp.lt.s32.totalorder %v721, 2
    %vm742 = vcmp.lt.s32.totalorder %v721, 3
    %vm743 = vcmp.lt.s32.totalorder %v721, 4
    %v744 = vsel %vm740, %v724, %v727
    %v745 = vsel %vm743, %v733, 2102212464
    %v746 = vsel %vm742, %v730, %v745
    %v747 = vsel %vm741, %v744, %v746
    %v748 = vsel %vm740, %v727, %v730
    %v749 = vsel %vm743, %v736, 920167782
    %v750 = vsel %vm742, %v733, %v749
    %v751 = vsel %vm741, %v748, %v750
    %v752 = vsel %vm740, %v730, %v733
    %v753 = vsel %vm743, %v739, 1326507024
    %v754 = vsel %vm742, %v736, %v753
    %v755 = vsel %vm741, %v752, %v754
    %v756 = vshll.u32 %v716, 8
    %v757 = vmul.u32.u64.compose %v756, %v755
    %v758 = vextract.low.u32 %v757
    %v759 = vextract.high.u32 %v757
    %v760 = vmul.u32.u64.compose %v756, %v751
    %v761 = vextract.low.u32 %v760
    %v762 = vextract.high.u32 %v760
    %v763 = vmul.u32 %v756, %v747
    %v764 = vadd.s32 %v759, %v761
    %vm765 = vc.u32 %v759, %v761
    %v766 = vadd.s32 %v762, 1
    %v767 = vsel %vm765, %v766, %v762
    %v768 = vadd.s32 %v763, %v767
    %v769 = vadd.s32 %v768, 536870912
    %v770 = vshrl.u32 %v769, 30
    %v771 = vshll.u32 %v770, 30
    %v772 = vsub.s32 %v768, %v771
    %vm773 = vcmp.lt.s32.totalorder %v772, 0
    %v774 = vsub.s32 0, %v772
    %v775 = vsel %vm773, %v774, %v772
    %v776 = vclz %v775
    %v777 = vsub.s32 %v776, 2
    %vm778 = vcmp.gt.s32.totalorder 0, %v777
    %v779 = vsel %vm778, 0, %v777
    %v780 = vsub.s32 32, %v779
    %v781 = vshll.u32 %v772, %v779
    %v782 = vshrl.u32 %v764, %v780
    %v783 = vor.u32 %v781, %v782
    %v784 = vsub.s32 4294967266, %v779
    %v785 = vadd.s32 %v784, 127
    %v786 = vshll.u32 %v785, 23
    %v787 = vor.u32 4788187, %v786
    %v788 = vand.u32 2147483647, %v787
    %v790 = vcvt.s32.f32 %v783
    %v791 = vmul.f32 %v790, %v788
    %v792 = vxor.u32 %v791, 2147483648
    %v793 = vsel %vm710, %v792, %v791
    %v794 = vsub.s32 4, %v770
    %v795 = vsel %vm710, %v794, %v770
    %v796 = vsel %vm709, %v182, %v793
    %v797 = vsel %vm709, 0, %v795
    %v798 = vcosq.f32.pop %v796
    %v799 = vsinq.f32.pop %v796
    %vm800 = vweird.f32 %v182
    %v801 = vand.u32 %v797, 3
    %vm802 = vcmp.lt.s32.totalorder %v801, 2
    %vm803 = vcmp.eq.s32.totalorder %v801, 0
    %v804 = vxor.u32 %v799, 2147483648
    %v805 = vsel %vm803, %v798, %v804
    %vm806 = vcmp.eq.s32.totalorder %v801, 2
    %v807 = vxor.u32 %v798, 2147483648
    %v808 = vsel %vm806, %v807, %v799
    %v809 = vsel %vm802, %v805, %v808
    %v810 = vsel %vm800, nan, %v809
    %v811 = vand.u32 2147483647, %v183
    %vm812 = vcmp.le.f32.partialorder %v811, 0.7853982
    %vm813 = vcmp.lt.s32.totalorder %v183, 0
    %v814 = vand.u32 %v183, 2139095040
    %v815 = vshrl.u32 %v814, 23
    %v816 = vsub.s32 %v815, 127
    %v817 = vand.u32 2147483647, %v183
    %v818 = vand.u32 %v817, 8388607
    %v819 = vor.u32 %v818, 8388608
    %v820 = vsub.s32 0, %v819
    %v821 = vadd.s32 %v816, 1
    %vm822 = vcmp.gt.s32.totalorder %v821, 0
    %v823 = vsel %vm822, %v821, 0
    %v824 = vshrl.u32 %v823, 5
    %v825 = vand.u32 %v823, 31
    %v826 = vsub.s32 32, %v825
    %v827 = vshrl.u32 683565275, %v826
    %v828 = vshll.u32 683565275, %v825
    %v829 = vshrl.u32 2475754826, %v826
    %v830 = vor.u32 %v828, %v829
    %v831 = vshll.u32 2475754826, %v825
    %v832 = vshrl.u32 2131351028, %v826
    %v833 = vor.u32 %v831, %v832
    %v834 = vshll.u32 2131351028, %v825
    %v835 = vshrl.u32 2102212464, %v826
    %v836 = vor.u32 %v834, %v835
    %v837 = vshll.u32 2102212464, %v825
    %v838 = vshrl.u32 920167782, %v826
    %v839 = vor.u32 %v837, %v838
    %v840 = vshll.u32 920167782, %v825
    %v841 = vshrl.u32 1326507024, %v826
    %v842 = vor.u32 %v840, %v841
    %vm843 = vcmp.lt.s32.totalorder %v824, 1
    %vm844 = vcmp.lt.s32.totalorder %v824, 2
    %vm845 = vcmp.lt.s32.totalorder %v824, 3
    %vm846 = vcmp.lt.s32.totalorder %v824, 4
    %v847 = vsel %vm843, %v827, %v830
    %v848 = vsel %vm846, %v836, 2102212464
    %v849 = vsel %vm845, %v833, %v848
    %v850 = vsel %vm844, %v847, %v849
    %v851 = vsel %vm843, %v830, %v833
    %v852 = vsel %vm846, %v839, 920167782
    %v853 = vsel %vm845, %v836, %v852
    %v854 = vsel %vm844, %v851, %v853
    %v855 = vsel %vm843, %v833, %v836
    %v856 = vsel %vm846, %v842, 1326507024
    %v857 = vsel %vm845, %v839, %v856
    %v858 = vsel %vm844, %v855, %v857
    %v859 = vshll.u32 %v819, 8
    %v860 = vmul.u32.u64.compose %v859, %v858
    %v861 = vextract.low.u32 %v860
    %v862 = vextract.high.u32 %v860
    %v863 = vmul.u32.u64.compose %v859, %v854
    %v864 = vextract.low.u32 %v863
    %v865 = vextract.high.u32 %v863
    %v866 = vmul.u32 %v859, %v850
    %v867 = vadd.s32 %v862, %v864
    %vm868 = vc.u32 %v862, %v864
    %v869 = vadd.s32 %v865, 1
    %v870 = vsel %vm868, %v869, %v865
    %v871 = vadd.s32 %v866, %v870
    %v872 = vadd.s32 %v871, 536870912
    %v873 = vshrl.u32 %v872, 30
    %v874 = vshll.u32 %v873, 30
    %v875 = vsub.s32 %v871, %v874
    %vm876 = vcmp.lt.s32.totalorder %v875, 0
    %v877 = vsub.s32 0, %v875
    %v878 = vsel %vm876, %v877, %v875
    %v879 = vclz %v878
    %v880 = vsub.s32 %v879, 2
    %vm881 = vcmp.gt.s32.totalorder 0, %v880
    %v882 = vsel %vm881, 0, %v880
    %v883 = vsub.s32 32, %v882
    %v884 = vshll.u32 %v875, %v882
    %v885 = vshrl.u32 %v867, %v883
    %v886 = vor.u32 %v884, %v885
    %v887 = vsub.s32 4294967266, %v882
    %v888 = vadd.s32 %v887, 127
    %v889 = vshll.u32 %v888, 23
    %v890 = vor.u32 4788187, %v889
    %v891 = vand.u32 2147483647, %v890
    %v893 = vcvt.s32.f32 %v886
    %v894 = vmul.f32 %v893, %v891
    %v895 = vxor.u32 %v894, 2147483648
    %v896 = vsel %vm813, %v895, %v894
    %v897 = vsub.s32 4, %v873
    %v898 = vsel %vm813, %v897, %v873
    %v899 = vsel %vm812, %v183, %v896
    %v900 = vsel %vm812, 0, %v898
    %v901 = vcosq.f32.pop %v899
    %v902 = vsinq.f32.pop %v899
    %vm903 = vweird.f32 %v183
    %v904 = vand.u32 %v900, 3
    %vm905 = vcmp.lt.s32.totalorder %v904, 2
    %vm906 = vcmp.eq.s32.totalorder %v904, 0
    %v907 = vxor.u32 %v902, 2147483648
    %v908 = vsel %vm906, %v901, %v907
    %vm909 = vcmp.eq.s32.totalorder %v904, 2
    %v910 = vxor.u32 %v901, 2147483648
    %v911 = vsel %vm909, %v910, %v902
    %v912 = vsel %vm905, %v908, %v911
    %v913 = vsel %vm903, nan, %v912
    %v914 = vand.u32 2147483647, %v184
    %vm915 = vcmp.le.f32.partialorder %v914, 0.7853982
    %vm916 = vcmp.lt.s32.totalorder %v184, 0
    %v917 = vand.u32 %v184, 2139095040
    %v918 = vshrl.u32 %v917, 23
    %v919 = vsub.s32 %v918, 127
    %v920 = vand.u32 2147483647, %v184
    %v921 = vand.u32 %v920, 8388607
    %v922 = vor.u32 %v921, 8388608
    %v923 = vsub.s32 0, %v922
    %v924 = vadd.s32 %v919, 1
    %vm925 = vcmp.gt.s32.totalorder %v924, 0
    %v926 = vsel %vm925, %v924, 0
    %v927 = vshrl.u32 %v926, 5
    %v928 = vand.u32 %v926, 31
    %v929 = vsub.s32 32, %v928
    %v930 = vshrl.u32 683565275, %v929
    %v931 = vshll.u32 683565275, %v928
    %v932 = vshrl.u32 2475754826, %v929
    %v933 = vor.u32 %v931, %v932
    %v934 = vshll.u32 2475754826, %v928
    %v935 = vshrl.u32 2131351028, %v929
    %v936 = vor.u32 %v934, %v935
    %v937 = vshll.u32 2131351028, %v928
    %v938 = vshrl.u32 2102212464, %v929
    %v939 = vor.u32 %v937, %v938
    %v940 = vshll.u32 2102212464, %v928
    %v941 = vshrl.u32 920167782, %v929
    %v942 = vor.u32 %v940, %v941
    %v943 = vshll.u32 920167782, %v928
    %v944 = vshrl.u32 1326507024, %v929
    %v945 = vor.u32 %v943, %v944
    %vm946 = vcmp.lt.s32.totalorder %v927, 1
    %vm947 = vcmp.lt.s32.totalorder %v927, 2
    %vm948 = vcmp.lt.s32.totalorder %v927, 3
    %vm949 = vcmp.lt.s32.totalorder %v927, 4
    %v950 = vsel %vm946, %v930, %v933
    %v951 = vsel %vm949, %v939, 2102212464
    %v952 = vsel %vm948, %v936, %v951
    %v953 = vsel %vm947, %v950, %v952
    %v954 = vsel %vm946, %v933, %v936
    %v955 = vsel %vm949, %v942, 920167782
    %v956 = vsel %vm948, %v939, %v955
    %v957 = vsel %vm947, %v954, %v956
    %v958 = vsel %vm946, %v936, %v939
    %v959 = vsel %vm949, %v945, 1326507024
    %v960 = vsel %vm948, %v942, %v959
    %v961 = vsel %vm947, %v958, %v960
    %v962 = vshll.u32 %v922, 8
    %v963 = vmul.u32.u64.compose %v962, %v961
    %v964 = vextract.low.u32 %v963
    %v965 = vextract.high.u32 %v963
    %v966 = vmul.u32.u64.compose %v962, %v957
    %v967 = vextract.low.u32 %v966
    %v968 = vextract.high.u32 %v966
    %v969 = vmul.u32 %v962, %v953
    %v970 = vadd.s32 %v965, %v967
    %vm971 = vc.u32 %v965, %v967
    %v972 = vadd.s32 %v968, 1
    %v973 = vsel %vm971, %v972, %v968
    %v974 = vadd.s32 %v969, %v973
    %v975 = vadd.s32 %v974, 536870912
    %v976 = vshrl.u32 %v975, 30
    %v977 = vshll.u32 %v976, 30
    %v978 = vsub.s32 %v974, %v977
    %vm979 = vcmp.lt.s32.totalorder %v978, 0
    %v980 = vsub.s32 0, %v978
    %v981 = vsel %vm979, %v980, %v978
    %v982 = vclz %v981
    %v983 = vsub.s32 %v982, 2
    %vm984 = vcmp.gt.s32.totalorder 0, %v983
    %v985 = vsel %vm984, 0, %v983
    %v986 = vsub.s32 32, %v985
    %v987 = vshll.u32 %v978, %v985
    %v988 = vshrl.u32 %v970, %v986
    %v989 = vor.u32 %v987, %v988
    %v990 = vsub.s32 4294967266, %v985
    %v991 = vadd.s32 %v990, 127
    %v992 = vshll.u32 %v991, 23
    %v993 = vor.u32 4788187, %v992
    %v994 = vand.u32 2147483647, %v993
    %v996 = vcvt.s32.f32 %v989
    %v997 = vmul.f32 %v996, %v994
    %v998 = vxor.u32 %v997, 2147483648
    %v999 = vsel %vm916, %v998, %v997
    %v1000 = vsub.s32 4, %v976
    %v1001 = vsel %vm916, %v1000, %v976
    %v1002 = vsel %vm915, %v184, %v999
    %v1003 = vsel %vm915, 0, %v1001
    %v1004 = vcosq.f32.pop %v1002
    %v1005 = vsinq.f32.pop %v1002
    %vm1006 = vweird.f32 %v184
    %v1007 = vand.u32 %v1003, 3
    %vm1008 = vcmp.lt.s32.totalorder %v1007, 2
    %vm1009 = vcmp.eq.s32.totalorder %v1007, 0
    %v1010 = vxor.u32 %v1005, 2147483648
    %v1011 = vsel %vm1009, %v1004, %v1010
    %vm1012 = vcmp.eq.s32.totalorder %v1007, 2
    %v1013 = vxor.u32 %v1004, 2147483648
    %v1014 = vsel %vm1012, %v1013, %v1005
    %v1015 = vsel %vm1008, %v1011, %v1014
    %v1016 = vsel %vm1006, nan, %v1015
    %v1017 = vand.u32 2147483647, %v185
    %vm1018 = vcmp.le.f32.partialorder %v1017, 0.7853982
    %vm1019 = vcmp.lt.s32.totalorder %v185, 0
    %v1020 = vand.u32 %v185, 2139095040
    %v1021 = vshrl.u32 %v1020, 23
    %v1022 = vsub.s32 %v1021, 127
    %v1023 = vand.u32 2147483647, %v185
    %v1024 = vand.u32 %v1023, 8388607
    %v1025 = vor.u32 %v1024, 8388608
    %v1026 = vsub.s32 0, %v1025
    %v1027 = vadd.s32 %v1022, 1
    %vm1028 = vcmp.gt.s32.totalorder %v1027, 0
    %v1029 = vsel %vm1028, %v1027, 0
    %v1030 = vshrl.u32 %v1029, 5
    %v1031 = vand.u32 %v1029, 31
    %v1032 = vsub.s32 32, %v1031
    %v1033 = vshrl.u32 683565275, %v1032
    %v1034 = vshll.u32 683565275, %v1031
    %v1035 = vshrl.u32 2475754826, %v1032
    %v1036 = vor.u32 %v1034, %v1035
    %v1037 = vshll.u32 2475754826, %v1031
    %v1038 = vshrl.u32 2131351028, %v1032
    %v1039 = vor.u32 %v1037, %v1038
    %v1040 = vshll.u32 2131351028, %v1031
    %v1041 = vshrl.u32 2102212464, %v1032
    %v1042 = vor.u32 %v1040, %v1041
    %v1043 = vshll.u32 2102212464, %v1031
    %v1044 = vshrl.u32 920167782, %v1032
    %v1045 = vor.u32 %v1043, %v1044
    %v1046 = vshll.u32 920167782, %v1031
    %v1047 = vshrl.u32 1326507024, %v1032
    %v1048 = vor.u32 %v1046, %v1047
    %vm1049 = vcmp.lt.s32.totalorder %v1030, 1
    %vm1050 = vcmp.lt.s32.totalorder %v1030, 2
    %vm1051 = vcmp.lt.s32.totalorder %v1030, 3
    %vm1052 = vcmp.lt.s32.totalorder %v1030, 4
    %v1053 = vsel %vm1049, %v1033, %v1036
    %v1054 = vsel %vm1052, %v1042, 2102212464
    %v1055 = vsel %vm1051, %v1039, %v1054
    %v1056 = vsel %vm1050, %v1053, %v1055
    %v1057 = vsel %vm1049, %v1036, %v1039
    %v1058 = vsel %vm1052, %v1045, 920167782
    %v1059 = vsel %vm1051, %v1042, %v1058
    %v1060 = vsel %vm1050, %v1057, %v1059
    %v1061 = vsel %vm1049, %v1039, %v1042
    %v1062 = vsel %vm1052, %v1048, 1326507024
    %v1063 = vsel %vm1051, %v1045, %v1062
    %v1064 = vsel %vm1050, %v1061, %v1063
    %v1065 = vshll.u32 %v1025, 8
    %v1066 = vmul.u32.u64.compose %v1065, %v1064
    %v1067 = vextract.low.u32 %v1066
    %v1068 = vextract.high.u32 %v1066
    %v1069 = vmul.u32.u64.compose %v1065, %v1060
    %v1070 = vextract.low.u32 %v1069
    %v1071 = vextract.high.u32 %v1069
    %v1072 = vmul.u32 %v1065, %v1056
    %v1073 = vadd.s32 %v1068, %v1070
    %vm1074 = vc.u32 %v1068, %v1070
    %v1075 = vadd.s32 %v1071, 1
    %v1076 = vsel %vm1074, %v1075, %v1071
    %v1077 = vadd.s32 %v1072, %v1076
    %v1078 = vadd.s32 %v1077, 536870912
    %v1079 = vshrl.u32 %v1078, 30
    %v1080 = vshll.u32 %v1079, 30
    %v1081 = vsub.s32 %v1077, %v1080
    %vm1082 = vcmp.lt.s32.totalorder %v1081, 0
    %v1083 = vsub.s32 0, %v1081
    %v1084 = vsel %vm1082, %v1083, %v1081
    %v1085 = vclz %v1084
    %v1086 = vsub.s32 %v1085, 2
    %vm1087 = vcmp.gt.s32.totalorder 0, %v1086
    %v1088 = vsel %vm1087, 0, %v1086
    %v1089 = vsub.s32 32, %v1088
    %v1090 = vshll.u32 %v1081, %v1088
    %v1091 = vshrl.u32 %v1073, %v1089
    %v1092 = vor.u32 %v1090, %v1091
    %v1093 = vsub.s32 4294967266, %v1088
    %v1094 = vadd.s32 %v1093, 127
    %v1095 = vshll.u32 %v1094, 23
    %v1096 = vor.u32 4788187, %v1095
    %v1097 = vand.u32 2147483647, %v1096
    %v1099 = vcvt.s32.f32 %v1092
    %v1100 = vmul.f32 %v1099, %v1097
    %v1101 = vxor.u32 %v1100, 2147483648
    %v1102 = vsel %vm1019, %v1101, %v1100
    %v1103 = vsub.s32 4, %v1079
    %v1104 = vsel %vm1019, %v1103, %v1079
    %v1105 = vsel %vm1018, %v185, %v1102
    %v1106 = vsel %vm1018, 0, %v1104
    %v1107 = vcosq.f32.pop %v1105
    %v1108 = vsinq.f32.pop %v1105
    %vm1109 = vweird.f32 %v185
    %v1110 = vand.u32 %v1106, 3
    %vm1111 = vcmp.lt.s32.totalorder %v1110, 2
    %vm1112 = vcmp.eq.s32.totalorder %v1110, 0
    %v1113 = vxor.u32 %v1108, 2147483648
    %v1114 = vsel %vm1112, %v1107, %v1113
    %vm1115 = vcmp.eq.s32.totalorder %v1110, 2
    %v1116 = vxor.u32 %v1107, 2147483648
    %v1117 = vsel %vm1115, %v1116, %v1108
    %v1118 = vsel %vm1111, %v1114, %v1117
    %v1119 = vsel %vm1109, nan, %v1118
    %v1120 = vand.u32 2147483647, %v186
    %vm1121 = vcmp.le.f32.partialorder %v1120, 0.7853982
    %vm1122 = vcmp.lt.s32.totalorder %v186, 0
    %v1123 = vand.u32 %v186, 2139095040
    %v1124 = vshrl.u32 %v1123, 23
    %v1125 = vsub.s32 %v1124, 127
    %v1126 = vand.u32 2147483647, %v186
    %v1127 = vand.u32 %v1126, 8388607
    %v1128 = vor.u32 %v1127, 8388608
    %v1129 = vsub.s32 0, %v1128
    %v1130 = vadd.s32 %v1125, 1
    %vm1131 = vcmp.gt.s32.totalorder %v1130, 0
    %v1132 = vsel %vm1131, %v1130, 0
    %v1133 = vshrl.u32 %v1132, 5
    %v1134 = vand.u32 %v1132, 31
    %v1135 = vsub.s32 32, %v1134
    %v1136 = vshrl.u32 683565275, %v1135
    %v1137 = vshll.u32 683565275, %v1134
    %v1138 = vshrl.u32 2475754826, %v1135
    %v1139 = vor.u32 %v1137, %v1138
    %v1140 = vshll.u32 2475754826, %v1134
    %v1141 = vshrl.u32 2131351028, %v1135
    %v1142 = vor.u32 %v1140, %v1141
    %v1143 = vshll.u32 2131351028, %v1134
    %v1144 = vshrl.u32 2102212464, %v1135
    %v1145 = vor.u32 %v1143, %v1144
    %v1146 = vshll.u32 2102212464, %v1134
    %v1147 = vshrl.u32 920167782, %v1135
    %v1148 = vor.u32 %v1146, %v1147
    %v1149 = vshll.u32 920167782, %v1134
    %v1150 = vshrl.u32 1326507024, %v1135
    %v1151 = vor.u32 %v1149, %v1150
    %vm1152 = vcmp.lt.s32.totalorder %v1133, 1
    %vm1153 = vcmp.lt.s32.totalorder %v1133, 2
    %vm1154 = vcmp.lt.s32.totalorder %v1133, 3
    %vm1155 = vcmp.lt.s32.totalorder %v1133, 4
    %v1156 = vsel %vm1152, %v1136, %v1139
    %v1157 = vsel %vm1155, %v1145, 2102212464
    %v1158 = vsel %vm1154, %v1142, %v1157
    %v1159 = vsel %vm1153, %v1156, %v1158
    %v1160 = vsel %vm1152, %v1139, %v1142
    %v1161 = vsel %vm1155, %v1148, 920167782
    %v1162 = vsel %vm1154, %v1145, %v1161
    %v1163 = vsel %vm1153, %v1160, %v1162
    %v1164 = vsel %vm1152, %v1142, %v1145
    %v1165 = vsel %vm1155, %v1151, 1326507024
    %v1166 = vsel %vm1154, %v1148, %v1165
    %v1167 = vsel %vm1153, %v1164, %v1166
    %v1168 = vshll.u32 %v1128, 8
    %v1169 = vmul.u32.u64.compose %v1168, %v1167
    %v1170 = vextract.low.u32 %v1169
    %v1171 = vextract.high.u32 %v1169
    %v1172 = vmul.u32.u64.compose %v1168, %v1163
    %v1173 = vextract.low.u32 %v1172
    %v1174 = vextract.high.u32 %v1172
    %v1175 = vmul.u32 %v1168, %v1159
    %v1176 = vadd.s32 %v1171, %v1173
    %vm1177 = vc.u32 %v1171, %v1173
    %v1178 = vadd.s32 %v1174, 1
    %v1179 = vsel %vm1177, %v1178, %v1174
    %v1180 = vadd.s32 %v1175, %v1179
    %v1181 = vadd.s32 %v1180, 536870912
    %v1182 = vshrl.u32 %v1181, 30
    %v1183 = vshll.u32 %v1182, 30
    %v1184 = vsub.s32 %v1180, %v1183
    %vm1185 = vcmp.lt.s32.totalorder %v1184, 0
    %v1186 = vsub.s32 0, %v1184
    %v1187 = vsel %vm1185, %v1186, %v1184
    %v1188 = vclz %v1187
    %v1189 = vsub.s32 %v1188, 2
    %vm1190 = vcmp.gt.s32.totalorder 0, %v1189
    %v1191 = vsel %vm1190, 0, %v1189
    %v1192 = vsub.s32 32, %v1191
    %v1193 = vshll.u32 %v1184, %v1191
    %v1194 = vshrl.u32 %v1176, %v1192
    %v1195 = vor.u32 %v1193, %v1194
    %v1196 = vsub.s32 4294967266, %v1191
    %v1197 = vadd.s32 %v1196, 127
    %v1198 = vshll.u32 %v1197, 23
    %v1199 = vor.u32 4788187, %v1198
    %v1200 = vand.u32 2147483647, %v1199
    %v1202 = vcvt.s32.f32 %v1195
    %v1203 = vmul.f32 %v1202, %v1200
    %v1204 = vxor.u32 %v1203, 2147483648
    %v1205 = vsel %vm1122, %v1204, %v1203
    %v1206 = vsub.s32 4, %v1182
    %v1207 = vsel %vm1122, %v1206, %v1182
    %v1208 = vsel %vm1121, %v186, %v1205
    %v1209 = vsel %vm1121, 0, %v1207
    %v1210 = vcosq.f32.pop %v1208
    %v1211 = vsinq.f32.pop %v1208
    %vm1212 = vweird.f32 %v186
    %v1213 = vand.u32 %v1209, 3
    %vm1214 = vcmp.lt.s32.totalorder %v1213, 2
    %vm1215 = vcmp.eq.s32.totalorder %v1213, 0
    %v1216 = vxor.u32 %v1211, 2147483648
    %v1217 = vsel %vm1215, %v1210, %v1216
    %vm1218 = vcmp.eq.s32.totalorder %v1213, 2
    %v1219 = vxor.u32 %v1210, 2147483648
    %v1220 = vsel %vm1218, %v1219, %v1211
    %v1221 = vsel %vm1214, %v1217, %v1220
    %v1222 = vsel %vm1212, nan, %v1221
    %v1223 = vand.u32 2147483647, %v187
    %vm1224 = vcmp.le.f32.partialorder %v1223, 0.7853982
    %vm1225 = vcmp.lt.s32.totalorder %v187, 0
    %v1226 = vand.u32 %v187, 2139095040
    %v1227 = vshrl.u32 %v1226, 23
    %v1228 = vsub.s32 %v1227, 127
    %v1229 = vand.u32 2147483647, %v187
    %v1230 = vand.u32 %v1229, 8388607
    %v1231 = vor.u32 %v1230, 8388608
    %v1232 = vsub.s32 0, %v1231
    %v1233 = vadd.s32 %v1228, 1
    %vm1234 = vcmp.gt.s32.totalorder %v1233, 0
    %v1235 = vsel %vm1234, %v1233, 0
    %v1236 = vshrl.u32 %v1235, 5
    %v1237 = vand.u32 %v1235, 31
    %v1238 = vsub.s32 32, %v1237
    %v1239 = vshrl.u32 683565275, %v1238
    %v1240 = vshll.u32 683565275, %v1237
    %v1241 = vshrl.u32 2475754826, %v1238
    %v1242 = vor.u32 %v1240, %v1241
    %v1243 = vshll.u32 2475754826, %v1237
    %v1244 = vshrl.u32 2131351028, %v1238
    %v1245 = vor.u32 %v1243, %v1244
    %v1246 = vshll.u32 2131351028, %v1237
    %v1247 = vshrl.u32 2102212464, %v1238
    %v1248 = vor.u32 %v1246, %v1247
    %v1249 = vshll.u32 2102212464, %v1237
    %v1250 = vshrl.u32 920167782, %v1238
    %v1251 = vor.u32 %v1249, %v1250
    %v1252 = vshll.u32 920167782, %v1237
    %v1253 = vshrl.u32 1326507024, %v1238
    %v1254 = vor.u32 %v1252, %v1253
    %vm1255 = vcmp.lt.s32.totalorder %v1236, 1
    %vm1256 = vcmp.lt.s32.totalorder %v1236, 2
    %vm1257 = vcmp.lt.s32.totalorder %v1236, 3
    %vm1258 = vcmp.lt.s32.totalorder %v1236, 4
    %v1259 = vsel %vm1255, %v1239, %v1242
    %v1260 = vsel %vm1258, %v1248, 2102212464
    %v1261 = vsel %vm1257, %v1245, %v1260
    %v1262 = vsel %vm1256, %v1259, %v1261
    %v1263 = vsel %vm1255, %v1242, %v1245
    %v1264 = vsel %vm1258, %v1251, 920167782
    %v1265 = vsel %vm1257, %v1248, %v1264
    %v1266 = vsel %vm1256, %v1263, %v1265
    %v1267 = vsel %vm1255, %v1245, %v1248
    %v1268 = vsel %vm1258, %v1254, 1326507024
    %v1269 = vsel %vm1257, %v1251, %v1268
    %v1270 = vsel %vm1256, %v1267, %v1269
    %v1271 = vshll.u32 %v1231, 8
    %v1272 = vmul.u32.u64.compose %v1271, %v1270
    %v1273 = vextract.low.u32 %v1272
    %v1274 = vextract.high.u32 %v1272
    %v1275 = vmul.u32.u64.compose %v1271, %v1266
    %v1276 = vextract.low.u32 %v1275
    %v1277 = vextract.high.u32 %v1275
    %v1278 = vmul.u32 %v1271, %v1262
    %v1279 = vadd.s32 %v1274, %v1276
    %vm1280 = vc.u32 %v1274, %v1276
    %v1281 = vadd.s32 %v1277, 1
    %v1282 = vsel %vm1280, %v1281, %v1277
    %v1283 = vadd.s32 %v1278, %v1282
    %v1284 = vadd.s32 %v1283, 536870912
    %v1285 = vshrl.u32 %v1284, 30
    %v1286 = vshll.u32 %v1285, 30
    %v1287 = vsub.s32 %v1283, %v1286
    %vm1288 = vcmp.lt.s32.totalorder %v1287, 0
    %v1289 = vsub.s32 0, %v1287
    %v1290 = vsel %vm1288, %v1289, %v1287
    %v1291 = vclz %v1290
    %v1292 = vsub.s32 %v1291, 2
    %vm1293 = vcmp.gt.s32.totalorder 0, %v1292
    %v1294 = vsel %vm1293, 0, %v1292
    %v1295 = vsub.s32 32, %v1294
    %v1296 = vshll.u32 %v1287, %v1294
    %v1297 = vshrl.u32 %v1279, %v1295
    %v1298 = vor.u32 %v1296, %v1297
    %v1299 = vsub.s32 4294967266, %v1294
    %v1300 = vadd.s32 %v1299, 127
    %v1301 = vshll.u32 %v1300, 23
    %v1302 = vor.u32 4788187, %v1301
    %v1303 = vand.u32 2147483647, %v1302
    %v1305 = vcvt.s32.f32 %v1298
    %v1306 = vmul.f32 %v1305, %v1303
    %v1307 = vxor.u32 %v1306, 2147483648
    %v1308 = vsel %vm1225, %v1307, %v1306
    %v1309 = vsub.s32 4, %v1285
    %v1310 = vsel %vm1225, %v1309, %v1285
    %v1311 = vsel %vm1224, %v187, %v1308
    %v1312 = vsel %vm1224, 0, %v1310
    %v1313 = vcosq.f32.pop %v1311
    %v1314 = vsinq.f32.pop %v1311
    %vm1315 = vweird.f32 %v187
    %v1316 = vand.u32 %v1312, 3
    %vm1317 = vcmp.lt.s32.totalorder %v1316, 2
    %vm1318 = vcmp.eq.s32.totalorder %v1316, 0
    %v1319 = vxor.u32 %v1314, 2147483648
    %v1320 = vsel %vm1318, %v1313, %v1319
    %vm1321 = vcmp.eq.s32.totalorder %v1316, 2
    %v1322 = vxor.u32 %v1313, 2147483648
    %v1323 = vsel %vm1321, %v1322, %v1314
    %v1324 = vsel %vm1317, %v1320, %v1323
    %v1325 = vsel %vm1315, nan, %v1324
    %v1326 = vand.u32 2147483647, %v188
    %vm1327 = vcmp.le.f32.partialorder %v1326, 0.7853982
    %vm1328 = vcmp.lt.s32.totalorder %v188, 0
    %v1329 = vand.u32 %v188, 2139095040
    %v1330 = vshrl.u32 %v1329, 23
    %v1331 = vsub.s32 %v1330, 127
    %v1332 = vand.u32 2147483647, %v188
    %v1333 = vand.u32 %v1332, 8388607
    %v1334 = vor.u32 %v1333, 8388608
    %v1335 = vsub.s32 0, %v1334
    %v1336 = vadd.s32 %v1331, 1
    %vm1337 = vcmp.gt.s32.totalorder %v1336, 0
    %v1338 = vsel %vm1337, %v1336, 0
    %v1339 = vshrl.u32 %v1338, 5
    %v1340 = vand.u32 %v1338, 31
    %v1341 = vsub.s32 32, %v1340
    %v1342 = vshrl.u32 683565275, %v1341
    %v1343 = vshll.u32 683565275, %v1340
    %v1344 = vshrl.u32 2475754826, %v1341
    %v1345 = vor.u32 %v1343, %v1344
    %v1346 = vshll.u32 2475754826, %v1340
    %v1347 = vshrl.u32 2131351028, %v1341
    %v1348 = vor.u32 %v1346, %v1347
    %v1349 = vshll.u32 2131351028, %v1340
    %v1350 = vshrl.u32 2102212464, %v1341
    %v1351 = vor.u32 %v1349, %v1350
    %v1352 = vshll.u32 2102212464, %v1340
    %v1353 = vshrl.u32 920167782, %v1341
    %v1354 = vor.u32 %v1352, %v1353
    %v1355 = vshll.u32 920167782, %v1340
    %v1356 = vshrl.u32 1326507024, %v1341
    %v1357 = vor.u32 %v1355, %v1356
    %vm1358 = vcmp.lt.s32.totalorder %v1339, 1
    %vm1359 = vcmp.lt.s32.totalorder %v1339, 2
    %vm1360 = vcmp.lt.s32.totalorder %v1339, 3
    %vm1361 = vcmp.lt.s32.totalorder %v1339, 4
    %v1362 = vsel %vm1358, %v1342, %v1345
    %v1363 = vsel %vm1361, %v1351, 2102212464
    %v1364 = vsel %vm1360, %v1348, %v1363
    %v1365 = vsel %vm1359, %v1362, %v1364
    %v1366 = vsel %vm1358, %v1345, %v1348
    %v1367 = vsel %vm1361, %v1354, 920167782
    %v1368 = vsel %vm1360, %v1351, %v1367
    %v1369 = vsel %vm1359, %v1366, %v1368
    %v1370 = vsel %vm1358, %v1348, %v1351
    %v1371 = vsel %vm1361, %v1357, 1326507024
    %v1372 = vsel %vm1360, %v1354, %v1371
    %v1373 = vsel %vm1359, %v1370, %v1372
    %v1374 = vshll.u32 %v1334, 8
    %v1375 = vmul.u32.u64.compose %v1374, %v1373
    %v1376 = vextract.low.u32 %v1375
    %v1377 = vextract.high.u32 %v1375
    %v1378 = vmul.u32.u64.compose %v1374, %v1369
    %v1379 = vextract.low.u32 %v1378
    %v1380 = vextract.high.u32 %v1378
    %v1381 = vmul.u32 %v1374, %v1365
    %v1382 = vadd.s32 %v1377, %v1379
    %vm1383 = vc.u32 %v1377, %v1379
    %v1384 = vadd.s32 %v1380, 1
    %v1385 = vsel %vm1383, %v1384, %v1380
    %v1386 = vadd.s32 %v1381, %v1385
    %v1387 = vadd.s32 %v1386, 536870912
    %v1388 = vshrl.u32 %v1387, 30
    %v1389 = vshll.u32 %v1388, 30
    %v1390 = vsub.s32 %v1386, %v1389
    %vm1391 = vcmp.lt.s32.totalorder %v1390, 0
    %v1392 = vsub.s32 0, %v1390
    %v1393 = vsel %vm1391, %v1392, %v1390
    %v1394 = vclz %v1393
    %v1395 = vsub.s32 %v1394, 2
    %vm1396 = vcmp.gt.s32.totalorder 0, %v1395
    %v1397 = vsel %vm1396, 0, %v1395
    %v1398 = vsub.s32 32, %v1397
    %v1399 = vshll.u32 %v1390, %v1397
    %v1400 = vshrl.u32 %v1382, %v1398
    %v1401 = vor.u32 %v1399, %v1400
    %v1402 = vsub.s32 4294967266, %v1397
    %v1403 = vadd.s32 %v1402, 127
    %v1404 = vshll.u32 %v1403, 23
    %v1405 = vor.u32 4788187, %v1404
    %v1406 = vand.u32 2147483647, %v1405
    %v1408 = vcvt.s32.f32 %v1401
    %v1409 = vmul.f32 %v1408, %v1406
    %v1410 = vxor.u32 %v1409, 2147483648
    %v1411 = vsel %vm1328, %v1410, %v1409
    %v1412 = vsub.s32 4, %v1388
    %v1413 = vsel %vm1328, %v1412, %v1388
    %v1414 = vsel %vm1327, %v188, %v1411
    %v1415 = vsel %vm1327, 0, %v1413
    %v1416 = vcosq.f32.pop %v1414
    %v1417 = vsinq.f32.pop %v1414
    %vm1418 = vweird.f32 %v188
    %v1419 = vand.u32 %v1415, 3
    %vm1420 = vcmp.lt.s32.totalorder %v1419, 2
    %vm1421 = vcmp.eq.s32.totalorder %v1419, 0
    %v1422 = vxor.u32 %v1417, 2147483648
    %v1423 = vsel %vm1421, %v1416, %v1422
    %vm1424 = vcmp.eq.s32.totalorder %v1419, 2
    %v1425 = vxor.u32 %v1416, 2147483648
    %v1426 = vsel %vm1424, %v1425, %v1417
    %v1427 = vsel %vm1420, %v1423, %v1426
    %v1428 = vsel %vm1418, nan, %v1427
    %v1429 = vand.u32 2147483647, %v189
    %vm1430 = vcmp.le.f32.partialorder %v1429, 0.7853982
    %vm1431 = vcmp.lt.s32.totalorder %v189, 0
    %v1432 = vand.u32 %v189, 2139095040
    %v1433 = vshrl.u32 %v1432, 23
    %v1434 = vsub.s32 %v1433, 127
    %v1435 = vand.u32 2147483647, %v189
    %v1436 = vand.u32 %v1435, 8388607
    %v1437 = vor.u32 %v1436, 8388608
    %v1438 = vsub.s32 0, %v1437
    %v1439 = vadd.s32 %v1434, 1
    %vm1440 = vcmp.gt.s32.totalorder %v1439, 0
    %v1441 = vsel %vm1440, %v1439, 0
    %v1442 = vshrl.u32 %v1441, 5
    %v1443 = vand.u32 %v1441, 31
    %v1444 = vsub.s32 32, %v1443
    %v1445 = vshrl.u32 683565275, %v1444
    %v1446 = vshll.u32 683565275, %v1443
    %v1447 = vshrl.u32 2475754826, %v1444
    %v1448 = vor.u32 %v1446, %v1447
    %v1449 = vshll.u32 2475754826, %v1443
    %v1450 = vshrl.u32 2131351028, %v1444
    %v1451 = vor.u32 %v1449, %v1450
    %v1452 = vshll.u32 2131351028, %v1443
    %v1453 = vshrl.u32 2102212464, %v1444
    %v1454 = vor.u32 %v1452, %v1453
    %v1455 = vshll.u32 2102212464, %v1443
    %v1456 = vshrl.u32 920167782, %v1444
    %v1457 = vor.u32 %v1455, %v1456
    %v1458 = vshll.u32 920167782, %v1443
    %v1459 = vshrl.u32 1326507024, %v1444
    %v1460 = vor.u32 %v1458, %v1459
    %vm1461 = vcmp.lt.s32.totalorder %v1442, 1
    %vm1462 = vcmp.lt.s32.totalorder %v1442, 2
    %vm1463 = vcmp.lt.s32.totalorder %v1442, 3
    %vm1464 = vcmp.lt.s32.totalorder %v1442, 4
    %v1465 = vsel %vm1461, %v1445, %v1448
    %v1466 = vsel %vm1464, %v1454, 2102212464
    %v1467 = vsel %vm1463, %v1451, %v1466
    %v1468 = vsel %vm1462, %v1465, %v1467
    %v1469 = vsel %vm1461, %v1448, %v1451
    %v1470 = vsel %vm1464, %v1457, 920167782
    %v1471 = vsel %vm1463, %v1454, %v1470
    %v1472 = vsel %vm1462, %v1469, %v1471
    %v1473 = vsel %vm1461, %v1451, %v1454
    %v1474 = vsel %vm1464, %v1460, 1326507024
    %v1475 = vsel %vm1463, %v1457, %v1474
    %v1476 = vsel %vm1462, %v1473, %v1475
    %v1477 = vshll.u32 %v1437, 8
    %v1478 = vmul.u32.u64.compose %v1477, %v1476
    %v1479 = vextract.low.u32 %v1478
    %v1480 = vextract.high.u32 %v1478
    %v1481 = vmul.u32.u64.compose %v1477, %v1472
    %v1482 = vextract.low.u32 %v1481
    %v1483 = vextract.high.u32 %v1481
    %v1484 = vmul.u32 %v1477, %v1468
    %v1485 = vadd.s32 %v1480, %v1482
    %vm1486 = vc.u32 %v1480, %v1482
    %v1487 = vadd.s32 %v1483, 1
    %v1488 = vsel %vm1486, %v1487, %v1483
    %v1489 = vadd.s32 %v1484, %v1488
    %v1490 = vadd.s32 %v1489, 536870912
    %v1491 = vshrl.u32 %v1490, 30
    %v1492 = vshll.u32 %v1491, 30
    %v1493 = vsub.s32 %v1489, %v1492
    %vm1494 = vcmp.lt.s32.totalorder %v1493, 0
    %v1495 = vsub.s32 0, %v1493
    %v1496 = vsel %vm1494, %v1495, %v1493
    %v1497 = vclz %v1496
    %v1498 = vsub.s32 %v1497, 2
    %vm1499 = vcmp.gt.s32.totalorder 0, %v1498
    %v1500 = vsel %vm1499, 0, %v1498
    %v1501 = vsub.s32 32, %v1500
    %v1502 = vshll.u32 %v1493, %v1500
    %v1503 = vshrl.u32 %v1485, %v1501
    %v1504 = vor.u32 %v1502, %v1503
    %v1505 = vsub.s32 4294967266, %v1500
    %v1506 = vadd.s32 %v1505, 127
    %v1507 = vshll.u32 %v1506, 23
    %v1508 = vor.u32 4788187, %v1507
    %v1509 = vand.u32 2147483647, %v1508
    %v1511 = vcvt.s32.f32 %v1504
    %v1512 = vmul.f32 %v1511, %v1509
    %v1513 = vxor.u32 %v1512, 2147483648
    %v1514 = vsel %vm1431, %v1513, %v1512
    %v1515 = vsub.s32 4, %v1491
    %v1516 = vsel %vm1431, %v1515, %v1491
    %v1517 = vsel %vm1430, %v189, %v1514
    %v1518 = vsel %vm1430, 0, %v1516
    %v1519 = vcosq.f32.pop %v1517
    %v1520 = vsinq.f32.pop %v1517
    %vm1521 = vweird.f32 %v189
    %v1522 = vand.u32 %v1518, 3
    %vm1523 = vcmp.lt.s32.totalorder %v1522, 2
    %vm1524 = vcmp.eq.s32.totalorder %v1522, 0
    %v1525 = vxor.u32 %v1520, 2147483648
    %v1526 = vsel %vm1524, %v1519, %v1525
    %vm1527 = vcmp.eq.s32.totalorder %v1522, 2
    %v1528 = vxor.u32 %v1519, 2147483648
    %v1529 = vsel %vm1527, %v1528, %v1520
    %v1530 = vsel %vm1523, %v1526, %v1529
    %v1531 = vsel %vm1521, nan, %v1530
    %v1532 = vand.u32 2147483647, %v190
    %vm1533 = vcmp.le.f32.partialorder %v1532, 0.7853982
    %vm1534 = vcmp.lt.s32.totalorder %v190, 0
    %v1535 = vand.u32 %v190, 2139095040
    %v1536 = vshrl.u32 %v1535, 23
    %v1537 = vsub.s32 %v1536, 127
    %v1538 = vand.u32 2147483647, %v190
    %v1539 = vand.u32 %v1538, 8388607
    %v1540 = vor.u32 %v1539, 8388608
    %v1541 = vsub.s32 0, %v1540
    %v1542 = vadd.s32 %v1537, 1
    %vm1543 = vcmp.gt.s32.totalorder %v1542, 0
    %v1544 = vsel %vm1543, %v1542, 0
    %v1545 = vshrl.u32 %v1544, 5
    %v1546 = vand.u32 %v1544, 31
    %v1547 = vsub.s32 32, %v1546
    %v1548 = vshrl.u32 683565275, %v1547
    %v1549 = vshll.u32 683565275, %v1546
    %v1550 = vshrl.u32 2475754826, %v1547
    %v1551 = vor.u32 %v1549, %v1550
    %v1552 = vshll.u32 2475754826, %v1546
    %v1553 = vshrl.u32 2131351028, %v1547
    %v1554 = vor.u32 %v1552, %v1553
    %v1555 = vshll.u32 2131351028, %v1546
    %v1556 = vshrl.u32 2102212464, %v1547
    %v1557 = vor.u32 %v1555, %v1556
    %v1558 = vshll.u32 2102212464, %v1546
    %v1559 = vshrl.u32 920167782, %v1547
    %v1560 = vor.u32 %v1558, %v1559
    %v1561 = vshll.u32 920167782, %v1546
    %v1562 = vshrl.u32 1326507024, %v1547
    %v1563 = vor.u32 %v1561, %v1562
    %vm1564 = vcmp.lt.s32.totalorder %v1545, 1
    %vm1565 = vcmp.lt.s32.totalorder %v1545, 2
    %vm1566 = vcmp.lt.s32.totalorder %v1545, 3
    %vm1567 = vcmp.lt.s32.totalorder %v1545, 4
    %v1568 = vsel %vm1564, %v1548, %v1551
    %v1569 = vsel %vm1567, %v1557, 2102212464
    %v1570 = vsel %vm1566, %v1554, %v1569
    %v1571 = vsel %vm1565, %v1568, %v1570
    %v1572 = vsel %vm1564, %v1551, %v1554
    %v1573 = vsel %vm1567, %v1560, 920167782
    %v1574 = vsel %vm1566, %v1557, %v1573
    %v1575 = vsel %vm1565, %v1572, %v1574
    %v1576 = vsel %vm1564, %v1554, %v1557
    %v1577 = vsel %vm1567, %v1563, 1326507024
    %v1578 = vsel %vm1566, %v1560, %v1577
    %v1579 = vsel %vm1565, %v1576, %v1578
    %v1580 = vshll.u32 %v1540, 8
    %v1581 = vmul.u32.u64.compose %v1580, %v1579
    %v1582 = vextract.low.u32 %v1581
    %v1583 = vextract.high.u32 %v1581
    %v1584 = vmul.u32.u64.compose %v1580, %v1575
    %v1585 = vextract.low.u32 %v1584
    %v1586 = vextract.high.u32 %v1584
    %v1587 = vmul.u32 %v1580, %v1571
    %v1588 = vadd.s32 %v1583, %v1585
    %vm1589 = vc.u32 %v1583, %v1585
    %v1590 = vadd.s32 %v1586, 1
    %v1591 = vsel %vm1589, %v1590, %v1586
    %v1592 = vadd.s32 %v1587, %v1591
    %v1593 = vadd.s32 %v1592, 536870912
    %v1594 = vshrl.u32 %v1593, 30
    %v1595 = vshll.u32 %v1594, 30
    %v1596 = vsub.s32 %v1592, %v1595
    %vm1597 = vcmp.lt.s32.totalorder %v1596, 0
    %v1598 = vsub.s32 0, %v1596
    %v1599 = vsel %vm1597, %v1598, %v1596
    %v1600 = vclz %v1599
    %v1601 = vsub.s32 %v1600, 2
    %vm1602 = vcmp.gt.s32.totalorder 0, %v1601
    %v1603 = vsel %vm1602, 0, %v1601
    %v1604 = vsub.s32 32, %v1603
    %v1605 = vshll.u32 %v1596, %v1603
    %v1606 = vshrl.u32 %v1588, %v1604
    %v1607 = vor.u32 %v1605, %v1606
    %v1608 = vsub.s32 4294967266, %v1603
    %v1609 = vadd.s32 %v1608, 127
    %v1610 = vshll.u32 %v1609, 23
    %v1611 = vor.u32 4788187, %v1610
    %v1612 = vand.u32 2147483647, %v1611
    %v1614 = vcvt.s32.f32 %v1607
    %v1615 = vmul.f32 %v1614, %v1612
    %v1616 = vxor.u32 %v1615, 2147483648
    %v1617 = vsel %vm1534, %v1616, %v1615
    %v1618 = vsub.s32 4, %v1594
    %v1619 = vsel %vm1534, %v1618, %v1594
    %v1620 = vsel %vm1533, %v190, %v1617
    %v1621 = vsel %vm1533, 0, %v1619
    %v1622 = vcosq.f32.pop %v1620
    %v1623 = vsinq.f32.pop %v1620
    %vm1624 = vweird.f32 %v190
    %v1625 = vand.u32 %v1621, 3
    %vm1626 = vcmp.lt.s32.totalorder %v1625, 2
    %vm1627 = vcmp.eq.s32.totalorder %v1625, 0
    %v1628 = vxor.u32 %v1623, 2147483648
    %v1629 = vsel %vm1627, %v1622, %v1628
    %vm1630 = vcmp.eq.s32.totalorder %v1625, 2
    %v1631 = vxor.u32 %v1622, 2147483648
    %v1632 = vsel %vm1630, %v1631, %v1623
    %v1633 = vsel %vm1626, %v1629, %v1632
    %v1634 = vsel %vm1624, nan, %v1633
    %v1635 = vand.u32 2147483647, %v191
    %vm1636 = vcmp.le.f32.partialorder %v1635, 0.7853982
    %vm1637 = vcmp.lt.s32.totalorder %v191, 0
    %v1638 = vand.u32 %v191, 2139095040
    %v1639 = vshrl.u32 %v1638, 23
    %v1640 = vsub.s32 %v1639, 127
    %v1641 = vand.u32 2147483647, %v191
    %v1642 = vand.u32 %v1641, 8388607
    %v1643 = vor.u32 %v1642, 8388608
    %v1644 = vsub.s32 0, %v1643
    %v1645 = vadd.s32 %v1640, 1
    %vm1646 = vcmp.gt.s32.totalorder %v1645, 0
    %v1647 = vsel %vm1646, %v1645, 0
    %v1648 = vshrl.u32 %v1647, 5
    %v1649 = vand.u32 %v1647, 31
    %v1650 = vsub.s32 32, %v1649
    %v1651 = vshrl.u32 683565275, %v1650
    %v1652 = vshll.u32 683565275, %v1649
    %v1653 = vshrl.u32 2475754826, %v1650
    %v1654 = vor.u32 %v1652, %v1653
    %v1655 = vshll.u32 2475754826, %v1649
    %v1656 = vshrl.u32 2131351028, %v1650
    %v1657 = vor.u32 %v1655, %v1656
    %v1658 = vshll.u32 2131351028, %v1649
    %v1659 = vshrl.u32 2102212464, %v1650
    %v1660 = vor.u32 %v1658, %v1659
    %v1661 = vshll.u32 2102212464, %v1649
    %v1662 = vshrl.u32 920167782, %v1650
    %v1663 = vor.u32 %v1661, %v1662
    %v1664 = vshll.u32 920167782, %v1649
    %v1665 = vshrl.u32 1326507024, %v1650
    %v1666 = vor.u32 %v1664, %v1665
    %vm1667 = vcmp.lt.s32.totalorder %v1648, 1
    %vm1668 = vcmp.lt.s32.totalorder %v1648, 2
    %vm1669 = vcmp.lt.s32.totalorder %v1648, 3
    %vm1670 = vcmp.lt.s32.totalorder %v1648, 4
    %v1671 = vsel %vm1667, %v1651, %v1654
    %v1672 = vsel %vm1670, %v1660, 2102212464
    %v1673 = vsel %vm1669, %v1657, %v1672
    %v1674 = vsel %vm1668, %v1671, %v1673
    %v1675 = vsel %vm1667, %v1654, %v1657
    %v1676 = vsel %vm1670, %v1663, 920167782
    %v1677 = vsel %vm1669, %v1660, %v1676
    %v1678 = vsel %vm1668, %v1675, %v1677
    %v1679 = vsel %vm1667, %v1657, %v1660
    %v1680 = vsel %vm1670, %v1666, 1326507024
    %v1681 = vsel %vm1669, %v1663, %v1680
    %v1682 = vsel %vm1668, %v1679, %v1681
    %v1683 = vshll.u32 %v1643, 8
    %v1684 = vmul.u32.u64.compose %v1683, %v1682
    %v1685 = vextract.low.u32 %v1684
    %v1686 = vextract.high.u32 %v1684
    %v1687 = vmul.u32.u64.compose %v1683, %v1678
    %v1688 = vextract.low.u32 %v1687
    %v1689 = vextract.high.u32 %v1687
    %v1690 = vmul.u32 %v1683, %v1674
    %v1691 = vadd.s32 %v1686, %v1688
    %vm1692 = vc.u32 %v1686, %v1688
    %v1693 = vadd.s32 %v1689, 1
    %v1694 = vsel %vm1692, %v1693, %v1689
    %v1695 = vadd.s32 %v1690, %v1694
    %v1696 = vadd.s32 %v1695, 536870912
    %v1697 = vshrl.u32 %v1696, 30
    %v1698 = vshll.u32 %v1697, 30
    %v1699 = vsub.s32 %v1695, %v1698
    %vm1700 = vcmp.lt.s32.totalorder %v1699, 0
    %v1701 = vsub.s32 0, %v1699
    %v1702 = vsel %vm1700, %v1701, %v1699
    %v1703 = vclz %v1702
    %v1704 = vsub.s32 %v1703, 2
    %vm1705 = vcmp.gt.s32.totalorder 0, %v1704
    %v1706 = vsel %vm1705, 0, %v1704
    %v1707 = vsub.s32 32, %v1706
    %v1708 = vshll.u32 %v1699, %v1706
    %v1709 = vshrl.u32 %v1691, %v1707
    %v1710 = vor.u32 %v1708, %v1709
    %v1711 = vsub.s32 4294967266, %v1706
    %v1712 = vadd.s32 %v1711, 127
    %v1713 = vshll.u32 %v1712, 23
    %v1714 = vor.u32 4788187, %v1713
    %v1715 = vand.u32 2147483647, %v1714
    %v1717 = vcvt.s32.f32 %v1710
    %v1718 = vmul.f32 %v1717, %v1715
    %v1719 = vxor.u32 %v1718, 2147483648
    %v1720 = vsel %vm1637, %v1719, %v1718
    %v1721 = vsub.s32 4, %v1697
    %v1722 = vsel %vm1637, %v1721, %v1697
    %v1723 = vsel %vm1636, %v191, %v1720
    %v1724 = vsel %vm1636, 0, %v1722
    %v1725 = vcosq.f32.pop %v1723
    %v1726 = vsinq.f32.pop %v1723
    %vm1727 = vweird.f32 %v191
    %v1728 = vand.u32 %v1724, 3
    %vm1729 = vcmp.lt.s32.totalorder %v1728, 2
    %vm1730 = vcmp.eq.s32.totalorder %v1728, 0
    %v1731 = vxor.u32 %v1726, 2147483648
    %v1732 = vsel %vm1730, %v1725, %v1731
    %vm1733 = vcmp.eq.s32.totalorder %v1728, 2
    %v1734 = vxor.u32 %v1725, 2147483648
    %v1735 = vsel %vm1733, %v1734, %v1726
    %v1736 = vsel %vm1729, %v1732, %v1735
    %v1737 = vsel %vm1727, nan, %v1736
    %v1738 = vand.u32 2147483647, %v192
    %vm1739 = vcmp.le.f32.partialorder %v1738, 0.7853982
    %vm1740 = vcmp.lt.s32.totalorder %v192, 0
    %v1741 = vand.u32 %v192, 2139095040
    %v1742 = vshrl.u32 %v1741, 23
    %v1743 = vsub.s32 %v1742, 127
    %v1744 = vand.u32 2147483647, %v192
    %v1745 = vand.u32 %v1744, 8388607
    %v1746 = vor.u32 %v1745, 8388608
    %v1747 = vsub.s32 0, %v1746
    %v1748 = vadd.s32 %v1743, 1
    %vm1749 = vcmp.gt.s32.totalorder %v1748, 0
    %v1750 = vsel %vm1749, %v1748, 0
    %v1751 = vshrl.u32 %v1750, 5
    %v1752 = vand.u32 %v1750, 31
    %v1753 = vsub.s32 32, %v1752
    %v1754 = vshrl.u32 683565275, %v1753
    %v1755 = vshll.u32 683565275, %v1752
    %v1756 = vshrl.u32 2475754826, %v1753
    %v1757 = vor.u32 %v1755, %v1756
    %v1758 = vshll.u32 2475754826, %v1752
    %v1759 = vshrl.u32 2131351028, %v1753
    %v1760 = vor.u32 %v1758, %v1759
    %v1761 = vshll.u32 2131351028, %v1752
    %v1762 = vshrl.u32 2102212464, %v1753
    %v1763 = vor.u32 %v1761, %v1762
    %v1764 = vshll.u32 2102212464, %v1752
    %v1765 = vshrl.u32 920167782, %v1753
    %v1766 = vor.u32 %v1764, %v1765
    %v1767 = vshll.u32 920167782, %v1752
    %v1768 = vshrl.u32 1326507024, %v1753
    %v1769 = vor.u32 %v1767, %v1768
    %vm1770 = vcmp.lt.s32.totalorder %v1751, 1
    %vm1771 = vcmp.lt.s32.totalorder %v1751, 2
    %vm1772 = vcmp.lt.s32.totalorder %v1751, 3
    %vm1773 = vcmp.lt.s32.totalorder %v1751, 4
    %v1774 = vsel %vm1770, %v1754, %v1757
    %v1775 = vsel %vm1773, %v1763, 2102212464
    %v1776 = vsel %vm1772, %v1760, %v1775
    %v1777 = vsel %vm1771, %v1774, %v1776
    %v1778 = vsel %vm1770, %v1757, %v1760
    %v1779 = vsel %vm1773, %v1766, 920167782
    %v1780 = vsel %vm1772, %v1763, %v1779
    %v1781 = vsel %vm1771, %v1778, %v1780
    %v1782 = vsel %vm1770, %v1760, %v1763
    %v1783 = vsel %vm1773, %v1769, 1326507024
    %v1784 = vsel %vm1772, %v1766, %v1783
    %v1785 = vsel %vm1771, %v1782, %v1784
    %v1786 = vshll.u32 %v1746, 8
    %v1787 = vmul.u32.u64.compose %v1786, %v1785
    %v1788 = vextract.low.u32 %v1787
    %v1789 = vextract.high.u32 %v1787
    %v1790 = vmul.u32.u64.compose %v1786, %v1781
    %v1791 = vextract.low.u32 %v1790
    %v1792 = vextract.high.u32 %v1790
    %v1793 = vmul.u32 %v1786, %v1777
    %v1794 = vadd.s32 %v1789, %v1791
    %vm1795 = vc.u32 %v1789, %v1791
    %v1796 = vadd.s32 %v1792, 1
    %v1797 = vsel %vm1795, %v1796, %v1792
    %v1798 = vadd.s32 %v1793, %v1797
    %v1799 = vadd.s32 %v1798, 536870912
    %v1800 = vshrl.u32 %v1799, 30
    %v1801 = vshll.u32 %v1800, 30
    %v1802 = vsub.s32 %v1798, %v1801
    %vm1803 = vcmp.lt.s32.totalorder %v1802, 0
    %v1804 = vsub.s32 0, %v1802
    %v1805 = vsel %vm1803, %v1804, %v1802
    %v1806 = vclz %v1805
    %v1807 = vsub.s32 %v1806, 2
    %vm1808 = vcmp.gt.s32.totalorder 0, %v1807
    %v1809 = vsel %vm1808, 0, %v1807
    %v1810 = vsub.s32 32, %v1809
    %v1811 = vshll.u32 %v1802, %v1809
    %v1812 = vshrl.u32 %v1794, %v1810
    %v1813 = vor.u32 %v1811, %v1812
    %v1814 = vsub.s32 4294967266, %v1809
    %v1815 = vadd.s32 %v1814, 127
    %v1816 = vshll.u32 %v1815, 23
    %v1817 = vor.u32 4788187, %v1816
    %v1818 = vand.u32 2147483647, %v1817
    %v1820 = vcvt.s32.f32 %v1813
    %v1821 = vmul.f32 %v1820, %v1818
    %v1822 = vxor.u32 %v1821, 2147483648
    %v1823 = vsel %vm1740, %v1822, %v1821
    %v1824 = vsub.s32 4, %v1800
    %v1825 = vsel %vm1740, %v1824, %v1800
    %v1826 = vsel %vm1739, %v192, %v1823
    %v1827 = vsel %vm1739, 0, %v1825
    %v1828 = vcosq.f32.pop %v1826
    %v1829 = vsinq.f32.pop %v1826
    %vm1830 = vweird.f32 %v192
    %v1831 = vand.u32 %v1827, 3
    %vm1832 = vcmp.lt.s32.totalorder %v1831, 2
    %vm1833 = vcmp.eq.s32.totalorder %v1831, 0
    %v1834 = vxor.u32 %v1829, 2147483648
    %v1835 = vsel %vm1833, %v1828, %v1834
    %vm1836 = vcmp.eq.s32.totalorder %v1831, 2
    %v1837 = vxor.u32 %v1828, 2147483648
    %v1838 = vsel %vm1836, %v1837, %v1829
    %v1839 = vsel %vm1832, %v1835, %v1838
    %v1840 = vsel %vm1830, nan, %v1839
    %v1841 = vld [vmem:[%s3] sm:$0xff]
    %v1842 = vld [vmem:[%s3 + $0x8] sm:$0xff]
    %v1843 = vld [vmem:[%s3 + $0x10] sm:$0xff]
    %v1844 = vld [vmem:[%s3 + $0x18] sm:$0xff]
    %v1845 = vld [vmem:[%s5] sm:$0x1]
    %v1847 = vlaneseq
    %v1848 = vshrl.u32 %v1847, 7
    %v1849 = vsub.s32 0, %v1848
    %v1850 = vrot.slane %v1845, %v1849
    %vm1852 = vcmask 261120
    %v1854 = vsel %vm1852, %v295, 0
    %v1857 = vsel %vm1852, %v398, 0
    %v1860 = vsel %vm1852, %v501, 0
    %v1863 = vsel %vm1852, %v604, 0
    %v1866 = vsel %vm1852, %v707, 0
    %v1869 = vsel %vm1852, %v810, 0
    %v1872 = vsel %vm1852, %v913, 0
    %v1875 = vsel %vm1852, %v1016, 0
    %v1878 = vsel %vm1852, %v1119, 0
    %v1881 = vsel %vm1852, %v1222, 0
    %v1884 = vsel %vm1852, %v1325, 0
    %v1887 = vsel %vm1852, %v1428, 0
    %v1890 = vsel %vm1852, %v1531, 0
    %v1893 = vsel %vm1852, %v1634, 0
    %v1896 = vsel %vm1852, %v1737, 0
    %v1899 = vsel %vm1852, %v1840, 0
    %1901 = vmatprep.subr.mxu0 0.0
    %1902 = vmatpush1.msra.mxu0 %v1841
    %1903 = vmatprep.subr.mxu0 0.0
    %1904 = vmatpush1.msra.mxu0 %v1842
    %1905 = vmatprep.subr.mxu0 0.0
    %1906 = vmatpush1.msra.mxu0 %v1843
    %1907 = vmatprep.subr.mxu0 0.0
    %1908 = vmatpush1.msra.mxu0 %v1844
    %1909 = vmatprep.subr.mxu0 0.0
    %1910 = vmatpush1.msra.mxu0 0.0
    %1911 = vmatprep.subr.mxu0 0.0
    %1912 = vmatpush1.msra.mxu0 0.0
    %1913 = vmatprep.subr.mxu0 0.0
    %1914 = vmatpush1.msra.mxu0 0.0
    %1915 = vmatprep.subr.mxu0 0.0
    %1916 = vmatpush1.msra.mxu0 0.0
    %1917 = vmatprep.subr.mxu0 0.0
    %1918 = vmatpush1.msra.mxu0 0.0
    %1919 = vmatprep.subr.mxu0 0.0
    %1920 = vmatpush1.msra.mxu0 0.0
    %1921 = vmatprep.subr.mxu0 0.0
    %1922 = vmatpush1.msra.mxu0 0.0
    %1923 = vmatprep.subr.mxu0 0.0
    %1924 = vmatpush1.msra.mxu0 0.0
    %1925 = vmatprep.subr.mxu0 0.0
    %1926 = vmatpush1.msra.mxu0 0.0
    %1927 = vmatprep.subr.mxu0 0.0
    %1928 = vmatpush1.msra.mxu0 0.0
    %1929 = vmatprep.subr.mxu0 0.0
    %1930 = vmatpush1.msra.mxu0 0.0
    %1931 = vmatprep.subr.mxu0 0.0
    %1932 = vmatpush1.msra.mxu0 0.0
    %1933 = vmatprep.subr.mxu0 0.0
    %1934 = vmatpush1.msra.mxu0 0.0
    %1935 = vmatprep.subr.mxu0 0.0
    %1936 = vmatpush1.msra.mxu0 0.0
    %1937 = vmatprep.subr.mxu0 0.0
    %1938 = vmatpush1.msra.mxu0 0.0
    %1939 = vmatprep.subr.mxu0 0.0
    %1940 = vmatpush1.msra.mxu0 0.0
    %1941 = vmatprep.subr.mxu0 0.0
    %1942 = vmatpush1.msra.mxu0 0.0
    %1943 = vmatprep.subr.mxu0 0.0
    %1944 = vmatpush1.msra.mxu0 0.0
    %1945 = vmatprep.subr.mxu0 0.0
    %1946 = vmatpush1.msra.mxu0 0.0
    %1947 = vmatprep.subr.mxu0 0.0
    %1948 = vmatpush1.msra.mxu0 0.0
    %1949 = vmatprep.subr.mxu0 0.0
    %1950 = vmatpush1.msra.mxu0 0.0
    %1951 = vmatprep.subr.mxu0 0.0
    %1952 = vmatpush1.msra.mxu0 0.0
    %1953 = vmatprep.subr.mxu0 0.0
    %1954 = vmatpush1.msra.mxu0 0.0
    %1955 = vmatprep.subr.mxu0 0.0
    %1956 = vmatpush1.msra.mxu0 0.0
    %1957 = vmatprep.subr.mxu0 0.0
    %1958 = vmatpush1.msra.mxu0 0.0
    %1959 = vmatprep.subr.mxu0 0.0
    %1960 = vmatpush1.msra.mxu0 0.0
    %1961 = vmatprep.subr.mxu0 0.0
    %1962 = vmatpush1.msra.mxu0 0.0
    %1963 = vmatprep.subr.mxu0 0.0
    %1964 = vmatpush1.msra.mxu0 0.0
    %1965 = vmatprep.mubr.f32.mxu0 0.0
    %1966 = vmatmul.mubr.f32.gmra.mrb[0].mxu0 %v1854
    %v1967 = vpop.f32.mrb[0].mxu0
    %v1968 = vadd.f32 %v1850, %v1967
    %v1969 = vpop.f32.mrb[0].mxu0
    %1970 = vmatprep.mubr.f32.mxu0 0.0
    %1971 = vmatmul.mubr.f32.gmra.mrb[0].mxu0 %v1857
    %v1972 = vpop.f32.mrb[0].mxu0
    %v1973 = vadd.f32 %v1850, %v1972
    %v1974 = vpop.f32.mrb[0].mxu0
    %1975 = vmatprep.mubr.f32.mxu0 0.0
    %1976 = vmatmul.mubr.f32.gmra.mrb[0].mxu0 %v1860
    %v1977 = vpop.f32.mrb[0].mxu0
    %v1978 = vadd.f32 %v1850, %v1977
    %v1979 = vpop.f32.mrb[0].mxu0
    %1980 = vmatprep.mubr.f32.mxu0 0.0
    %1981 = vmatmul.mubr.f32.gmra.mrb[0].mxu0 %v1863
    %v1982 = vpop.f32.mrb[0].mxu0
    %v1983 = vadd.f32 %v1850, %v1982
    %v1984 = vpop.f32.mrb[0].mxu0
    %1985 = vmatprep.mubr.f32.mxu0 0.0
    %1986 = vmatmul.mubr.f32.gmra.mrb[0].mxu0 %v1866
    %v1987 = vpop.f32.mrb[0].mxu0
    %v1988 = vadd.f32 %v1850, %v1987
    %v1989 = vpop.f32.mrb[0].mxu0
    %1990 = vmatprep.mubr.f32.mxu0 0.0
    %1991 = vmatmul.mubr.f32.gmra.mrb[0].mxu0 %v1869
    %v1992 = vpop.f32.mrb[0].mxu0
    %v1993 = vadd.f32 %v1850, %v1992
    %v1994 = vpop.f32.mrb[0].mxu0
    %1995 = vmatprep.mubr.f32.mxu0 0.0
    %1996 = vmatmul.mubr.f32.gmra.mrb[0].mxu0 %v1872
    %v1997 = vpop.f32.mrb[0].mxu0
    %v1998 = vadd.f32 %v1850, %v1997
    %v1999 = vpop.f32.mrb[0].mxu0
    %2000 = vmatprep.mubr.f32.mxu0 0.0
    %2001 = vmatmul.mubr.f32.gmra.mrb[0].mxu0 %v1875
    %v2002 = vpop.f32.mrb[0].mxu0
    %v2003 = vadd.f32 %v1850, %v2002
    %v2004 = vpop.f32.mrb[0].mxu0
    %2005 = vmatprep.mubr.f32.mxu0 0.0
    %2006 = vmatmul.mubr.f32.gmra.mrb[0].mxu0 %v1878
    %v2007 = vpop.f32.mrb[0].mxu0
    %v2008 = vadd.f32 %v1850, %v2007
    %v2009 = vpop.f32.mrb[0].mxu0
    %2010 = vmatprep.mubr.f32.mxu0 0.0
    %2011 = vmatmul.mubr.f32.gmra.mrb[0].mxu0 %v1881
    %v2012 = vpop.f32.mrb[0].mxu0
    %v2013 = vadd.f32 %v1850, %v2012
    %v2014 = vpop.f32.mrb[0].mxu0
    %2015 = vmatprep.mubr.f32.mxu0 0.0
    %2016 = vmatmul.mubr.f32.gmra.mrb[0].mxu0 %v1884
    %v2017 = vpop.f32.mrb[0].mxu0
    %v2018 = vadd.f32 %v1850, %v2017
    %v2019 = vpop.f32.mrb[0].mxu0
    %2020 = vmatprep.mubr.f32.mxu0 0.0
    %2021 = vmatmul.mubr.f32.gmra.mrb[0].mxu0 %v1887
    %v2022 = vpop.f32.mrb[0].mxu0
    %v2023 = vadd.f32 %v1850, %v2022
    %v2024 = vpop.f32.mrb[0].mxu0
    %2025 = vmatprep.mubr.f32.mxu0 0.0
    %2026 = vmatmul.mubr.f32.gmra.mrb[0].mxu0 %v1890
    %v2027 = vpop.f32.mrb[0].mxu0
    %v2028 = vadd.f32 %v1850, %v2027
    %v2029 = vpop.f32.mrb[0].mxu0
    %2030 = vmatprep.mubr.f32.mxu0 0.0
    %2031 = vmatmul.mubr.f32.gmra.mrb[0].mxu0 %v1893
    %v2032 = vpop.f32.mrb[0].mxu0
    %v2033 = vadd.f32 %v1850, %v2032
    %v2034 = vpop.f32.mrb[0].mxu0
    %2035 = vmatprep.mubr.f32.mxu0 0.0
    %2036 = vmatmul.mubr.f32.gmra.mrb[0].mxu0 %v1896
    %v2037 = vpop.f32.mrb[0].mxu0
    %v2038 = vadd.f32 %v1850, %v2037
    %v2039 = vpop.f32.mrb[0].mxu0
    %2040 = vmatprep.mubr.f32.mxu0 0.0
    %2041 = vmatmul.mubr.f32.gmra.mrb[0].mxu0 %v1899
    %v2042 = vpop.f32.mrb[0].mxu0
    %v2043 = vadd.f32 %v1850, %v2042
    %v2044 = vpop.f32.mrb[0].mxu0
    %2045 = vdwg.mxu0
    %v2046 = vand.u32 2147483647, %v170
    %vm2047 = vcmp.le.f32.partialorder %v2046, 0.7853982
    %vm2048 = vcmp.lt.s32.totalorder %v170, 0
    %v2049 = vand.u32 %v170, 2139095040
    %v2050 = vshrl.u32 %v2049, 23
    %v2051 = vsub.s32 %v2050, 127
    %v2052 = vand.u32 2147483647, %v170
    %v2053 = vand.u32 %v2052, 8388607
    %v2054 = vor.u32 %v2053, 8388608
    %v2055 = vsub.s32 0, %v2054
    %v2056 = vadd.s32 %v2051, 1
    %vm2057 = vcmp.gt.s32.totalorder %v2056, 0
    %v2058 = vsel %vm2057, %v2056, 0
    %v2059 = vshrl.u32 %v2058, 5
    %v2060 = vand.u32 %v2058, 31
    %v2061 = vsub.s32 32, %v2060
    %v2062 = vshrl.u32 683565275, %v2061
    %v2063 = vshll.u32 683565275, %v2060
    %v2064 = vshrl.u32 2475754826, %v2061
    %v2065 = vor.u32 %v2063, %v2064
    %v2066 = vshll.u32 2475754826, %v2060
    %v2067 = vshrl.u32 2131351028, %v2061
    %v2068 = vor.u32 %v2066, %v2067
    %v2069 = vshll.u32 2131351028, %v2060
    %v2070 = vshrl.u32 2102212464, %v2061
    %v2071 = vor.u32 %v2069, %v2070
    %v2072 = vshll.u32 2102212464, %v2060
    %v2073 = vshrl.u32 920167782, %v2061
    %v2074 = vor.u32 %v2072, %v2073
    %v2075 = vshll.u32 920167782, %v2060
    %v2076 = vshrl.u32 1326507024, %v2061
    %v2077 = vor.u32 %v2075, %v2076
    %vm2078 = vcmp.lt.s32.totalorder %v2059, 1
    %vm2079 = vcmp.lt.s32.totalorder %v2059, 2
    %vm2080 = vcmp.lt.s32.totalorder %v2059, 3
    %vm2081 = vcmp.lt.s32.totalorder %v2059, 4
    %v2082 = vsel %vm2078, %v2062, %v2065
    %v2083 = vsel %vm2081, %v2071, 2102212464
    %v2084 = vsel %vm2080, %v2068, %v2083
    %v2085 = vsel %vm2079, %v2082, %v2084
    %v2086 = vsel %vm2078, %v2065, %v2068
    %v2087 = vsel %vm2081, %v2074, 920167782
    %v2088 = vsel %vm2080, %v2071, %v2087
    %v2089 = vsel %vm2079, %v2086, %v2088
    %v2090 = vsel %vm2078, %v2068, %v2071
    %v2091 = vsel %vm2081, %v2077, 1326507024
    %v2092 = vsel %vm2080, %v2074, %v2091
    %v2093 = vsel %vm2079, %v2090, %v2092
    %v2094 = vshll.u32 %v2054, 8
    %v2095 = vmul.u32.u64.compose %v2094, %v2093
    %v2096 = vextract.low.u32 %v2095
    %v2097 = vextract.high.u32 %v2095
    %v2098 = vmul.u32.u64.compose %v2094, %v2089
    %v2099 = vextract.low.u32 %v2098
    %v2100 = vextract.high.u32 %v2098
    %v2101 = vmul.u32 %v2094, %v2085
    %v2102 = vadd.s32 %v2097, %v2099
    %vm2103 = vc.u32 %v2097, %v2099
    %v2104 = vadd.s32 %v2100, 1
    %v2105 = vsel %vm2103, %v2104, %v2100
    %v2106 = vadd.s32 %v2101, %v2105
    %v2107 = vadd.s32 %v2106, 536870912
    %v2108 = vshrl.u32 %v2107, 30
    %v2109 = vshll.u32 %v2108, 30
    %v2110 = vsub.s32 %v2106, %v2109
    %vm2111 = vcmp.lt.s32.totalorder %v2110, 0
    %v2112 = vsub.s32 0, %v2110
    %v2113 = vsel %vm2111, %v2112, %v2110
    %v2114 = vclz %v2113
    %v2115 = vsub.s32 %v2114, 2
    %vm2116 = vcmp.gt.s32.totalorder 0, %v2115
    %v2117 = vsel %vm2116, 0, %v2115
    %v2118 = vsub.s32 32, %v2117
    %v2119 = vshll.u32 %v2110, %v2117
    %v2120 = vshrl.u32 %v2102, %v2118
    %v2121 = vor.u32 %v2119, %v2120
    %v2122 = vsub.s32 4294967266, %v2117
    %v2123 = vadd.s32 %v2122, 127
    %v2124 = vshll.u32 %v2123, 23
    %v2125 = vor.u32 4788187, %v2124
    %v2126 = vand.u32 2147483647, %v2125
    %v2128 = vcvt.s32.f32 %v2121
    %v2129 = vmul.f32 %v2128, %v2126
    %v2130 = vxor.u32 %v2129, 2147483648
    %v2131 = vsel %vm2048, %v2130, %v2129
    %v2132 = vsub.s32 4, %v2108
    %v2133 = vsel %vm2048, %v2132, %v2108
    %v2134 = vsel %vm2047, %v170, %v2131
    %v2135 = vsel %vm2047, 0, %v2133
    %v2136 = vcosq.f32.pop %v2134
    %v2137 = vsinq.f32.pop %v2134
    %vm2138 = vweird.f32 %v170
    %v2139 = vand.u32 %v2135, 3
    %vm2140 = vcmp.lt.s32.totalorder %v2139, 2
    %vm2141 = vcmp.eq.s32.totalorder %v2139, 0
    %v2142 = vxor.u32 %v2137, 2147483648
    %v2143 = vsel %vm2141, %v2136, %v2142
    %vm2144 = vcmp.eq.s32.totalorder %v2139, 2
    %v2145 = vxor.u32 %v2136, 2147483648
    %v2146 = vsel %vm2144, %v2145, %v2137
    %v2147 = vsel %vm2140, %v2143, %v2146
    %v2148 = vsel %vm2138, nan, %v2147
    %v2150 = vlaneseq
    %v2151 = vshrl.u32 %v2150, 7
    %v2152 = vsub.s32 0, %v2151
    %v2153 = vrot.slane %v2148, %v2152
    %v2154 = vld [vmem:[%s4] sm:$0xff]
    %v2155 = vld [vmem:[%s4 + $0x8] sm:$0xff]
    %v2156 = vld [vmem:[%s4 + $0x10] sm:$0xff]
    %v2157 = vld [vmem:[%s4 + $0x18] sm:$0xff]
    %v2158 = vld [vmem:[%s6] sm:$0x1]
    %v2160 = vlaneseq
    %v2161 = vshrl.u32 %v2160, 7
    %v2162 = vsub.s32 0, %v2161
    %v2163 = vrot.slane %v2158, %v2162
    %v2164 = vsel %vm1852, %v2153, 0
    %2166 = vmatprep.subr.mxu0 0.0
    %2167 = vmatpush1.msra.mxu0 %v2154
    %2168 = vmatprep.subr.mxu0 0.0
    %2169 = vmatpush1.msra.mxu0 %v2155
    %2170 = vmatprep.subr.mxu0 0.0
    %2171 = vmatpush1.msra.mxu0 %v2156
    %2172 = vmatprep.subr.mxu0 0.0
    %2173 = vmatpush1.msra.mxu0 %v2157
    %2174 = vmatprep.subr.mxu0 0.0
    %2175 = vmatpush1.msra.mxu0 0.0
    %2176 = vmatprep.subr.mxu0 0.0
    %2177 = vmatpush1.msra.mxu0 0.0
    %2178 = vmatprep.subr.mxu0 0.0
    %2179 = vmatpush1.msra.mxu0 0.0
    %2180 = vmatprep.subr.mxu0 0.0
    %2181 = vmatpush1.msra.mxu0 0.0
    %2182 = vmatprep.subr.mxu0 0.0
    %2183 = vmatpush1.msra.mxu0 0.0
    %2184 = vmatprep.subr.mxu0 0.0
    %2185 = vmatpush1.msra.mxu0 0.0
    %2186 = vmatprep.subr.mxu0 0.0
    %2187 = vmatpush1.msra.mxu0 0.0
    %2188 = vmatprep.subr.mxu0 0.0
    %2189 = vmatpush1.msra.mxu0 0.0
    %2190 = vmatprep.subr.mxu0 0.0
    %2191 = vmatpush1.msra.mxu0 0.0
    %2192 = vmatprep.subr.mxu0 0.0
    %2193 = vmatpush1.msra.mxu0 0.0
    %2194 = vmatprep.subr.mxu0 0.0
    %2195 = vmatpush1.msra.mxu0 0.0
    %2196 = vmatprep.subr.mxu0 0.0
    %2197 = vmatpush1.msra.mxu0 0.0
    %2198 = vmatprep.subr.mxu0 0.0
    %2199 = vmatpush1.msra.mxu0 0.0
    %2200 = vmatprep.subr.mxu0 0.0
    %2201 = vmatpush1.msra.mxu0 0.0
    %2202 = vmatprep.subr.mxu0 0.0
    %2203 = vmatpush1.msra.mxu0 0.0
    %2204 = vmatprep.subr.mxu0 0.0
    %2205 = vmatpush1.msra.mxu0 0.0
    %2206 = vmatprep.subr.mxu0 0.0
    %2207 = vmatpush1.msra.mxu0 0.0
    %2208 = vmatprep.subr.mxu0 0.0
    %2209 = vmatpush1.msra.mxu0 0.0
    %2210 = vmatprep.subr.mxu0 0.0
    %2211 = vmatpush1.msra.mxu0 0.0
    %2212 = vmatprep.subr.mxu0 0.0
    %2213 = vmatpush1.msra.mxu0 0.0
    %2214 = vmatprep.subr.mxu0 0.0
    %2215 = vmatpush1.msra.mxu0 0.0
    %2216 = vmatprep.subr.mxu0 0.0
    %2217 = vmatpush1.msra.mxu0 0.0
    %2218 = vmatprep.subr.mxu0 0.0
    %2219 = vmatpush1.msra.mxu0 0.0
    %2220 = vmatprep.subr.mxu0 0.0
    %2221 = vmatpush1.msra.mxu0 0.0
    %2222 = vmatprep.subr.mxu0 0.0
    %2223 = vmatpush1.msra.mxu0 0.0
    %2224 = vmatprep.subr.mxu0 0.0
    %2225 = vmatpush1.msra.mxu0 0.0
    %2226 = vmatprep.subr.mxu0 0.0
    %2227 = vmatpush1.msra.mxu0 0.0
    %2228 = vmatprep.subr.mxu0 0.0
    %2229 = vmatpush1.msra.mxu0 0.0
    %2230 = vmatprep.mubr.f32.mxu0 0.0
    %2231 = vmatmul.mubr.f32.gmra.mrb[0].mxu0 %v2164
    %v2232 = vpop.f32.mrb[0].mxu0
    %v2233 = vadd.f32 0.0, %v2232
    %v2234 = vpop.f32.mrb[0].mxu0
    %2235 = vmatprep.mubr.f32.mxu0 0.0
    %2236 = vmatmul.mubr.f32.gmra.mrb[0].mxu0 %v2164
    %v2237 = vpop.f32.mrb[0].mxu0
    %v2238 = vadd.f32 0.0, %v2237
    %v2239 = vpop.f32.mrb[0].mxu0
    %2240 = vdwg.mxu0
    %v2241 = vadd.f32 %v1968, %v2233
    %v2242 = vadd.f32 %v1973, %v2238
    %v2243 = vxor.u32 %v2241, 2147483648
    %v2244 = vxor.u32 %v2242, 2147483648
    %v2245 = vmul.f32 %v2243, 1.442695
    %v2246 = vpow.pop %v2245
    %v2247 = vmul.f32 %v2244, 1.442695
    %v2248 = vpow.pop %v2247
    %v2249 = vadd.f32 %v2246, 1.0
    %v2250 = vadd.f32 %v2248, 1.0
    %v2251 = vrcp.pop %v2249
    %v2252 = vmul.f32 1.0, %v2251
    %v2253 = vrcp.pop %v2250
    %v2254 = vmul.f32 1.0, %v2253
    %2255 = vrot.lane.b32.xlu0 %v2163, 64
    %v2256 = vpop.permute.xlu0 %2255
    %v2258 = vadd.f32 %v2233, %v2256
    %v2259 = vadd.f32 %v2238, %v2256
    %2262 = vrot.lane.b32.xlu0 %v2258, 64
    %v2263 = vpop.permute.xlu0 %2262
    %2264 = vrot.lane.b32.xlu0 %v2259, 64
    %v2265 = vpop.permute.xlu0 %2264
    %v2268 = vmul.f32 %v2252, %v2263
    %v2269 = vmul.f32 %v2254, %v2265
    %2272 = vrot.lane.b32.xlu0 %v2268, 64
    %v2273 = vpop.permute.xlu0 %2272
    %2274 = vrot.lane.b32.xlu0 %v2269, 64
    %v2275 = vpop.permute.xlu0 %2274
    %v2278 = vadd.f32 %v1968, %v2273
    %v2279 = vadd.f32 %v1973, %v2275
    %v2280 = vtanh.pop %v2278
    %v2281 = vtanh.pop %v2279
    %v2282 = vsub.f32 1.0, %v2252
    %v2283 = vsub.f32 1.0, %v2254
    %2286 = vrot.lane.b32.xlu0 %v2280, 96
    %v2287 = vpop.permute.xlu0 %2286
    %2288 = vrot.lane.b32.xlu0 %v2281, 96
    %v2289 = vpop.permute.xlu0 %2288
    %v2292 = vmul.f32 %v2282, %v2287
    %v2293 = vmul.f32 %v2283, %v2289
    %2294 = vrot.lane.b32.xlu0 %v2153, 32
    %v2295 = vpop.permute.xlu0 %2294
    %v2297 = vmul.f32 %v2252, %v2295
    %v2298 = vmul.f32 %v2254, %v2295
    %v2299 = vadd.f32 %v2292, %v2297
    %v2300 = vadd.f32 %v2293, %v2298
    %2303 = vrot.lane.b32.xlu0 %v2299, 96
    %v2304 = vpop.permute.xlu0 %2303
    %2305 = vrot.lane.b32.xlu0 %v2300, 96
    %v2306 = vpop.permute.xlu0 %2305
    %v2307 = vsel %vm1852, %v2304, 0
    %v2309 = vsel %vm1852, %v2306, 0
    %2311 = vmatprep.subr.mxu0 0.0
    %2312 = vmatpush1.msra.mxu0 %v2154
    %2313 = vmatprep.subr.mxu0 0.0
    %2314 = vmatpush1.msra.mxu0 %v2155
    %2315 = vmatprep.subr.mxu0 0.0
    %2316 = vmatpush1.msra.mxu0 %v2156
    %2317 = vmatprep.subr.mxu0 0.0
    %2318 = vmatpush1.msra.mxu0 %v2157
    %2319 = vmatprep.subr.mxu0 0.0
    %2320 = vmatpush1.msra.mxu0 0.0
    %2321 = vmatprep.subr.mxu0 0.0
    %2322 = vmatpush1.msra.mxu0 0.0
    %2323 = vmatprep.subr.mxu0 0.0
    %2324 = vmatpush1.msra.mxu0 0.0
    %2325 = vmatprep.subr.mxu0 0.0
    %2326 = vmatpush1.msra.mxu0 0.0
    %2327 = vmatprep.subr.mxu0 0.0
    %2328 = vmatpush1.msra.mxu0 0.0
    %2329 = vmatprep.subr.mxu0 0.0
    %2330 = vmatpush1.msra.mxu0 0.0
    %2331 = vmatprep.subr.mxu0 0.0
    %2332 = vmatpush1.msra.mxu0 0.0
    %2333 = vmatprep.subr.mxu0 0.0
    %2334 = vmatpush1.msra.mxu0 0.0
    %2335 = vmatprep.subr.mxu0 0.0
    %2336 = vmatpush1.msra.mxu0 0.0
    %2337 = vmatprep.subr.mxu0 0.0
    %2338 = vmatpush1.msra.mxu0 0.0
    %2339 = vmatprep.subr.mxu0 0.0
    %2340 = vmatpush1.msra.mxu0 0.0
    %2341 = vmatprep.subr.mxu0 0.0
    %2342 = vmatpush1.msra.mxu0 0.0
    %2343 = vmatprep.subr.mxu0 0.0
    %2344 = vmatpush1.msra.mxu0 0.0
    %2345 = vmatprep.subr.mxu0 0.0
    %2346 = vmatpush1.msra.mxu0 0.0
    %2347 = vmatprep.subr.mxu0 0.0
    %2348 = vmatpush1.msra.mxu0 0.0
    %2349 = vmatprep.subr.mxu0 0.0
    %2350 = vmatpush1.msra.mxu0 0.0
    %2351 = vmatprep.subr.mxu0 0.0
    %2352 = vmatpush1.msra.mxu0 0.0
    %2353 = vmatprep.subr.mxu0 0.0
    %2354 = vmatpush1.msra.mxu0 0.0
    %2355 = vmatprep.subr.mxu0 0.0
    %2356 = vmatpush1.msra.mxu0 0.0
    %2357 = vmatprep.subr.mxu0 0.0
    %2358 = vmatpush1.msra.mxu0 0.0
    %2359 = vmatprep.subr.mxu0 0.0
    %2360 = vmatpush1.msra.mxu0 0.0
    %2361 = vmatprep.subr.mxu0 0.0
    %2362 = vmatpush1.msra.mxu0 0.0
    %2363 = vmatprep.subr.mxu0 0.0
    %2364 = vmatpush1.msra.mxu0 0.0
    %2365 = vmatprep.subr.mxu0 0.0
    %2366 = vmatpush1.msra.mxu0 0.0
    %2367 = vmatprep.subr.mxu0 0.0
    %2368 = vmatpush1.msra.mxu0 0.0
    %2369 = vmatprep.subr.mxu0 0.0
    %2370 = vmatpush1.msra.mxu0 0.0
    %2371 = vmatprep.subr.mxu0 0.0
    %2372 = vmatpush1.msra.mxu0 0.0
    %2373 = vmatprep.subr.mxu0 0.0
    %2374 = vmatpush1.msra.mxu0 0.0
    %2375 = vmatprep.mubr.f32.mxu0 0.0
    %2376 = vmatmul.mubr.f32.gmra.mrb[0].mxu0 %v2307
    %v2377 = vpop.f32.mrb[0].mxu0
    %v2378 = vadd.f32 0.0, %v2377
    %v2379 = vpop.f32.mrb[0].mxu0
    %2380 = vmatprep.mubr.f32.mxu0 0.0
    %2381 = vmatmul.mubr.f32.gmra.mrb[0].mxu0 %v2309
    %v2382 = vpop.f32.mrb[0].mxu0
    %v2383 = vadd.f32 0.0, %v2382
    %v2384 = vpop.f32.mrb[0].mxu0
    %2385 = vdwg.mxu0
    %v2386 = vadd.f32 %v1978, %v2378
    %v2387 = vadd.f32 %v1983, %v2383
    %v2388 = vxor.u32 %v2386, 2147483648
    %v2389 = vxor.u32 %v2387, 2147483648
    %v2390 = vmul.f32 %v2388, 1.442695
    %v2391 = vpow.pop %v2390
    %v2392 = vmul.f32 %v2389, 1.442695
    %v2393 = vpow.pop %v2392
    %v2394 = vadd.f32 %v2391, 1.0
    %v2395 = vadd.f32 %v2393, 1.0
    %v2396 = vrcp.pop %v2394
    %v2397 = vmul.f32 1.0, %v2396
    %v2398 = vrcp.pop %v2395
    %v2399 = vmul.f32 1.0, %v2398
    %v2400 = vadd.f32 %v2378, %v2256
    %v2401 = vadd.f32 %v2383, %v2256
    %2404 = vrot.lane.b32.xlu0 %v2400, 64
    %v2405 = vpop.permute.xlu0 %2404
    %2406 = vrot.lane.b32.xlu0 %v2401, 64
    %v2407 = vpop.permute.xlu0 %2406
    %v2410 = vmul.f32 %v2397, %v2405
    %v2411 = vmul.f32 %v2399, %v2407
    %2414 = vrot.lane.b32.xlu0 %v2410, 64
    %v2415 = vpop.permute.xlu0 %2414
    %2416 = vrot.lane.b32.xlu0 %v2411, 64
    %v2417 = vpop.permute.xlu0 %2416
    %v2420 = vadd.f32 %v1978, %v2415
    %v2421 = vadd.f32 %v1983, %v2417
    %v2422 = vtanh.pop %v2420
    %v2423 = vtanh.pop %v2421
    %v2424 = vsub.f32 1.0, %v2397
    %v2425 = vsub.f32 1.0, %v2399
    %2428 = vrot.lane.b32.xlu0 %v2422, 96
    %v2429 = vpop.permute.xlu0 %2428
    %2430 = vrot.lane.b32.xlu0 %v2423, 96
    %v2431 = vpop.permute.xlu0 %2430
    %v2434 = vmul.f32 %v2424, %v2429
    %v2435 = vmul.f32 %v2425, %v2431
    %v2436 = vmul.f32 %v2397, %v2299
    %v2437 = vmul.f32 %v2399, %v2300
    %v2438 = vadd.f32 %v2434, %v2436
    %v2439 = vadd.f32 %v2435, %v2437
    %2442 = vrot.lane.b32.xlu0 %v2438, 96
    %v2443 = vpop.permute.xlu0 %2442
    %2444 = vrot.lane.b32.xlu0 %v2439, 96
    %v2445 = vpop.permute.xlu0 %2444
    %v2446 = vsel %vm1852, %v2443, 0
    %v2448 = vsel %vm1852, %v2445, 0
    %2450 = vmatprep.subr.mxu0 0.0
    %2451 = vmatpush1.msra.mxu0 %v2154
    %2452 = vmatprep.subr.mxu0 0.0
    %2453 = vmatpush1.msra.mxu0 %v2155
    %2454 = vmatprep.subr.mxu0 0.0
    %2455 = vmatpush1.msra.mxu0 %v2156
    %2456 = vmatprep.subr.mxu0 0.0
    %2457 = vmatpush1.msra.mxu0 %v2157
    %2458 = vmatprep.subr.mxu0 0.0
    %2459 = vmatpush1.msra.mxu0 0.0
    %2460 = vmatprep.subr.mxu0 0.0
    %2461 = vmatpush1.msra.mxu0 0.0
    %2462 = vmatprep.subr.mxu0 0.0
    %2463 = vmatpush1.msra.mxu0 0.0
    %2464 = vmatprep.subr.mxu0 0.0
    %2465 = vmatpush1.msra.mxu0 0.0
    %2466 = vmatprep.subr.mxu0 0.0
    %2467 = vmatpush1.msra.mxu0 0.0
    %2468 = vmatprep.subr.mxu0 0.0
    %2469 = vmatpush1.msra.mxu0 0.0
    %2470 = vmatprep.subr.mxu0 0.0
    %2471 = vmatpush1.msra.mxu0 0.0
    %2472 = vmatprep.subr.mxu0 0.0
    %2473 = vmatpush1.msra.mxu0 0.0
    %2474 = vmatprep.subr.mxu0 0.0
    %2475 = vmatpush1.msra.mxu0 0.0
    %2476 = vmatprep.subr.mxu0 0.0
    %2477 = vmatpush1.msra.mxu0 0.0
    %2478 = vmatprep.subr.mxu0 0.0
    %2479 = vmatpush1.msra.mxu0 0.0
    %2480 = vmatprep.subr.mxu0 0.0
    %2481 = vmatpush1.msra.mxu0 0.0
    %2482 = vmatprep.subr.mxu0 0.0
    %2483 = vmatpush1.msra.mxu0 0.0
    %2484 = vmatprep.subr.mxu0 0.0
    %2485 = vmatpush1.msra.mxu0 0.0
    %2486 = vmatprep.subr.mxu0 0.0
    %2487 = vmatpush1.msra.mxu0 0.0
    %2488 = vmatprep.subr.mxu0 0.0
    %2489 = vmatpush1.msra.mxu0 0.0
    %2490 = vmatprep.subr.mxu0 0.0
    %2491 = vmatpush1.msra.mxu0 0.0
    %2492 = vmatprep.subr.mxu0 0.0
    %2493 = vmatpush1.msra.mxu0 0.0
    %2494 = vmatprep.subr.mxu0 0.0
    %2495 = vmatpush1.msra.mxu0 0.0
    %2496 = vmatprep.subr.mxu0 0.0
    %2497 = vmatpush1.msra.mxu0 0.0
    %2498 = vmatprep.subr.mxu0 0.0
    %2499 = vmatpush1.msra.mxu0 0.0
    %2500 = vmatprep.subr.mxu0 0.0
    %2501 = vmatpush1.msra.mxu0 0.0
    %2502 = vmatprep.subr.mxu0 0.0
    %2503 = vmatpush1.msra.mxu0 0.0
    %2504 = vmatprep.subr.mxu0 0.0
    %2505 = vmatpush1.msra.mxu0 0.0
    %2506 = vmatprep.subr.mxu0 0.0
    %2507 = vmatpush1.msra.mxu0 0.0
    %2508 = vmatprep.subr.mxu0 0.0
    %2509 = vmatpush1.msra.mxu0 0.0
    %2510 = vmatprep.subr.mxu0 0.0
    %2511 = vmatpush1.msra.mxu0 0.0
    %2512 = vmatprep.subr.mxu0 0.0
    %2513 = vmatpush1.msra.mxu0 0.0
    %2514 = vmatprep.mubr.f32.mxu0 0.0
    %2515 = vmatmul.mubr.f32.gmra.mrb[0].mxu0 %v2446
    %v2516 = vpop.f32.mrb[0].mxu0
    %v2517 = vadd.f32 0.0, %v2516
    %v2518 = vpop.f32.mrb[0].mxu0
    %2519 = vmatprep.mubr.f32.mxu0 0.0
    %2520 = vmatmul.mubr.f32.gmra.mrb[0].mxu0 %v2448
    %v2521 = vpop.f32.mrb[0].mxu0
    %v2522 = vadd.f32 0.0, %v2521
    %v2523 = vpop.f32.mrb[0].mxu0
    %2524 = vdwg.mxu0
    %v2525 = vadd.f32 %v1988, %v2517
    %v2526 = vadd.f32 %v1993, %v2522
    %v2527 = vxor.u32 %v2525, 2147483648
    %v2528 = vxor.u32 %v2526, 2147483648
    %v2529 = vmul.f32 %v2527, 1.442695
    %v2530 = vpow.pop %v2529
    %v2531 = vmul.f32 %v2528, 1.442695
    %v2532 = vpow.pop %v2531
    %v2533 = vadd.f32 %v2530, 1.0
    %v2534 = vadd.f32 %v2532, 1.0
    %v2535 = vrcp.pop %v2533
    %v2536 = vmul.f32 1.0, %v2535
    %v2537 = vrcp.pop %v2534
    %v2538 = vmul.f32 1.0, %v2537
    %v2539 = vadd.f32 %v2517, %v2256
    %v2540 = vadd.f32 %v2522, %v2256
    %2543 = vrot.lane.b32.xlu0 %v2539, 64
    %v2544 = vpop.permute.xlu0 %2543
    %2545 = vrot.lane.b32.xlu0 %v2540, 64
    %v2546 = vpop.permute.xlu0 %2545
    %v2549 = vmul.f32 %v2536, %v2544
    %v2550 = vmul.f32 %v2538, %v2546
    %2553 = vrot.lane.b32.xlu0 %v2549, 64
    %v2554 = vpop.permute.xlu0 %2553
    %2555 = vrot.lane.b32.xlu0 %v2550, 64
    %v2556 = vpop.permute.xlu0 %2555
    %v2559 = vadd.f32 %v1988, %v2554
    %v2560 = vadd.f32 %v1993, %v2556
    %v2561 = vtanh.pop %v2559
    %v2562 = vtanh.pop %v2560
    %v2563 = vsub.f32 1.0, %v2536
    %v2564 = vsub.f32 1.0, %v2538
    %2567 = vrot.lane.b32.xlu0 %v2561, 96
    %v2568 = vpop.permute.xlu0 %2567
    %2569 = vrot.lane.b32.xlu0 %v2562, 96
    %v2570 = vpop.permute.xlu0 %2569
    %v2573 = vmul.f32 %v2563, %v2568
    %v2574 = vmul.f32 %v2564, %v2570
    %v2575 = vmul.f32 %v2536, %v2438
    %v2576 = vmul.f32 %v2538, %v2439
    %v2577 = vadd.f32 %v2573, %v2575
    %v2578 = vadd.f32 %v2574, %v2576
    %2581 = vrot.lane.b32.xlu0 %v2577, 96
    %v2582 = vpop.permute.xlu0 %2581
    %2583 = vrot.lane.b32.xlu0 %v2578, 96
    %v2584 = vpop.permute.xlu0 %2583
    %v2585 = vsel %vm1852, %v2582, 0
    %v2587 = vsel %vm1852, %v2584, 0
    %2589 = vmatprep.subr.mxu0 0.0
    %2590 = vmatpush1.msra.mxu0 %v2154
    %2591 = vmatprep.subr.mxu0 0.0
    %2592 = vmatpush1.msra.mxu0 %v2155
    %2593 = vmatprep.subr.mxu0 0.0
    %2594 = vmatpush1.msra.mxu0 %v2156
    %2595 = vmatprep.subr.mxu0 0.0
    %2596 = vmatpush1.msra.mxu0 %v2157
    %2597 = vmatprep.subr.mxu0 0.0
    %2598 = vmatpush1.msra.mxu0 0.0
    %2599 = vmatprep.subr.mxu0 0.0
    %2600 = vmatpush1.msra.mxu0 0.0
    %2601 = vmatprep.subr.mxu0 0.0
    %2602 = vmatpush1.msra.mxu0 0.0
    %2603 = vmatprep.subr.mxu0 0.0
    %2604 = vmatpush1.msra.mxu0 0.0
    %2605 = vmatprep.subr.mxu0 0.0
    %2606 = vmatpush1.msra.mxu0 0.0
    %2607 = vmatprep.subr.mxu0 0.0
    %2608 = vmatpush1.msra.mxu0 0.0
    %2609 = vmatprep.subr.mxu0 0.0
    %2610 = vmatpush1.msra.mxu0 0.0
    %2611 = vmatprep.subr.mxu0 0.0
    %2612 = vmatpush1.msra.mxu0 0.0
    %2613 = vmatprep.subr.mxu0 0.0
    %2614 = vmatpush1.msra.mxu0 0.0
    %2615 = vmatprep.subr.mxu0 0.0
    %2616 = vmatpush1.msra.mxu0 0.0
    %2617 = vmatprep.subr.mxu0 0.0
    %2618 = vmatpush1.msra.mxu0 0.0
    %2619 = vmatprep.subr.mxu0 0.0
    %2620 = vmatpush1.msra.mxu0 0.0
    %2621 = vmatprep.subr.mxu0 0.0
    %2622 = vmatpush1.msra.mxu0 0.0
    %2623 = vmatprep.subr.mxu0 0.0
    %2624 = vmatpush1.msra.mxu0 0.0
    %2625 = vmatprep.subr.mxu0 0.0
    %2626 = vmatpush1.msra.mxu0 0.0
    %2627 = vmatprep.subr.mxu0 0.0
    %2628 = vmatpush1.msra.mxu0 0.0
    %2629 = vmatprep.subr.mxu0 0.0
    %2630 = vmatpush1.msra.mxu0 0.0
    %2631 = vmatprep.subr.mxu0 0.0
    %2632 = vmatpush1.msra.mxu0 0.0
    %2633 = vmatprep.subr.mxu0 0.0
    %2634 = vmatpush1.msra.mxu0 0.0
    %2635 = vmatprep.subr.mxu0 0.0
    %2636 = vmatpush1.msra.mxu0 0.0
    %2637 = vmatprep.subr.mxu0 0.0
    %2638 = vmatpush1.msra.mxu0 0.0
    %2639 = vmatprep.subr.mxu0 0.0
    %2640 = vmatpush1.msra.mxu0 0.0
    %2641 = vmatprep.subr.mxu0 0.0
    %2642 = vmatpush1.msra.mxu0 0.0
    %2643 = vmatprep.subr.mxu0 0.0
    %2644 = vmatpush1.msra.mxu0 0.0
    %2645 = vmatprep.subr.mxu0 0.0
    %2646 = vmatpush1.msra.mxu0 0.0
    %2647 = vmatprep.subr.mxu0 0.0
    %2648 = vmatpush1.msra.mxu0 0.0
    %2649 = vmatprep.subr.mxu0 0.0
    %2650 = vmatpush1.msra.mxu0 0.0
    %2651 = vmatprep.subr.mxu0 0.0
    %2652 = vmatpush1.msra.mxu0 0.0
    %2653 = vmatprep.mubr.f32.mxu0 0.0
    %2654 = vmatmul.mubr.f32.gmra.mrb[0].mxu0 %v2585
    %v2655 = vpop.f32.mrb[0].mxu0
    %v2656 = vadd.f32 0.0, %v2655
    %v2657 = vpop.f32.mrb[0].mxu0
    %2658 = vmatprep.mubr.f32.mxu0 0.0
    %2659 = vmatmul.mubr.f32.gmra.mrb[0].mxu0 %v2587
    %v2660 = vpop.f32.mrb[0].mxu0
    %v2661 = vadd.f32 0.0, %v2660
    %v2662 = vpop.f32.mrb[0].mxu0
    %2663 = vdwg.mxu0
    %v2664 = vadd.f32 %v1998, %v2656
    %v2665 = vadd.f32 %v2003, %v2661
    %v2666 = vxor.u32 %v2664, 2147483648
    %v2667 = vxor.u32 %v2665, 2147483648
    %v2668 = vmul.f32 %v2666, 1.442695
    %v2669 = vpow.pop %v2668
    %v2670 = vmul.f32 %v2667, 1.442695
    %v2671 = vpow.pop %v2670
    %v2672 = vadd.f32 %v2669, 1.0
    %v2673 = vadd.f32 %v2671, 1.0
    %v2674 = vrcp.pop %v2672
    %v2675 = vmul.f32 1.0, %v2674
    %v2676 = vrcp.pop %v2673
    %v2677 = vmul.f32 1.0, %v2676
    %v2678 = vadd.f32 %v2656, %v2256
    %v2679 = vadd.f32 %v2661, %v2256
    %2682 = vrot.lane.b32.xlu0 %v2678, 64
    %v2683 = vpop.permute.xlu0 %2682
    %2684 = vrot.lane.b32.xlu0 %v2679, 64
    %v2685 = vpop.permute.xlu0 %2684
    %v2688 = vmul.f32 %v2675, %v2683
    %v2689 = vmul.f32 %v2677, %v2685
    %2692 = vrot.lane.b32.xlu0 %v2688, 64
    %v2693 = vpop.permute.xlu0 %2692
    %2694 = vrot.lane.b32.xlu0 %v2689, 64
    %v2695 = vpop.permute.xlu0 %2694
    %v2698 = vadd.f32 %v1998, %v2693
    %v2699 = vadd.f32 %v2003, %v2695
    %v2700 = vtanh.pop %v2698
    %v2701 = vtanh.pop %v2699
    %v2702 = vsub.f32 1.0, %v2675
    %v2703 = vsub.f32 1.0, %v2677
    %2706 = vrot.lane.b32.xlu0 %v2700, 96
    %v2707 = vpop.permute.xlu0 %2706
    %2708 = vrot.lane.b32.xlu0 %v2701, 96
    %v2709 = vpop.permute.xlu0 %2708
    %v2712 = vmul.f32 %v2702, %v2707
    %v2713 = vmul.f32 %v2703, %v2709
    %v2714 = vmul.f32 %v2675, %v2577
    %v2715 = vmul.f32 %v2677, %v2578
    %v2716 = vadd.f32 %v2712, %v2714
    %v2717 = vadd.f32 %v2713, %v2715
    %2720 = vrot.lane.b32.xlu0 %v2716, 96
    %v2721 = vpop.permute.xlu0 %2720
    %2722 = vrot.lane.b32.xlu0 %v2717, 96
    %v2723 = vpop.permute.xlu0 %2722
    %v2724 = vsel %vm1852, %v2721, 0
    %v2726 = vsel %vm1852, %v2723, 0
    %2728 = vmatprep.subr.mxu0 0.0
    %2729 = vmatpush1.msra.mxu0 %v2154
    %2730 = vmatprep.subr.mxu0 0.0
    %2731 = vmatpush1.msra.mxu0 %v2155
    %2732 = vmatprep.subr.mxu0 0.0
    %2733 = vmatpush1.msra.mxu0 %v2156
    %2734 = vmatprep.subr.mxu0 0.0
    %2735 = vmatpush1.msra.mxu0 %v2157
    %2736 = vmatprep.subr.mxu0 0.0
    %2737 = vmatpush1.msra.mxu0 0.0
    %2738 = vmatprep.subr.mxu0 0.0
    %2739 = vmatpush1.msra.mxu0 0.0
    %2740 = vmatprep.subr.mxu0 0.0
    %2741 = vmatpush1.msra.mxu0 0.0
    %2742 = vmatprep.subr.mxu0 0.0
    %2743 = vmatpush1.msra.mxu0 0.0
    %2744 = vmatprep.subr.mxu0 0.0
    %2745 = vmatpush1.msra.mxu0 0.0
    %2746 = vmatprep.subr.mxu0 0.0
    %2747 = vmatpush1.msra.mxu0 0.0
    %2748 = vmatprep.subr.mxu0 0.0
    %2749 = vmatpush1.msra.mxu0 0.0
    %2750 = vmatprep.subr.mxu0 0.0
    %2751 = vmatpush1.msra.mxu0 0.0
    %2752 = vmatprep.subr.mxu0 0.0
    %2753 = vmatpush1.msra.mxu0 0.0
    %2754 = vmatprep.subr.mxu0 0.0
    %2755 = vmatpush1.msra.mxu0 0.0
    %2756 = vmatprep.subr.mxu0 0.0
    %2757 = vmatpush1.msra.mxu0 0.0
    %2758 = vmatprep.subr.mxu0 0.0
    %2759 = vmatpush1.msra.mxu0 0.0
    %2760 = vmatprep.subr.mxu0 0.0
    %2761 = vmatpush1.msra.mxu0 0.0
    %2762 = vmatprep.subr.mxu0 0.0
    %2763 = vmatpush1.msra.mxu0 0.0
    %2764 = vmatprep.subr.mxu0 0.0
    %2765 = vmatpush1.msra.mxu0 0.0
    %2766 = vmatprep.subr.mxu0 0.0
    %2767 = vmatpush1.msra.mxu0 0.0
    %2768 = vmatprep.subr.mxu0 0.0
    %2769 = vmatpush1.msra.mxu0 0.0
    %2770 = vmatprep.subr.mxu0 0.0
    %2771 = vmatpush1.msra.mxu0 0.0
    %2772 = vmatprep.subr.mxu0 0.0
    %2773 = vmatpush1.msra.mxu0 0.0
    %2774 = vmatprep.subr.mxu0 0.0
    %2775 = vmatpush1.msra.mxu0 0.0
    %2776 = vmatprep.subr.mxu0 0.0
    %2777 = vmatpush1.msra.mxu0 0.0
    %2778 = vmatprep.subr.mxu0 0.0
    %2779 = vmatpush1.msra.mxu0 0.0
    %2780 = vmatprep.subr.mxu0 0.0
    %2781 = vmatpush1.msra.mxu0 0.0
    %2782 = vmatprep.subr.mxu0 0.0
    %2783 = vmatpush1.msra.mxu0 0.0
    %2784 = vmatprep.subr.mxu0 0.0
    %2785 = vmatpush1.msra.mxu0 0.0
    %2786 = vmatprep.subr.mxu0 0.0
    %2787 = vmatpush1.msra.mxu0 0.0
    %2788 = vmatprep.subr.mxu0 0.0
    %2789 = vmatpush1.msra.mxu0 0.0
    %2790 = vmatprep.subr.mxu0 0.0
    %2791 = vmatpush1.msra.mxu0 0.0
    %2792 = vmatprep.mubr.f32.mxu0 0.0
    %2793 = vmatmul.mubr.f32.gmra.mrb[0].mxu0 %v2724
    %v2794 = vpop.f32.mrb[0].mxu0
    %v2795 = vadd.f32 0.0, %v2794
    %v2796 = vpop.f32.mrb[0].mxu0
    %2797 = vmatprep.mubr.f32.mxu0 0.0
    %2798 = vmatmul.mubr.f32.gmra.mrb[0].mxu0 %v2726
    %v2799 = vpop.f32.mrb[0].mxu0
    %v2800 = vadd.f32 0.0, %v2799
    %v2801 = vpop.f32.mrb[0].mxu0
    %2802 = vdwg.mxu0
    %v2803 = vadd.f32 %v2008, %v2795
    %v2804 = vadd.f32 %v2013, %v2800
    %v2805 = vxor.u32 %v2803, 2147483648
    %v2806 = vxor.u32 %v2804, 2147483648
    %v2807 = vmul.f32 %v2805, 1.442695
    %v2808 = vpow.pop %v2807
    %v2809 = vmul.f32 %v2806, 1.442695
    %v2810 = vpow.pop %v2809
    %v2811 = vadd.f32 %v2808, 1.0
    %v2812 = vadd.f32 %v2810, 1.0
    %v2813 = vrcp.pop %v2811
    %v2814 = vmul.f32 1.0, %v2813
    %v2815 = vrcp.pop %v2812
    %v2816 = vmul.f32 1.0, %v2815
    %v2817 = vadd.f32 %v2795, %v2256
    %v2818 = vadd.f32 %v2800, %v2256
    %2821 = vrot.lane.b32.xlu0 %v2817, 64
    %v2822 = vpop.permute.xlu0 %2821
    %2823 = vrot.lane.b32.xlu0 %v2818, 64
    %v2824 = vpop.permute.xlu0 %2823
    %v2827 = vmul.f32 %v2814, %v2822
    %v2828 = vmul.f32 %v2816, %v2824
    %2831 = vrot.lane.b32.xlu0 %v2827, 64
    %v2832 = vpop.permute.xlu0 %2831
    %2833 = vrot.lane.b32.xlu0 %v2828, 64
    %v2834 = vpop.permute.xlu0 %2833
    %v2837 = vadd.f32 %v2008, %v2832
    %v2838 = vadd.f32 %v2013, %v2834
    %v2839 = vtanh.pop %v2837
    %v2840 = vtanh.pop %v2838
    %v2841 = vsub.f32 1.0, %v2814
    %v2842 = vsub.f32 1.0, %v2816
    %2845 = vrot.lane.b32.xlu0 %v2839, 96
    %v2846 = vpop.permute.xlu0 %2845
    %2847 = vrot.lane.b32.xlu0 %v2840, 96
    %v2848 = vpop.permute.xlu0 %2847
    %v2851 = vmul.f32 %v2841, %v2846
    %v2852 = vmul.f32 %v2842, %v2848
    %v2853 = vmul.f32 %v2814, %v2716
    %v2854 = vmul.f32 %v2816, %v2717
    %v2855 = vadd.f32 %v2851, %v2853
    %v2856 = vadd.f32 %v2852, %v2854
    %2859 = vrot.lane.b32.xlu0 %v2855, 96
    %v2860 = vpop.permute.xlu0 %2859
    %2861 = vrot.lane.b32.xlu0 %v2856, 96
    %v2862 = vpop.permute.xlu0 %2861
    %v2863 = vsel %vm1852, %v2860, 0
    %v2865 = vsel %vm1852, %v2862, 0
    %2867 = vmatprep.subr.mxu0 0.0
    %2868 = vmatpush1.msra.mxu0 %v2154
    %2869 = vmatprep.subr.mxu0 0.0
    %2870 = vmatpush1.msra.mxu0 %v2155
    %2871 = vmatprep.subr.mxu0 0.0
    %2872 = vmatpush1.msra.mxu0 %v2156
    %2873 = vmatprep.subr.mxu0 0.0
    %2874 = vmatpush1.msra.mxu0 %v2157
    %2875 = vmatprep.subr.mxu0 0.0
    %2876 = vmatpush1.msra.mxu0 0.0
    %2877 = vmatprep.subr.mxu0 0.0
    %2878 = vmatpush1.msra.mxu0 0.0
    %2879 = vmatprep.subr.mxu0 0.0
    %2880 = vmatpush1.msra.mxu0 0.0
    %2881 = vmatprep.subr.mxu0 0.0
    %2882 = vmatpush1.msra.mxu0 0.0
    %2883 = vmatprep.subr.mxu0 0.0
    %2884 = vmatpush1.msra.mxu0 0.0
    %2885 = vmatprep.subr.mxu0 0.0
    %2886 = vmatpush1.msra.mxu0 0.0
    %2887 = vmatprep.subr.mxu0 0.0
    %2888 = vmatpush1.msra.mxu0 0.0
    %2889 = vmatprep.subr.mxu0 0.0
    %2890 = vmatpush1.msra.mxu0 0.0
    %2891 = vmatprep.subr.mxu0 0.0
    %2892 = vmatpush1.msra.mxu0 0.0
    %2893 = vmatprep.subr.mxu0 0.0
    %2894 = vmatpush1.msra.mxu0 0.0
    %2895 = vmatprep.subr.mxu0 0.0
    %2896 = vmatpush1.msra.mxu0 0.0
    %2897 = vmatprep.subr.mxu0 0.0
    %2898 = vmatpush1.msra.mxu0 0.0
    %2899 = vmatprep.subr.mxu0 0.0
    %2900 = vmatpush1.msra.mxu0 0.0
    %2901 = vmatprep.subr.mxu0 0.0
    %2902 = vmatpush1.msra.mxu0 0.0
    %2903 = vmatprep.subr.mxu0 0.0
    %2904 = vmatpush1.msra.mxu0 0.0
    %2905 = vmatprep.subr.mxu0 0.0
    %2906 = vmatpush1.msra.mxu0 0.0
    %2907 = vmatprep.subr.mxu0 0.0
    %2908 = vmatpush1.msra.mxu0 0.0
    %2909 = vmatprep.subr.mxu0 0.0
    %2910 = vmatpush1.msra.mxu0 0.0
    %2911 = vmatprep.subr.mxu0 0.0
    %2912 = vmatpush1.msra.mxu0 0.0
    %2913 = vmatprep.subr.mxu0 0.0
    %2914 = vmatpush1.msra.mxu0 0.0
    %2915 = vmatprep.subr.mxu0 0.0
    %2916 = vmatpush1.msra.mxu0 0.0
    %2917 = vmatprep.subr.mxu0 0.0
    %2918 = vmatpush1.msra.mxu0 0.0
    %2919 = vmatprep.subr.mxu0 0.0
    %2920 = vmatpush1.msra.mxu0 0.0
    %2921 = vmatprep.subr.mxu0 0.0
    %2922 = vmatpush1.msra.mxu0 0.0
    %2923 = vmatprep.subr.mxu0 0.0
    %2924 = vmatpush1.msra.mxu0 0.0
    %2925 = vmatprep.subr.mxu0 0.0
    %2926 = vmatpush1.msra.mxu0 0.0
    %2927 = vmatprep.subr.mxu0 0.0
    %2928 = vmatpush1.msra.mxu0 0.0
    %2929 = vmatprep.subr.mxu0 0.0
    %2930 = vmatpush1.msra.mxu0 0.0
    %2931 = vmatprep.mubr.f32.mxu0 0.0
    %2932 = vmatmul.mubr.f32.gmra.mrb[0].mxu0 %v2863
    %v2933 = vpop.f32.mrb[0].mxu0
    %v2934 = vadd.f32 0.0, %v2933
    %v2935 = vpop.f32.mrb[0].mxu0
    %2936 = vmatprep.mubr.f32.mxu0 0.0
    %2937 = vmatmul.mubr.f32.gmra.mrb[0].mxu0 %v2865
    %v2938 = vpop.f32.mrb[0].mxu0
    %v2939 = vadd.f32 0.0, %v2938
    %v2940 = vpop.f32.mrb[0].mxu0
    %2941 = vdwg.mxu0
    %v2942 = vadd.f32 %v2018, %v2934
    %v2943 = vadd.f32 %v2023, %v2939
    %v2944 = vxor.u32 %v2942, 2147483648
    %v2945 = vxor.u32 %v2943, 2147483648
    %v2946 = vmul.f32 %v2944, 1.442695
    %v2947 = vpow.pop %v2946
    %v2948 = vmul.f32 %v2945, 1.442695
    %v2949 = vpow.pop %v2948
    %v2950 = vadd.f32 %v2947, 1.0
    %v2951 = vadd.f32 %v2949, 1.0
    %v2952 = vrcp.pop %v2950
    %v2953 = vmul.f32 1.0, %v2952
    %v2954 = vrcp.pop %v2951
    %v2955 = vmul.f32 1.0, %v2954
    %v2956 = vadd.f32 %v2934, %v2256
    %v2957 = vadd.f32 %v2939, %v2256
    %2960 = vrot.lane.b32.xlu0 %v2956, 64
    %v2961 = vpop.permute.xlu0 %2960
    %2962 = vrot.lane.b32.xlu0 %v2957, 64
    %v2963 = vpop.permute.xlu0 %2962
    %v2966 = vmul.f32 %v2953, %v2961
    %v2967 = vmul.f32 %v2955, %v2963
    %2970 = vrot.lane.b32.xlu0 %v2966, 64
    %v2971 = vpop.permute.xlu0 %2970
    %2972 = vrot.lane.b32.xlu0 %v2967, 64
    %v2973 = vpop.permute.xlu0 %2972
    %v2976 = vadd.f32 %v2018, %v2971
    %v2977 = vadd.f32 %v2023, %v2973
    %v2978 = vtanh.pop %v2976
    %v2979 = vtanh.pop %v2977
    %v2980 = vsub.f32 1.0, %v2953
    %v2981 = vsub.f32 1.0, %v2955
    %2984 = vrot.lane.b32.xlu0 %v2978, 96
    %v2985 = vpop.permute.xlu0 %2984
    %2986 = vrot.lane.b32.xlu0 %v2979, 96
    %v2987 = vpop.permute.xlu0 %2986
    %v2990 = vmul.f32 %v2980, %v2985
    %v2991 = vmul.f32 %v2981, %v2987
    %v2992 = vmul.f32 %v2953, %v2855
    %v2993 = vmul.f32 %v2955, %v2856
    %v2994 = vadd.f32 %v2990, %v2992
    %v2995 = vadd.f32 %v2991, %v2993
    %2998 = vrot.lane.b32.xlu0 %v2994, 96
    %v2999 = vpop.permute.xlu0 %2998
    %3000 = vrot.lane.b32.xlu0 %v2995, 96
    %v3001 = vpop.permute.xlu0 %3000
    %v3002 = vsel %vm1852, %v2999, 0
    %v3004 = vsel %vm1852, %v3001, 0
    %3006 = vmatprep.subr.mxu0 0.0
    %3007 = vmatpush1.msra.mxu0 %v2154
    %3008 = vmatprep.subr.mxu0 0.0
    %3009 = vmatpush1.msra.mxu0 %v2155
    %3010 = vmatprep.subr.mxu0 0.0
    %3011 = vmatpush1.msra.mxu0 %v2156
    %3012 = vmatprep.subr.mxu0 0.0
    %3013 = vmatpush1.msra.mxu0 %v2157
    %3014 = vmatprep.subr.mxu0 0.0
    %3015 = vmatpush1.msra.mxu0 0.0
    %3016 = vmatprep.subr.mxu0 0.0
    %3017 = vmatpush1.msra.mxu0 0.0
    %3018 = vmatprep.subr.mxu0 0.0
    %3019 = vmatpush1.msra.mxu0 0.0
    %3020 = vmatprep.subr.mxu0 0.0
    %3021 = vmatpush1.msra.mxu0 0.0
    %3022 = vmatprep.subr.mxu0 0.0
    %3023 = vmatpush1.msra.mxu0 0.0
    %3024 = vmatprep.subr.mxu0 0.0
    %3025 = vmatpush1.msra.mxu0 0.0
    %3026 = vmatprep.subr.mxu0 0.0
    %3027 = vmatpush1.msra.mxu0 0.0
    %3028 = vmatprep.subr.mxu0 0.0
    %3029 = vmatpush1.msra.mxu0 0.0
    %3030 = vmatprep.subr.mxu0 0.0
    %3031 = vmatpush1.msra.mxu0 0.0
    %3032 = vmatprep.subr.mxu0 0.0
    %3033 = vmatpush1.msra.mxu0 0.0
    %3034 = vmatprep.subr.mxu0 0.0
    %3035 = vmatpush1.msra.mxu0 0.0
    %3036 = vmatprep.subr.mxu0 0.0
    %3037 = vmatpush1.msra.mxu0 0.0
    %3038 = vmatprep.subr.mxu0 0.0
    %3039 = vmatpush1.msra.mxu0 0.0
    %3040 = vmatprep.subr.mxu0 0.0
    %3041 = vmatpush1.msra.mxu0 0.0
    %3042 = vmatprep.subr.mxu0 0.0
    %3043 = vmatpush1.msra.mxu0 0.0
    %3044 = vmatprep.subr.mxu0 0.0
    %3045 = vmatpush1.msra.mxu0 0.0
    %3046 = vmatprep.subr.mxu0 0.0
    %3047 = vmatpush1.msra.mxu0 0.0
    %3048 = vmatprep.subr.mxu0 0.0
    %3049 = vmatpush1.msra.mxu0 0.0
    %3050 = vmatprep.subr.mxu0 0.0
    %3051 = vmatpush1.msra.mxu0 0.0
    %3052 = vmatprep.subr.mxu0 0.0
    %3053 = vmatpush1.msra.mxu0 0.0
    %3054 = vmatprep.subr.mxu0 0.0
    %3055 = vmatpush1.msra.mxu0 0.0
    %3056 = vmatprep.subr.mxu0 0.0
    %3057 = vmatpush1.msra.mxu0 0.0
    %3058 = vmatprep.subr.mxu0 0.0
    %3059 = vmatpush1.msra.mxu0 0.0
    %3060 = vmatprep.subr.mxu0 0.0
    %3061 = vmatpush1.msra.mxu0 0.0
    %3062 = vmatprep.subr.mxu0 0.0
    %3063 = vmatpush1.msra.mxu0 0.0
    %3064 = vmatprep.subr.mxu0 0.0
    %3065 = vmatpush1.msra.mxu0 0.0
    %3066 = vmatprep.subr.mxu0 0.0
    %3067 = vmatpush1.msra.mxu0 0.0
    %3068 = vmatprep.subr.mxu0 0.0
    %3069 = vmatpush1.msra.mxu0 0.0
    %3070 = vmatprep.mubr.f32.mxu0 0.0
    %3071 = vmatmul.mubr.f32.gmra.mrb[0].mxu0 %v3002
    %v3072 = vpop.f32.mrb[0].mxu0
    %v3073 = vadd.f32 0.0, %v3072
    %v3074 = vpop.f32.mrb[0].mxu0
    %3075 = vmatprep.mubr.f32.mxu0 0.0
    %3076 = vmatmul.mubr.f32.gmra.mrb[0].mxu0 %v3004
    %v3077 = vpop.f32.mrb[0].mxu0
    %v3078 = vadd.f32 0.0, %v3077
    %v3079 = vpop.f32.mrb[0].mxu0
    %3080 = vdwg.mxu0
    %v3081 = vadd.f32 %v2028, %v3073
    %v3082 = vadd.f32 %v2033, %v3078
    %v3083 = vxor.u32 %v3081, 2147483648
    %v3084 = vxor.u32 %v3082, 2147483648
    %v3085 = vmul.f32 %v3083, 1.442695
    %v3086 = vpow.pop %v3085
    %v3087 = vmul.f32 %v3084, 1.442695
    %v3088 = vpow.pop %v3087
    %v3089 = vadd.f32 %v3086, 1.0
    %v3090 = vadd.f32 %v3088, 1.0
    %v3091 = vrcp.pop %v3089
    %v3092 = vmul.f32 1.0, %v3091
    %v3093 = vrcp.pop %v3090
    %v3094 = vmul.f32 1.0, %v3093
    %v3095 = vadd.f32 %v3073, %v2256
    %v3096 = vadd.f32 %v3078, %v2256
    %3099 = vrot.lane.b32.xlu0 %v3095, 64
    %v3100 = vpop.permute.xlu0 %3099
    %3101 = vrot.lane.b32.xlu0 %v3096, 64
    %v3102 = vpop.permute.xlu0 %3101
    %v3105 = vmul.f32 %v3092, %v3100
    %v3106 = vmul.f32 %v3094, %v3102
    %3109 = vrot.lane.b32.xlu0 %v3105, 64
    %v3110 = vpop.permute.xlu0 %3109
    %3111 = vrot.lane.b32.xlu0 %v3106, 64
    %v3112 = vpop.permute.xlu0 %3111
    %v3115 = vadd.f32 %v2028, %v3110
    %v3116 = vadd.f32 %v2033, %v3112
    %v3117 = vtanh.pop %v3115
    %v3118 = vtanh.pop %v3116
    %v3119 = vsub.f32 1.0, %v3092
    %v3120 = vsub.f32 1.0, %v3094
    %3123 = vrot.lane.b32.xlu0 %v3117, 96
    %v3124 = vpop.permute.xlu0 %3123
    %3125 = vrot.lane.b32.xlu0 %v3118, 96
    %v3126 = vpop.permute.xlu0 %3125
    %v3129 = vmul.f32 %v3119, %v3124
    %v3130 = vmul.f32 %v3120, %v3126
    %v3131 = vmul.f32 %v3092, %v2994
    %v3132 = vmul.f32 %v3094, %v2995
    %v3133 = vadd.f32 %v3129, %v3131
    %v3134 = vadd.f32 %v3130, %v3132
    %3137 = vrot.lane.b32.xlu0 %v3133, 96
    %v3138 = vpop.permute.xlu0 %3137
    %3139 = vrot.lane.b32.xlu0 %v3134, 96
    %v3140 = vpop.permute.xlu0 %3139
    %v3141 = vsel %vm1852, %v3138, 0
    %v3143 = vsel %vm1852, %v3140, 0
    %3145 = vmatprep.subr.mxu0 0.0
    %3146 = vmatpush1.msra.mxu0 %v2154
    %3147 = vmatprep.subr.mxu0 0.0
    %3148 = vmatpush1.msra.mxu0 %v2155
    %3149 = vmatprep.subr.mxu0 0.0
    %3150 = vmatpush1.msra.mxu0 %v2156
    %3151 = vmatprep.subr.mxu0 0.0
    %3152 = vmatpush1.msra.mxu0 %v2157
    %3153 = vmatprep.subr.mxu0 0.0
    %3154 = vmatpush1.msra.mxu0 0.0
    %3155 = vmatprep.subr.mxu0 0.0
    %3156 = vmatpush1.msra.mxu0 0.0
    %3157 = vmatprep.subr.mxu0 0.0
    %3158 = vmatpush1.msra.mxu0 0.0
    %3159 = vmatprep.subr.mxu0 0.0
    %3160 = vmatpush1.msra.mxu0 0.0
    %3161 = vmatprep.subr.mxu0 0.0
    %3162 = vmatpush1.msra.mxu0 0.0
    %3163 = vmatprep.subr.mxu0 0.0
    %3164 = vmatpush1.msra.mxu0 0.0
    %3165 = vmatprep.subr.mxu0 0.0
    %3166 = vmatpush1.msra.mxu0 0.0
    %3167 = vmatprep.subr.mxu0 0.0
    %3168 = vmatpush1.msra.mxu0 0.0
    %3169 = vmatprep.subr.mxu0 0.0
    %3170 = vmatpush1.msra.mxu0 0.0
    %3171 = vmatprep.subr.mxu0 0.0
    %3172 = vmatpush1.msra.mxu0 0.0
    %3173 = vmatprep.subr.mxu0 0.0
    %3174 = vmatpush1.msra.mxu0 0.0
    %3175 = vmatprep.subr.mxu0 0.0
    %3176 = vmatpush1.msra.mxu0 0.0
    %3177 = vmatprep.subr.mxu0 0.0
    %3178 = vmatpush1.msra.mxu0 0.0
    %3179 = vmatprep.subr.mxu0 0.0
    %3180 = vmatpush1.msra.mxu0 0.0
    %3181 = vmatprep.subr.mxu0 0.0
    %3182 = vmatpush1.msra.mxu0 0.0
    %3183 = vmatprep.subr.mxu0 0.0
    %3184 = vmatpush1.msra.mxu0 0.0
    %3185 = vmatprep.subr.mxu0 0.0
    %3186 = vmatpush1.msra.mxu0 0.0
    %3187 = vmatprep.subr.mxu0 0.0
    %3188 = vmatpush1.msra.mxu0 0.0
    %3189 = vmatprep.subr.mxu0 0.0
    %3190 = vmatpush1.msra.mxu0 0.0
    %3191 = vmatprep.subr.mxu0 0.0
    %3192 = vmatpush1.msra.mxu0 0.0
    %3193 = vmatprep.subr.mxu0 0.0
    %3194 = vmatpush1.msra.mxu0 0.0
    %3195 = vmatprep.subr.mxu0 0.0
    %3196 = vmatpush1.msra.mxu0 0.0
    %3197 = vmatprep.subr.mxu0 0.0
    %3198 = vmatpush1.msra.mxu0 0.0
    %3199 = vmatprep.subr.mxu0 0.0
    %3200 = vmatpush1.msra.mxu0 0.0
    %3201 = vmatprep.subr.mxu0 0.0
    %3202 = vmatpush1.msra.mxu0 0.0
    %3203 = vmatprep.subr.mxu0 0.0
    %3204 = vmatpush1.msra.mxu0 0.0
    %3205 = vmatprep.subr.mxu0 0.0
    %3206 = vmatpush1.msra.mxu0 0.0
    %3207 = vmatprep.subr.mxu0 0.0
    %3208 = vmatpush1.msra.mxu0 0.0
    %3209 = vmatprep.mubr.f32.mxu0 0.0
    %3210 = vmatmul.mubr.f32.gmra.mrb[0].mxu0 %v3141
    %v3211 = vpop.f32.mrb[0].mxu0
    %v3212 = vadd.f32 0.0, %v3211
    %v3213 = vpop.f32.mrb[0].mxu0
    %3214 = vmatprep.mubr.f32.mxu0 0.0
    %3215 = vmatmul.mubr.f32.gmra.mrb[0].mxu0 %v3143
    %v3216 = vpop.f32.mrb[0].mxu0
    %v3217 = vadd.f32 0.0, %v3216
    %v3218 = vpop.f32.mrb[0].mxu0
    %3219 = vdwg.mxu0
    %v3220 = vadd.f32 %v2038, %v3212
    %v3221 = vadd.f32 %v2043, %v3217
    %v3222 = vxor.u32 %v3220, 2147483648
    %v3223 = vxor.u32 %v3221, 2147483648
    %v3224 = vmul.f32 %v3222, 1.442695
    %v3225 = vpow.pop %v3224
    %v3226 = vmul.f32 %v3223, 1.442695
    %v3227 = vpow.pop %v3226
    %v3228 = vadd.f32 %v3225, 1.0
    %v3229 = vadd.f32 %v3227, 1.0
    %v3230 = vrcp.pop %v3228
    %v3231 = vmul.f32 1.0, %v3230
    %v3232 = vrcp.pop %v3229
    %v3233 = vmul.f32 1.0, %v3232
    %v3234 = vadd.f32 %v3212, %v2256
    %v3235 = vadd.f32 %v3217, %v2256
    %3238 = vrot.lane.b32.xlu0 %v3234, 64
    %v3239 = vpop.permute.xlu0 %3238
    %3240 = vrot.lane.b32.xlu0 %v3235, 64
    %v3241 = vpop.permute.xlu0 %3240
    %v3244 = vmul.f32 %v3231, %v3239
    %v3245 = vmul.f32 %v3233, %v3241
    %3248 = vrot.lane.b32.xlu0 %v3244, 64
    %v3249 = vpop.permute.xlu0 %3248
    %3250 = vrot.lane.b32.xlu0 %v3245, 64
    %v3251 = vpop.permute.xlu0 %3250
    %v3254 = vadd.f32 %v2038, %v3249
    %v3255 = vadd.f32 %v2043, %v3251
    %v3256 = vtanh.pop %v3254
    %v3257 = vtanh.pop %v3255
    %v3258 = vsub.f32 1.0, %v3231
    %v3259 = vsub.f32 1.0, %v3233
    %3262 = vrot.lane.b32.xlu0 %v3256, 96
    %v3263 = vpop.permute.xlu0 %3262
    %3264 = vrot.lane.b32.xlu0 %v3257, 96
    %v3265 = vpop.permute.xlu0 %3264
    %v3268 = vmul.f32 %v3258, %v3263
    %v3269 = vmul.f32 %v3259, %v3265
    %v3270 = vmul.f32 %v3231, %v3133
    %v3271 = vmul.f32 %v3233, %v3134
    %v3272 = vadd.f32 %v3268, %v3270
    %v3273 = vadd.f32 %v3269, %v3271
    %v3274 = vld [vmem:[%s7] sm:$0xff]
    %v3275 = vld [vmem:[%s7 + $0x8] sm:$0xff]
    %v3276 = vld [vmem:[%s8] sm:$0xff]
    %v3277 = vld [vmem:[%s8 + $0x8] sm:$0xff]
    %v3278 = vld [vmem:[%s8 + $0x10] sm:$0xff]
    %v3279 = vld [vmem:[%s8 + $0x18] sm:$0xff]
    %v3280 = vld [vmem:[%s9] sm:$0x1]
    %3283 = vrot.lane.b32.xlu0 %v3272, 96
    %v3284 = vpop.permute.xlu0 %3283
    %3285 = vrot.lane.b32.xlu0 %v3273, 96
    %v3286 = vpop.permute.xlu0 %3285
    %v3287 = vsel %vm1852, %v3284, 0
    %v3289 = vsel %vm1852, %v3286, 0
    %3291 = vmatprep.subr.mxu0 0.0
    %3292 = vmatpush1.msra.mxu0 %v3276
    %3293 = vmatprep.subr.mxu0 0.0
    %3294 = vmatpush1.msra.mxu0 %v3277
    %3295 = vmatprep.subr.mxu0 0.0
    %3296 = vmatpush1.msra.mxu0 %v3278
    %3297 = vmatprep.subr.mxu0 0.0
    %3298 = vmatpush1.msra.mxu0 %v3279
    %3299 = vmatprep.subr.mxu0 0.0
    %3300 = vmatpush1.msra.mxu0 0.0
    %3301 = vmatprep.subr.mxu0 0.0
    %3302 = vmatpush1.msra.mxu0 0.0
    %3303 = vmatprep.subr.mxu0 0.0
    %3304 = vmatpush1.msra.mxu0 0.0
    %3305 = vmatprep.subr.mxu0 0.0
    %3306 = vmatpush1.msra.mxu0 0.0
    %3307 = vmatprep.subr.mxu0 0.0
    %3308 = vmatpush1.msra.mxu0 0.0
    %3309 = vmatprep.subr.mxu0 0.0
    %3310 = vmatpush1.msra.mxu0 0.0
    %3311 = vmatprep.subr.mxu0 0.0
    %3312 = vmatpush1.msra.mxu0 0.0
    %3313 = vmatprep.subr.mxu0 0.0
    %3314 = vmatpush1.msra.mxu0 0.0
    %3315 = vmatprep.subr.mxu0 0.0
    %3316 = vmatpush1.msra.mxu0 0.0
    %3317 = vmatprep.subr.mxu0 0.0
    %3318 = vmatpush1.msra.mxu0 0.0
    %3319 = vmatprep.subr.mxu0 0.0
    %3320 = vmatpush1.msra.mxu0 0.0
    %3321 = vmatprep.subr.mxu0 0.0
    %3322 = vmatpush1.msra.mxu0 0.0
    %3323 = vmatprep.subr.mxu0 0.0
    %3324 = vmatpush1.msra.mxu0 0.0
    %3325 = vmatprep.subr.mxu0 0.0
    %3326 = vmatpush1.msra.mxu0 0.0
    %3327 = vmatprep.subr.mxu0 0.0
    %3328 = vmatpush1.msra.mxu0 0.0
    %3329 = vmatprep.subr.mxu0 0.0
    %3330 = vmatpush1.msra.mxu0 0.0
    %3331 = vmatprep.subr.mxu0 0.0
    %3332 = vmatpush1.msra.mxu0 0.0
    %3333 = vmatprep.subr.mxu0 0.0
    %3334 = vmatpush1.msra.mxu0 0.0
    %3335 = vmatprep.subr.mxu0 0.0
    %3336 = vmatpush1.msra.mxu0 0.0
    %3337 = vmatprep.subr.mxu0 0.0
    %3338 = vmatpush1.msra.mxu0 0.0
    %3339 = vmatprep.subr.mxu0 0.0
    %3340 = vmatpush1.msra.mxu0 0.0
    %3341 = vmatprep.subr.mxu0 0.0
    %3342 = vmatpush1.msra.mxu0 0.0
    %3343 = vmatprep.subr.mxu0 0.0
    %3344 = vmatpush1.msra.mxu0 0.0
    %3345 = vmatprep.subr.mxu0 0.0
    %3346 = vmatpush1.msra.mxu0 0.0
    %3347 = vmatprep.subr.mxu0 0.0
    %3348 = vmatpush1.msra.mxu0 0.0
    %3349 = vmatprep.subr.mxu0 0.0
    %3350 = vmatpush1.msra.mxu0 0.0
    %3351 = vmatprep.subr.mxu0 0.0
    %3352 = vmatpush1.msra.mxu0 0.0
    %3353 = vmatprep.subr.mxu0 0.0
    %3354 = vmatpush1.msra.mxu0 0.0
    %3355 = vmatprep.mubr.f32.mxu0 0.0
    %3356 = vmatmul.mubr.f32.gmra.mrb[0].mxu0 %v3287
    %v3357 = vpop.f32.mrb[0].mxu0
    %v3358 = vadd.f32 0.0, %v3357
    %v3359 = vpop.f32.mrb[0].mxu0
    %3360 = vmatprep.mubr.f32.mxu0 0.0
    %3361 = vmatmul.mubr.f32.gmra.mrb[0].mxu0 %v3289
    %v3362 = vpop.f32.mrb[0].mxu0
    %v3363 = vadd.f32 0.0, %v3362
    %v3364 = vpop.f32.mrb[0].mxu0
    %3365 = vdwg.mxu0
    %v3367 = vlaneseq
    %v3368 = vshrl.u32 %v3367, 7
    %v3369 = vsub.s32 0, %v3368
    %v3370 = vrot.slane %v3280, %v3369
    %vm3372 = vcmask 130048
    %v3374 = vsel %vm3372, %v3274, 0
    %v3377 = vsel %vm3372, %v3275, 0
    %3379 = vmatprep.subr.mxu0 0.0
    %3380 = vmatpush1.msra.mxu0 %v3358
    %3381 = vmatprep.subr.mxu0 0.0
    %3382 = vmatpush1.msra.mxu0 %v3363
    %3383 = vmatprep.subr.mxu0 0.0
    %3384 = vmatpush1.msra.mxu0 0.0
    %3385 = vmatprep.subr.mxu0 0.0
    %3386 = vmatpush1.msra.mxu0 0.0
    %3387 = vmatprep.subr.mxu0 0.0
    %3388 = vmatpush1.msra.mxu0 0.0
    %3389 = vmatprep.subr.mxu0 0.0
    %3390 = vmatpush1.msra.mxu0 0.0
    %3391 = vmatprep.subr.mxu0 0.0
    %3392 = vmatpush1.msra.mxu0 0.0
    %3393 = vmatprep.subr.mxu0 0.0
    %3394 = vmatpush1.msra.mxu0 0.0
    %3395 = vmatprep.subr.mxu0 0.0
    %3396 = vmatpush1.msra.mxu0 0.0
    %3397 = vmatprep.subr.mxu0 0.0
    %3398 = vmatpush1.msra.mxu0 0.0
    %3399 = vmatprep.subr.mxu0 0.0
    %3400 = vmatpush1.msra.mxu0 0.0
    %3401 = vmatprep.subr.mxu0 0.0
    %3402 = vmatpush1.msra.mxu0 0.0
    %3403 = vmatprep.subr.mxu0 0.0
    %3404 = vmatpush1.msra.mxu0 0.0
    %3405 = vmatprep.subr.mxu0 0.0
    %3406 = vmatpush1.msra.mxu0 0.0
    %3407 = vmatprep.subr.mxu0 0.0
    %3408 = vmatpush1.msra.mxu0 0.0
    %3409 = vmatprep.subr.mxu0 0.0
    %3410 = vmatpush1.msra.mxu0 0.0
    %3411 = vmatprep.subr.mxu0 0.0
    %3412 = vmatpush1.msra.mxu0 0.0
    %3413 = vmatprep.subr.mxu0 0.0
    %3414 = vmatpush1.msra.mxu0 0.0
    %3415 = vmatprep.subr.mxu0 0.0
    %3416 = vmatpush1.msra.mxu0 0.0
    %3417 = vmatprep.subr.mxu0 0.0
    %3418 = vmatpush1.msra.mxu0 0.0
    %3419 = vmatprep.subr.mxu0 0.0
    %3420 = vmatpush1.msra.mxu0 0.0
    %3421 = vmatprep.subr.mxu0 0.0
    %3422 = vmatpush1.msra.mxu0 0.0
    %3423 = vmatprep.subr.mxu0 0.0
    %3424 = vmatpush1.msra.mxu0 0.0
    %3425 = vmatprep.subr.mxu0 0.0
    %3426 = vmatpush1.msra.mxu0 0.0
    %3427 = vmatprep.subr.mxu0 0.0
    %3428 = vmatpush1.msra.mxu0 0.0
    %3429 = vmatprep.subr.mxu0 0.0
    %3430 = vmatpush1.msra.mxu0 0.0
    %3431 = vmatprep.subr.mxu0 0.0
    %3432 = vmatpush1.msra.mxu0 0.0
    %3433 = vmatprep.subr.mxu0 0.0
    %3434 = vmatpush1.msra.mxu0 0.0
    %3435 = vmatprep.subr.mxu0 0.0
    %3436 = vmatpush1.msra.mxu0 0.0
    %3437 = vmatprep.subr.mxu0 0.0
    %3438 = vmatpush1.msra.mxu0 0.0
    %3439 = vmatprep.subr.mxu0 0.0
    %3440 = vmatpush1.msra.mxu0 0.0
    %3441 = vmatprep.subr.mxu0 0.0
    %3442 = vmatpush1.msra.mxu0 0.0
    %3443 = vmatprep.mubr.f32.mxu0 0.0
    %3444 = vmatmul.mubr.f32.gmra.mrb[0].mxu0 %v3374
    %v3445 = vpop.f32.mrb[0].mxu0
    %v3446 = vadd.f32 %v3370, %v3445
    %v3447 = vpop.f32.mrb[0].mxu0
    %3448 = vmatprep.mubr.f32.mxu0 0.0
    %3449 = vmatmul.mubr.f32.gmra.mrb[0].mxu0 %v3377
    %v3450 = vpop.f32.mrb[0].mxu0
    %v3451 = vadd.f32 %v3370, %v3450
    %v3452 = vpop.f32.mrb[0].mxu0
    %3453 = vdwg.mxu0
    %v3454 = vmax.f32 %v3446, 0.0
    %v3455 = vmax.f32 %v3451, 0.0
    %v3456 = vld [vmem:[%s10] sm:$0xff]
    %v3457 = vld [vmem:[%s10 + $0x8] sm:$0xff]
    %v3458 = vld [vmem:[%s10 + $0x10] sm:$0xff]
    %v3459 = vld [vmem:[%s10 + $0x18] sm:$0xff]
    %v3460 = vld [vmem:[%s11] sm:$0x1]
    %v3462 = vsel %vm1852, %v3454, 0
    %v3465 = vsel %vm1852, %v3455, 0
    %3467 = vmatprep.subr.mxu0 0.0
    %3468 = vmatpush1.msra.mxu0 %v3456
    %3469 = vmatprep.subr.mxu0 0.0
    %3470 = vmatpush1.msra.mxu0 %v3457
    %3471 = vmatprep.subr.mxu0 0.0
    %3472 = vmatpush1.msra.mxu0 %v3458
    %3473 = vmatprep.subr.mxu0 0.0
    %3474 = vmatpush1.msra.mxu0 %v3459
    %3475 = vmatprep.subr.mxu0 0.0
    %3476 = vmatpush1.msra.mxu0 0.0
    %3477 = vmatprep.subr.mxu0 0.0
    %3478 = vmatpush1.msra.mxu0 0.0
    %3479 = vmatprep.subr.mxu0 0.0
    %3480 = vmatpush1.msra.mxu0 0.0
    %3481 = vmatprep.subr.mxu0 0.0
    %3482 = vmatpush1.msra.mxu0 0.0
    %3483 = vmatprep.subr.mxu0 0.0
    %3484 = vmatpush1.msra.mxu0 0.0
    %3485 = vmatprep.subr.mxu0 0.0
    %3486 = vmatpush1.msra.mxu0 0.0
    %3487 = vmatprep.subr.mxu0 0.0
    %3488 = vmatpush1.msra.mxu0 0.0
    %3489 = vmatprep.subr.mxu0 0.0
    %3490 = vmatpush1.msra.mxu0 0.0
    %3491 = vmatprep.subr.mxu0 0.0
    %3492 = vmatpush1.msra.mxu0 0.0
    %3493 = vmatprep.subr.mxu0 0.0
    %3494 = vmatpush1.msra.mxu0 0.0
    %3495 = vmatprep.subr.mxu0 0.0
    %3496 = vmatpush1.msra.mxu0 0.0
    %3497 = vmatprep.subr.mxu0 0.0
    %3498 = vmatpush1.msra.mxu0 0.0
    %3499 = vmatprep.subr.mxu0 0.0
    %3500 = vmatpush1.msra.mxu0 0.0
    %3501 = vmatprep.subr.mxu0 0.0
    %3502 = vmatpush1.msra.mxu0 0.0
    %3503 = vmatprep.subr.mxu0 0.0
    %3504 = vmatpush1.msra.mxu0 0.0
    %3505 = vmatprep.subr.mxu0 0.0
    %3506 = vmatpush1.msra.mxu0 0.0
    %3507 = vmatprep.subr.mxu0 0.0
    %3508 = vmatpush1.msra.mxu0 0.0
    %3509 = vmatprep.subr.mxu0 0.0
    %3510 = vmatpush1.msra.mxu0 0.0
    %3511 = vmatprep.subr.mxu0 0.0
    %3512 = vmatpush1.msra.mxu0 0.0
    %3513 = vmatprep.subr.mxu0 0.0
    %3514 = vmatpush1.msra.mxu0 0.0
    %3515 = vmatprep.subr.mxu0 0.0
    %3516 = vmatpush1.msra.mxu0 0.0
    %3517 = vmatprep.subr.mxu0 0.0
    %3518 = vmatpush1.msra.mxu0 0.0
    %3519 = vmatprep.subr.mxu0 0.0
    %3520 = vmatpush1.msra.mxu0 0.0
    %3521 = vmatprep.subr.mxu0 0.0
    %3522 = vmatpush1.msra.mxu0 0.0
    %3523 = vmatprep.subr.mxu0 0.0
    %3524 = vmatpush1.msra.mxu0 0.0
    %3525 = vmatprep.subr.mxu0 0.0
    %3526 = vmatpush1.msra.mxu0 0.0
    %3527 = vmatprep.subr.mxu0 0.0
    %3528 = vmatpush1.msra.mxu0 0.0
    %3529 = vmatprep.subr.mxu0 0.0
    %3530 = vmatpush1.msra.mxu0 0.0
    %3531 = vmatprep.mubr.f32.mxu0 0.0
    %3532 = vmatmul.mubr.f32.gmra.mrb[0].mxu0 %v3462
    %v3533 = vpop.f32.mrb[0].mxu0
    %v3534 = vadd.f32 0.0, %v3533
    %v3535 = vpop.f32.mrb[0].mxu0
    %3536 = vmatprep.mubr.f32.mxu0 0.0
    %3537 = vmatmul.mubr.f32.gmra.mrb[0].mxu0 %v3465
    %v3538 = vpop.f32.mrb[0].mxu0
    %v3539 = vadd.f32 0.0, %v3538
    %v3540 = vpop.f32.mrb[0].mxu0
    %3541 = vdwg.mxu0
    %v3543 = vlaneseq
    %v3544 = vshrl.u32 %v3543, 7
    %v3545 = vsub.s32 0, %v3544
    %v3546 = vrot.slane %v3460, %v3545
    %3548 = vmatprep.subr.mxu0 0.0
    %3549 = vmatpush1.msra.mxu0 %v3534
    %3550 = vmatprep.subr.mxu0 0.0
    %3551 = vmatpush1.msra.mxu0 %v3539
    %3552 = vmatprep.subr.mxu0 0.0
    %3553 = vmatpush1.msra.mxu0 0.0
    %3554 = vmatprep.subr.mxu0 0.0
    %3555 = vmatpush1.msra.mxu0 0.0
    %3556 = vmatprep.subr.mxu0 0.0
    %3557 = vmatpush1.msra.mxu0 0.0
    %3558 = vmatprep.subr.mxu0 0.0
    %3559 = vmatpush1.msra.mxu0 0.0
    %3560 = vmatprep.subr.mxu0 0.0
    %3561 = vmatpush1.msra.mxu0 0.0
    %3562 = vmatprep.subr.mxu0 0.0
    %3563 = vmatpush1.msra.mxu0 0.0
    %3564 = vmatprep.subr.mxu0 0.0
    %3565 = vmatpush1.msra.mxu0 0.0
    %3566 = vmatprep.subr.mxu0 0.0
    %3567 = vmatpush1.msra.mxu0 0.0
    %3568 = vmatprep.subr.mxu0 0.0
    %3569 = vmatpush1.msra.mxu0 0.0
    %3570 = vmatprep.subr.mxu0 0.0
    %3571 = vmatpush1.msra.mxu0 0.0
    %3572 = vmatprep.subr.mxu0 0.0
    %3573 = vmatpush1.msra.mxu0 0.0
    %3574 = vmatprep.subr.mxu0 0.0
    %3575 = vmatpush1.msra.mxu0 0.0
    %3576 = vmatprep.subr.mxu0 0.0
    %3577 = vmatpush1.msra.mxu0 0.0
    %3578 = vmatprep.subr.mxu0 0.0
    %3579 = vmatpush1.msra.mxu0 0.0
    %3580 = vmatprep.subr.mxu0 0.0
    %3581 = vmatpush1.msra.mxu0 0.0
    %3582 = vmatprep.subr.mxu0 0.0
    %3583 = vmatpush1.msra.mxu0 0.0
    %3584 = vmatprep.subr.mxu0 0.0
    %3585 = vmatpush1.msra.mxu0 0.0
    %3586 = vmatprep.subr.mxu0 0.0
    %3587 = vmatpush1.msra.mxu0 0.0
    %3588 = vmatprep.subr.mxu0 0.0
    %3589 = vmatpush1.msra.mxu0 0.0
    %3590 = vmatprep.subr.mxu0 0.0
    %3591 = vmatpush1.msra.mxu0 0.0
    %3592 = vmatprep.subr.mxu0 0.0
    %3593 = vmatpush1.msra.mxu0 0.0
    %3594 = vmatprep.subr.mxu0 0.0
    %3595 = vmatpush1.msra.mxu0 0.0
    %3596 = vmatprep.subr.mxu0 0.0
    %3597 = vmatpush1.msra.mxu0 0.0
    %3598 = vmatprep.subr.mxu0 0.0
    %3599 = vmatpush1.msra.mxu0 0.0
    %3600 = vmatprep.subr.mxu0 0.0
    %3601 = vmatpush1.msra.mxu0 0.0
    %3602 = vmatprep.subr.mxu0 0.0
    %3603 = vmatpush1.msra.mxu0 0.0
    %3604 = vmatprep.subr.mxu0 0.0
    %3605 = vmatpush1.msra.mxu0 0.0
    %3606 = vmatprep.subr.mxu0 0.0
    %3607 = vmatpush1.msra.mxu0 0.0
    %3608 = vmatprep.subr.mxu0 0.0
    %3609 = vmatpush1.msra.mxu0 0.0
    %3610 = vmatprep.subr.mxu0 0.0
    %3611 = vmatpush1.msra.mxu0 0.0
    %3612 = vmatprep.mubr.f32.mxu0 0.0
    %3613 = vmatmul.mubr.f32.gmra.mrb[0].mxu0 %v3374
    %v3614 = vpop.f32.mrb[0].mxu0
    %v3615 = vadd.f32 %v3546, %v3614
    %v3616 = vpop.f32.mrb[0].mxu0
    %3617 = vmatprep.mubr.f32.mxu0 0.0
    %3618 = vmatmul.mubr.f32.gmra.mrb[0].mxu0 %v3377
    %v3619 = vpop.f32.mrb[0].mxu0
    %v3620 = vadd.f32 %v3546, %v3619
    %v3621 = vpop.f32.mrb[0].mxu0
    %3622 = vdwg.mxu0
    %v3623 = vmax.f32 %v3615, 0.0
    %v3624 = vmax.f32 %v3620, 0.0
    %v3625 = vlaneseq
    %v3626 = vand.u32 %v3625, 127
    %v3627 = vld [vmem:[%s14] sm:$0x1]
    %v3629 = vlaneseq
    %v3630 = vshrl.u32 %v3629, 7
    %v3631 = vsub.s32 0, %v3630
    %v3632 = vrot.slane %v3627, %v3631
    %v3634 = vld [vmem:[%s12] sm:$0x3]
    %3635 = vset.pattern.permute.xlu0 0
    %3636 = vperm.xlu0 %3635, %v3634
    %v3637 = vpop.permute.xlu0 %3636
    %vm3638 = vcmp.eq.s32.totalorder %v3626, %v3637
    %v3639 = vsel %vm3638, 1.0, 0.0
    %v3641 = vsel %vm3372, %v3639, 0
    %3643 = vmatprep.subr.mxu0 0.0
    %3644 = vmatpush1.msra.mxu0 %v3623
    %3645 = vmatprep.subr.mxu0 0.0
    %3646 = vmatpush1.msra.mxu0 %v3624
    %3647 = vmatprep.subr.mxu0 0.0
    %3648 = vmatpush1.msra.mxu0 0.0
    %3649 = vmatprep.subr.mxu0 0.0
    %3650 = vmatpush1.msra.mxu0 0.0
    %3651 = vmatprep.subr.mxu0 0.0
    %3652 = vmatpush1.msra.mxu0 0.0
    %3653 = vmatprep.subr.mxu0 0.0
    %3654 = vmatpush1.msra.mxu0 0.0
    %3655 = vmatprep.subr.mxu0 0.0
    %3656 = vmatpush1.msra.mxu0 0.0
    %3657 = vmatprep.subr.mxu0 0.0
    %3658 = vmatpush1.msra.mxu0 0.0
    %3659 = vmatprep.subr.mxu0 0.0
    %3660 = vmatpush1.msra.mxu0 0.0
    %3661 = vmatprep.subr.mxu0 0.0
    %3662 = vmatpush1.msra.mxu0 0.0
    %3663 = vmatprep.subr.mxu0 0.0
    %3664 = vmatpush1.msra.mxu0 0.0
    %3665 = vmatprep.subr.mxu0 0.0
    %3666 = vmatpush1.msra.mxu0 0.0
    %3667 = vmatprep.subr.mxu0 0.0
    %3668 = vmatpush1.msra.mxu0 0.0
    %3669 = vmatprep.subr.mxu0 0.0
    %3670 = vmatpush1.msra.mxu0 0.0
    %3671 = vmatprep.subr.mxu0 0.0
    %3672 = vmatpush1.msra.mxu0 0.0
    %3673 = vmatprep.subr.mxu0 0.0
    %3674 = vmatpush1.msra.mxu0 0.0
    %3675 = vmatprep.subr.mxu0 0.0
    %3676 = vmatpush1.msra.mxu0 0.0
    %3677 = vmatprep.subr.mxu0 0.0
    %3678 = vmatpush1.msra.mxu0 0.0
    %3679 = vmatprep.subr.mxu0 0.0
    %3680 = vmatpush1.msra.mxu0 0.0
    %3681 = vmatprep.subr.mxu0 0.0
    %3682 = vmatpush1.msra.mxu0 0.0
    %3683 = vmatprep.subr.mxu0 0.0
    %3684 = vmatpush1.msra.mxu0 0.0
    %3685 = vmatprep.subr.mxu0 0.0
    %3686 = vmatpush1.msra.mxu0 0.0
    %3687 = vmatprep.subr.mxu0 0.0
    %3688 = vmatpush1.msra.mxu0 0.0
    %3689 = vmatprep.subr.mxu0 0.0
    %3690 = vmatpush1.msra.mxu0 0.0
    %3691 = vmatprep.subr.mxu0 0.0
    %3692 = vmatpush1.msra.mxu0 0.0
    %3693 = vmatprep.subr.mxu0 0.0
    %3694 = vmatpush1.msra.mxu0 0.0
    %3695 = vmatprep.subr.mxu0 0.0
    %3696 = vmatpush1.msra.mxu0 0.0
    %3697 = vmatprep.subr.mxu0 0.0
    %3698 = vmatpush1.msra.mxu0 0.0
    %3699 = vmatprep.subr.mxu0 0.0
    %3700 = vmatpush1.msra.mxu0 0.0
    %3701 = vmatprep.subr.mxu0 0.0
    %3702 = vmatpush1.msra.mxu0 0.0
    %3703 = vmatprep.subr.mxu0 0.0
    %3704 = vmatpush1.msra.mxu0 0.0
    %3705 = vmatprep.subr.mxu0 0.0
    %3706 = vmatpush1.msra.mxu0 0.0
    %3707 = vmatprep.mubr.f32.mxu0 0.0
    %3708 = vmatmul.mubr.f32.gmra.mrb[0].mxu0 %v3641
    %v3709 = vpop.f32.mrb[0].mxu0
    %v3710 = vadd.f32 0.0, %v3709
    %v3711 = vpop.f32.mrb[0].mxu0
    %3712 = vdwg.mxu0
    %v3713 = vld [vmem:[%s13] sm:$0xff]
    %v3714 = vld [vmem:[%s13 + $0x8] sm:$0xff]
    %v3715 = vld [vmem:[%s13 + $0x10] sm:$0xff]
    %v3716 = vld [vmem:[%s13 + $0x18] sm:$0xff]
    %v3718 = vsel %vm1852, %v3710, 0
    %3720 = vmatprep.subr.mxu0 0.0
    %3721 = vmatpush1.msra.mxu0 %v3713
    %3722 = vmatprep.subr.mxu0 0.0
    %3723 = vmatpush1.msra.mxu0 %v3714
    %3724 = vmatprep.subr.mxu0 0.0
    %3725 = vmatpush1.msra.mxu0 %v3715
    %3726 = vmatprep.subr.mxu0 0.0
    %3727 = vmatpush1.msra.mxu0 %v3716
    %3728 = vmatprep.subr.mxu0 0.0
    %3729 = vmatpush1.msra.mxu0 0.0
    %3730 = vmatprep.subr.mxu0 0.0
    %3731 = vmatpush1.msra.mxu0 0.0
    %3732 = vmatprep.subr.mxu0 0.0
    %3733 = vmatpush1.msra.mxu0 0.0
    %3734 = vmatprep.subr.mxu0 0.0
    %3735 = vmatpush1.msra.mxu0 0.0
    %3736 = vmatprep.subr.mxu0 0.0
    %3737 = vmatpush1.msra.mxu0 0.0
    %3738 = vmatprep.subr.mxu0 0.0
    %3739 = vmatpush1.msra.mxu0 0.0
    %3740 = vmatprep.subr.mxu0 0.0
    %3741 = vmatpush1.msra.mxu0 0.0
    %3742 = vmatprep.subr.mxu0 0.0
    %3743 = vmatpush1.msra.mxu0 0.0
    %3744 = vmatprep.subr.mxu0 0.0
    %3745 = vmatpush1.msra.mxu0 0.0
    %3746 = vmatprep.subr.mxu0 0.0
    %3747 = vmatpush1.msra.mxu0 0.0
    %3748 = vmatprep.subr.mxu0 0.0
    %3749 = vmatpush1.msra.mxu0 0.0
    %3750 = vmatprep.subr.mxu0 0.0
    %3751 = vmatpush1.msra.mxu0 0.0
    %3752 = vmatprep.subr.mxu0 0.0
    %3753 = vmatpush1.msra.mxu0 0.0
    %3754 = vmatprep.subr.mxu0 0.0
    %3755 = vmatpush1.msra.mxu0 0.0
    %3756 = vmatprep.subr.mxu0 0.0
    %3757 = vmatpush1.msra.mxu0 0.0
    %3758 = vmatprep.subr.mxu0 0.0
    %3759 = vmatpush1.msra.mxu0 0.0
    %3760 = vmatprep.subr.mxu0 0.0
    %3761 = vmatpush1.msra.mxu0 0.0
    %3762 = vmatprep.subr.mxu0 0.0
    %3763 = vmatpush1.msra.mxu0 0.0
    %3764 = vmatprep.subr.mxu0 0.0
    %3765 = vmatpush1.msra.mxu0 0.0
    %3766 = vmatprep.subr.mxu0 0.0
    %3767 = vmatpush1.msra.mxu0 0.0
    %3768 = vmatprep.subr.mxu0 0.0
    %3769 = vmatpush1.msra.mxu0 0.0
    %3770 = vmatprep.subr.mxu0 0.0
    %3771 = vmatpush1.msra.mxu0 0.0
    %3772 = vmatprep.subr.mxu0 0.0
    %3773 = vmatpush1.msra.mxu0 0.0
    %3774 = vmatprep.subr.mxu0 0.0
    %3775 = vmatpush1.msra.mxu0 0.0
    %3776 = vmatprep.subr.mxu0 0.0
    %3777 = vmatpush1.msra.mxu0 0.0
    %3778 = vmatprep.subr.mxu0 0.0
    %3779 = vmatpush1.msra.mxu0 0.0
    %3780 = vmatprep.subr.mxu0 0.0
    %3781 = vmatpush1.msra.mxu0 0.0
    %3782 = vmatprep.subr.mxu0 0.0
    %3783 = vmatpush1.msra.mxu0 0.0
    %3784 = vmatprep.mubr.f32.mxu0 0.0
    %3785 = vmatmul.mubr.f32.gmra.mrb[0].mxu0 %v3718
    %v3786 = vpop.f32.mrb[0].mxu0
    %v3787 = vadd.f32 0.0, %v3786
    %v3788 = vpop.f32.mrb[0].mxu0
    %3789 = vdwg.mxu0
    %v3790 = vadd.f32 %v3632, %v3787
    %3791 = vset.pattern.permute.xlu0 1
    %3792 = vperm.xlu0 %3791, %v3634
    %v3793 = vpop.permute.xlu0 %3792
    %vm3794 = vcmp.eq.s32.totalorder %v3626, %v3793
    %v3795 = vsel %vm3794, 1.0, 0.0
    %v3797 = vsel %vm3372, %v3795, 0
    %3799 = vmatprep.subr.mxu0 0.0
    %3800 = vmatpush1.msra.mxu0 %v3623
    %3801 = vmatprep.subr.mxu0 0.0
    %3802 = vmatpush1.msra.mxu0 %v3624
    %3803 = vmatprep.subr.mxu0 0.0
    %3804 = vmatpush1.msra.mxu0 0.0
    %3805 = vmatprep.subr.mxu0 0.0
    %3806 = vmatpush1.msra.mxu0 0.0
    %3807 = vmatprep.subr.mxu0 0.0
    %3808 = vmatpush1.msra.mxu0 0.0
    %3809 = vmatprep.subr.mxu0 0.0
    %3810 = vmatpush1.msra.mxu0 0.0
    %3811 = vmatprep.subr.mxu0 0.0
    %3812 = vmatpush1.msra.mxu0 0.0
    %3813 = vmatprep.subr.mxu0 0.0
    %3814 = vmatpush1.msra.mxu0 0.0
    %3815 = vmatprep.subr.mxu0 0.0
    %3816 = vmatpush1.msra.mxu0 0.0
    %3817 = vmatprep.subr.mxu0 0.0
    %3818 = vmatpush1.msra.mxu0 0.0
    %3819 = vmatprep.subr.mxu0 0.0
    %3820 = vmatpush1.msra.mxu0 0.0
    %3821 = vmatprep.subr.mxu0 0.0
    %3822 = vmatpush1.msra.mxu0 0.0
    %3823 = vmatprep.subr.mxu0 0.0
    %3824 = vmatpush1.msra.mxu0 0.0
    %3825 = vmatprep.subr.mxu0 0.0
    %3826 = vmatpush1.msra.mxu0 0.0
    %3827 = vmatprep.subr.mxu0 0.0
    %3828 = vmatpush1.msra.mxu0 0.0
    %3829 = vmatprep.subr.mxu0 0.0
    %3830 = vmatpush1.msra.mxu0 0.0
    %3831 = vmatprep.subr.mxu0 0.0
    %3832 = vmatpush1.msra.mxu0 0.0
    %3833 = vmatprep.subr.mxu0 0.0
    %3834 = vmatpush1.msra.mxu0 0.0
    %3835 = vmatprep.subr.mxu0 0.0
    %3836 = vmatpush1.msra.mxu0 0.0
    %3837 = vmatprep.subr.mxu0 0.0
    %3838 = vmatpush1.msra.mxu0 0.0
    %3839 = vmatprep.subr.mxu0 0.0
    %3840 = vmatpush1.msra.mxu0 0.0
    %3841 = vmatprep.subr.mxu0 0.0
    %3842 = vmatpush1.msra.mxu0 0.0
    %3843 = vmatprep.subr.mxu0 0.0
    %3844 = vmatpush1.msra.mxu0 0.0
    %3845 = vmatprep.subr.mxu0 0.0
    %3846 = vmatpush1.msra.mxu0 0.0
    %3847 = vmatprep.subr.mxu0 0.0
    %3848 = vmatpush1.msra.mxu0 0.0
    %3849 = vmatprep.subr.mxu0 0.0
    %3850 = vmatpush1.msra.mxu0 0.0
    %3851 = vmatprep.subr.mxu0 0.0
    %3852 = vmatpush1.msra.mxu0 0.0
    %3853 = vmatprep.subr.mxu0 0.0
    %3854 = vmatpush1.msra.mxu0 0.0
    %3855 = vmatprep.subr.mxu0 0.0
    %3856 = vmatpush1.msra.mxu0 0.0
    %3857 = vmatprep.subr.mxu0 0.0
    %3858 = vmatpush1.msra.mxu0 0.0
    %3859 = vmatprep.subr.mxu0 0.0
    %3860 = vmatpush1.msra.mxu0 0.0
    %3861 = vmatprep.subr.mxu0 0.0
    %3862 = vmatpush1.msra.mxu0 0.0
    %3863 = vmatprep.mubr.f32.mxu0 0.0
    %3864 = vmatmul.mubr.f32.gmra.mrb[0].mxu0 %v3797
    %v3865 = vpop.f32.mrb[0].mxu0
    %v3866 = vadd.f32 0.0, %v3865
    %v3867 = vpop.f32.mrb[0].mxu0
    %3868 = vdwg.mxu0
    %v3869 = vld [vmem:[%s13 + $0x20] sm:$0xff]
    %v3870 = vld [vmem:[%s13 + $0x28] sm:$0xff]
    %v3871 = vld [vmem:[%s13 + $0x30] sm:$0xff]
    %v3872 = vld [vmem:[%s13 + $0x38] sm:$0xff]
    %v3874 = vsel %vm1852, %v3866, 0
    %3876 = vmatprep.subr.mxu0 0.0
    %3877 = vmatpush1.msra.mxu0 %v3869
    %3878 = vmatprep.subr.mxu0 0.0
    %3879 = vmatpush1.msra.mxu0 %v3870
    %3880 = vmatprep.subr.mxu0 0.0
    %3881 = vmatpush1.msra.mxu0 %v3871
    %3882 = vmatprep.subr.mxu0 0.0
    %3883 = vmatpush1.msra.mxu0 %v3872
    %3884 = vmatprep.subr.mxu0 0.0
    %3885 = vmatpush1.msra.mxu0 0.0
    %3886 = vmatprep.subr.mxu0 0.0
    %3887 = vmatpush1.msra.mxu0 0.0
    %3888 = vmatprep.subr.mxu0 0.0
    %3889 = vmatpush1.msra.mxu0 0.0
    %3890 = vmatprep.subr.mxu0 0.0
    %3891 = vmatpush1.msra.mxu0 0.0
    %3892 = vmatprep.subr.mxu0 0.0
    %3893 = vmatpush1.msra.mxu0 0.0
    %3894 = vmatprep.subr.mxu0 0.0
    %3895 = vmatpush1.msra.mxu0 0.0
    %3896 = vmatprep.subr.mxu0 0.0
    %3897 = vmatpush1.msra.mxu0 0.0
    %3898 = vmatprep.subr.mxu0 0.0
    %3899 = vmatpush1.msra.mxu0 0.0
    %3900 = vmatprep.subr.mxu0 0.0
    %3901 = vmatpush1.msra.mxu0 0.0
    %3902 = vmatprep.subr.mxu0 0.0
    %3903 = vmatpush1.msra.mxu0 0.0
    %3904 = vmatprep.subr.mxu0 0.0
    %3905 = vmatpush1.msra.mxu0 0.0
    %3906 = vmatprep.subr.mxu0 0.0
    %3907 = vmatpush1.msra.mxu0 0.0
    %3908 = vmatprep.subr.mxu0 0.0
    %3909 = vmatpush1.msra.mxu0 0.0
    %3910 = vmatprep.subr.mxu0 0.0
    %3911 = vmatpush1.msra.mxu0 0.0
    %3912 = vmatprep.subr.mxu0 0.0
    %3913 = vmatpush1.msra.mxu0 0.0
    %3914 = vmatprep.subr.mxu0 0.0
    %3915 = vmatpush1.msra.mxu0 0.0
    %3916 = vmatprep.subr.mxu0 0.0
    %3917 = vmatpush1.msra.mxu0 0.0
    %3918 = vmatprep.subr.mxu0 0.0
    %3919 = vmatpush1.msra.mxu0 0.0
    %3920 = vmatprep.subr.mxu0 0.0
    %3921 = vmatpush1.msra.mxu0 0.0
    %3922 = vmatprep.subr.mxu0 0.0
    %3923 = vmatpush1.msra.mxu0 0.0
    %3924 = vmatprep.subr.mxu0 0.0
    %3925 = vmatpush1.msra.mxu0 0.0
    %3926 = vmatprep.subr.mxu0 0.0
    %3927 = vmatpush1.msra.mxu0 0.0
    %3928 = vmatprep.subr.mxu0 0.0
    %3929 = vmatpush1.msra.mxu0 0.0
    %3930 = vmatprep.subr.mxu0 0.0
    %3931 = vmatpush1.msra.mxu0 0.0
    %3932 = vmatprep.subr.mxu0 0.0
    %3933 = vmatpush1.msra.mxu0 0.0
    %3934 = vmatprep.subr.mxu0 0.0
    %3935 = vmatpush1.msra.mxu0 0.0
    %3936 = vmatprep.subr.mxu0 0.0
    %3937 = vmatpush1.msra.mxu0 0.0
    %3938 = vmatprep.subr.mxu0 0.0
    %3939 = vmatpush1.msra.mxu0 0.0
    %3940 = vmatprep.mubr.f32.mxu0 0.0
    %3941 = vmatmul.mubr.f32.gmra.mrb[0].mxu0 %v3874
    %v3942 = vpop.f32.mrb[0].mxu0
    %v3943 = vadd.f32 0.0, %v3942
    %v3944 = vpop.f32.mrb[0].mxu0
    %3945 = vdwg.mxu0
    %v3946 = vadd.f32 %v3790, %v3943
    %3947 = vset.pattern.permute.xlu0 2
    %3948 = vperm.xlu0 %3947, %v3634
    %v3949 = vpop.permute.xlu0 %3948
    %vm3950 = vcmp.eq.s32.totalorder %v3626, %v3949
    %v3951 = vsel %vm3950, 1.0, 0.0
    %v3953 = vsel %vm3372, %v3951, 0
    %3955 = vmatprep.subr.mxu0 0.0
    %3956 = vmatpush1.msra.mxu0 %v3623
    %3957 = vmatprep.subr.mxu0 0.0
    %3958 = vmatpush1.msra.mxu0 %v3624
    %3959 = vmatprep.subr.mxu0 0.0
    %3960 = vmatpush1.msra.mxu0 0.0
    %3961 = vmatprep.subr.mxu0 0.0
    %3962 = vmatpush1.msra.mxu0 0.0
    %3963 = vmatprep.subr.mxu0 0.0
    %3964 = vmatpush1.msra.mxu0 0.0
    %3965 = vmatprep.subr.mxu0 0.0
    %3966 = vmatpush1.msra.mxu0 0.0
    %3967 = vmatprep.subr.mxu0 0.0
    %3968 = vmatpush1.msra.mxu0 0.0
    %3969 = vmatprep.subr.mxu0 0.0
    %3970 = vmatpush1.msra.mxu0 0.0
    %3971 = vmatprep.subr.mxu0 0.0
    %3972 = vmatpush1.msra.mxu0 0.0
    %3973 = vmatprep.subr.mxu0 0.0
    %3974 = vmatpush1.msra.mxu0 0.0
    %3975 = vmatprep.subr.mxu0 0.0
    %3976 = vmatpush1.msra.mxu0 0.0
    %3977 = vmatprep.subr.mxu0 0.0
    %3978 = vmatpush1.msra.mxu0 0.0
    %3979 = vmatprep.subr.mxu0 0.0
    %3980 = vmatpush1.msra.mxu0 0.0
    %3981 = vmatprep.subr.mxu0 0.0
    %3982 = vmatpush1.msra.mxu0 0.0
    %3983 = vmatprep.subr.mxu0 0.0
    %3984 = vmatpush1.msra.mxu0 0.0
    %3985 = vmatprep.subr.mxu0 0.0
    %3986 = vmatpush1.msra.mxu0 0.0
    %3987 = vmatprep.subr.mxu0 0.0
    %3988 = vmatpush1.msra.mxu0 0.0
    %3989 = vmatprep.subr.mxu0 0.0
    %3990 = vmatpush1.msra.mxu0 0.0
    %3991 = vmatprep.subr.mxu0 0.0
    %3992 = vmatpush1.msra.mxu0 0.0
    %3993 = vmatprep.subr.mxu0 0.0
    %3994 = vmatpush1.msra.mxu0 0.0
    %3995 = vmatprep.subr.mxu0 0.0
    %3996 = vmatpush1.msra.mxu0 0.0
    %3997 = vmatprep.subr.mxu0 0.0
    %3998 = vmatpush1.msra.mxu0 0.0
    %3999 = vmatprep.subr.mxu0 0.0
    %4000 = vmatpush1.msra.mxu0 0.0
    %4001 = vmatprep.subr.mxu0 0.0
    %4002 = vmatpush1.msra.mxu0 0.0
    %4003 = vmatprep.subr.mxu0 0.0
    %4004 = vmatpush1.msra.mxu0 0.0
    %4005 = vmatprep.subr.mxu0 0.0
    %4006 = vmatpush1.msra.mxu0 0.0
    %4007 = vmatprep.subr.mxu0 0.0
    %4008 = vmatpush1.msra.mxu0 0.0
    %4009 = vmatprep.subr.mxu0 0.0
    %4010 = vmatpush1.msra.mxu0 0.0
    %4011 = vmatprep.subr.mxu0 0.0
    %4012 = vmatpush1.msra.mxu0 0.0
    %4013 = vmatprep.subr.mxu0 0.0
    %4014 = vmatpush1.msra.mxu0 0.0
    %4015 = vmatprep.subr.mxu0 0.0
    %4016 = vmatpush1.msra.mxu0 0.0
    %4017 = vmatprep.subr.mxu0 0.0
    %4018 = vmatpush1.msra.mxu0 0.0
    %4019 = vmatprep.mubr.f32.mxu0 0.0
    %4020 = vmatmul.mubr.f32.gmra.mrb[0].mxu0 %v3953
    %v4021 = vpop.f32.mrb[0].mxu0
    %v4022 = vadd.f32 0.0, %v4021
    %v4023 = vpop.f32.mrb[0].mxu0
    %4024 = vdwg.mxu0
    %v4025 = vld [vmem:[%s13 + $0x40] sm:$0xff]
    %v4026 = vld [vmem:[%s13 + $0x48] sm:$0xff]
    %v4027 = vld [vmem:[%s13 + $0x50] sm:$0xff]
    %v4028 = vld [vmem:[%s13 + $0x58] sm:$0xff]
    %v4030 = vsel %vm1852, %v4022, 0
    %4032 = vmatprep.subr.mxu0 0.0
    %4033 = vmatpush1.msra.mxu0 %v4025
    %4034 = vmatprep.subr.mxu0 0.0
    %4035 = vmatpush1.msra.mxu0 %v4026
    %4036 = vmatprep.subr.mxu0 0.0
    %4037 = vmatpush1.msra.mxu0 %v4027
    %4038 = vmatprep.subr.mxu0 0.0
    %4039 = vmatpush1.msra.mxu0 %v4028
    %4040 = vmatprep.subr.mxu0 0.0
    %4041 = vmatpush1.msra.mxu0 0.0
    %4042 = vmatprep.subr.mxu0 0.0
    %4043 = vmatpush1.msra.mxu0 0.0
    %4044 = vmatprep.subr.mxu0 0.0
    %4045 = vmatpush1.msra.mxu0 0.0
    %4046 = vmatprep.subr.mxu0 0.0
    %4047 = vmatpush1.msra.mxu0 0.0
    %4048 = vmatprep.subr.mxu0 0.0
    %4049 = vmatpush1.msra.mxu0 0.0
    %4050 = vmatprep.subr.mxu0 0.0
    %4051 = vmatpush1.msra.mxu0 0.0
    %4052 = vmatprep.subr.mxu0 0.0
    %4053 = vmatpush1.msra.mxu0 0.0
    %4054 = vmatprep.subr.mxu0 0.0
    %4055 = vmatpush1.msra.mxu0 0.0
    %4056 = vmatprep.subr.mxu0 0.0
    %4057 = vmatpush1.msra.mxu0 0.0
    %4058 = vmatprep.subr.mxu0 0.0
    %4059 = vmatpush1.msra.mxu0 0.0
    %4060 = vmatprep.subr.mxu0 0.0
    %4061 = vmatpush1.msra.mxu0 0.0
    %4062 = vmatprep.subr.mxu0 0.0
    %4063 = vmatpush1.msra.mxu0 0.0
    %4064 = vmatprep.subr.mxu0 0.0
    %4065 = vmatpush1.msra.mxu0 0.0
    %4066 = vmatprep.subr.mxu0 0.0
    %4067 = vmatpush1.msra.mxu0 0.0
    %4068 = vmatprep.subr.mxu0 0.0
    %4069 = vmatpush1.msra.mxu0 0.0
    %4070 = vmatprep.subr.mxu0 0.0
    %4071 = vmatpush1.msra.mxu0 0.0
    %4072 = vmatprep.subr.mxu0 0.0
    %4073 = vmatpush1.msra.mxu0 0.0
    %4074 = vmatprep.subr.mxu0 0.0
    %4075 = vmatpush1.msra.mxu0 0.0
    %4076 = vmatprep.subr.mxu0 0.0
    %4077 = vmatpush1.msra.mxu0 0.0
    %4078 = vmatprep.subr.mxu0 0.0
    %4079 = vmatpush1.msra.mxu0 0.0
    %4080 = vmatprep.subr.mxu0 0.0
    %4081 = vmatpush1.msra.mxu0 0.0
    %4082 = vmatprep.subr.mxu0 0.0
    %4083 = vmatpush1.msra.mxu0 0.0
    %4084 = vmatprep.subr.mxu0 0.0
    %4085 = vmatpush1.msra.mxu0 0.0
    %4086 = vmatprep.subr.mxu0 0.0
    %4087 = vmatpush1.msra.mxu0 0.0
    %4088 = vmatprep.subr.mxu0 0.0
    %4089 = vmatpush1.msra.mxu0 0.0
    %4090 = vmatprep.subr.mxu0 0.0
    %4091 = vmatpush1.msra.mxu0 0.0
    %4092 = vmatprep.subr.mxu0 0.0
    %4093 = vmatpush1.msra.mxu0 0.0
    %4094 = vmatprep.subr.mxu0 0.0
    %4095 = vmatpush1.msra.mxu0 0.0
    %4096 = vmatprep.mubr.f32.mxu0 0.0
    %4097 = vmatmul.mubr.f32.gmra.mrb[0].mxu0 %v4030
    %v4098 = vpop.f32.mrb[0].mxu0
    %v4099 = vadd.f32 0.0, %v4098
    %v4100 = vpop.f32.mrb[0].mxu0
    %4101 = vdwg.mxu0
    %v4102 = vadd.f32 %v3946, %v4099
    %vm4103 = vcmask 123904
    %4104 = vst.msk [vmem:[#allocation2] sm:$0x3] %vm4103, %v4102
    // Predicated region
    $region62: #{tpu_custom_call.1} parent=1 // pred_check
      _
    $region63: #{tpu_custom_call.1} parent=1 // pred_check_branch
      %4106 = sbr.rel (0) target = $region65
    $region64: #{tpu_custom_call.1} parent=1 // pred_region
      %s4108 = ssub.s32 32, 32
      %4109 = vsyncadd [#allocation3], %s4108
      %s4111 = sshll.u32 [#allocation2], 4
      %s4112 = int_to_ptr.vmem [resolvable:$true] %s4111
      %4114 = dma.vmem_to_hbm [thread:$0]  %s4112, 32, %s15, [#allocation3]
    $region65: #{tpu_custom_call.1} parent=1 // pred_fallthru
      _
    // Predicated region
    $region66: #{tpu_custom_call.1} parent=1 // pred_check
      _
    $region67: #{tpu_custom_call.1} parent=1 // pred_check_branch
      %4116 = sbr.rel (0) target = $region69
    $region68: #{tpu_custom_call.1} parent=1 // pred_region
      %4117 = dma.done [#allocation3], 32
    $region69: #{tpu_custom_call.1} parent=1 // pred_fallthru
      _
    %4118 = vsyncpa [#allocation3], 1

</llo_original>
